<compile_context>
chip_gen: v7x
topology: tpu7x:2x2x1
jax: 0.10.0
libtpu: 0.0.40
codegen_flags: <defaults>
</compile_context>

<pallas_src>
import functools

import jax
import jax.numpy as jnp
from jax.experimental import pallas as pl
from jax.experimental.pallas import tpu as pltpu

H1, H2, H3, HOUT = 256, 128, 64, 1
_LANES = 128
_ROW_TILE_QUANTUM = 1024           # keeps output block >= (8, 128) f32
_VMEM_WORKING_BUDGET = 40 << 20    # per-step working-set budget (v7x-safe)
_VMEM_LIMIT_BYTES = 48 << 20       # explicit scoped VMEM limit, all gens


def _default_elementwise_dtype():
    """bf16 elementwise on v6e/v7x (bf16 VALU); f32 on older gens (v5e etc.)."""
    try:
        kind = jax.devices()[0].device_kind.lower()
    except Exception:  # pragma: no cover - no device visible at trace time
        return jnp.float32
    if "v6" in kind or "v7" in kind or "7x" in kind:
        return jnp.bfloat16
    return jnp.float32


def _choose_row_tile(n_rows, d, x_itemsize, ew_itemsize):
    """Largest tile within the VMEM budget that keeps >= 2 grid steps."""
    def footprint(tile):
        x_bufs = 2 * tile * d * x_itemsize                       # dbl-buffered x
        inter = tile * (H1 + H2) * ew_itemsize + tile * H3 * 4   # live h1/h2/h3
        out_bufs = 2 * tile * 4                                  # dbl-buffered out
        return x_bufs + inter + out_bufs

    for tile in (4096, 2048, 1024):
        if footprint(tile) > _VMEM_WORKING_BUDGET:
            continue
        if pl.cdiv(n_rows, tile) >= 2 or tile == _ROW_TILE_QUANTUM:
            return tile
    return _ROW_TILE_QUANTUM


def _pause_mlp_kernel(x_ref, w1_ref, b1_ref, w2_ref, b2_ref,
                      w3_ref, b3_ref, w4_ref, b4_ref, o_ref,
                      *, compute_dtype, ew_dtype):
    """One row-tile of the PauseDetector MLP.

    x_ref : [tm, D]        input rows, original dtype (cast in-kernel)
    w1..w3: [in, out]      matmul weights, compute_dtype (grid-invariant)
    b1,b2 : [1, out]       biases, ew_dtype
    b3    : [1, H3]  f32
    w4    : [1, 1, H3] f32 last-layer weight row (PyTorch [out, in] layout)
    b4    : [1, 1]   f32
    o_ref : [tm//128, 128] f32 sigmoid pause probs, lane-dense layout
    """
    tm = x_ref.shape[0]
    # In-kernel down-cast: no separate HBM pass over the dominant tensor.
    x = x_ref[...].astype(compute_dtype)

    # Linear(D, 256) + ReLU      (Dropout(0.1) == identity at inference)
    h = jnp.dot(x, w1_ref[...], preferred_element_type=ew_dtype)
    h = jnp.maximum(h + b1_ref[...], 0).astype(compute_dtype)

    # Linear(256, 128) + ReLU    (Dropout(0.1) == identity at inference)
    h = jnp.dot(h, w2_ref[...], preferred_element_type=ew_dtype)
    h = jnp.maximum(h + b2_ref[...], 0).astype(compute_dtype)

    # Linear(128, 64) + ReLU     (drain in f32; epilogue stays f32 on all gens)
    h = jnp.dot(h, w3_ref[...], preferred_element_type=jnp.float32)
    h = jnp.maximum(h + b3_ref[...], 0.0)

    # Linear(64, 1) + Sigmoid as a VPU multiply + lane reduce so the stored
    # block is a dense (tm//128, 128) slab (no masked vst.msk column store).
    # The reshape only splits the leading sublane-major dim -> no relayout.
    h3 = h.reshape(tm // _LANES, _LANES, H3)
    logits = jnp.sum(h3 * w4_ref[...], axis=-1) + b4_ref[...]
    o_ref[...] = jax.nn.sigmoid(logits)


@functools.partial(jax.jit,
                   static_argnames=("row_tile", "compute_dtype",
                                    "elementwise_dtype"))
def pause_detector_forward(features, params, *, row_tile=None,
                           compute_dtype=jnp.bfloat16,
                           elementwise_dtype=None):
    """features: [B, T, D] -> pause_probs: [B, T, 1] float32."""
    B, T, D = features.shape
    N = B * T

    if elementwise_dtype is None:
        elementwise_dtype = _default_elementwise_dtype()
    x_itemsize = jnp.dtype(features.dtype).itemsize
    ew_itemsize = jnp.dtype(elementwise_dtype).itemsize

    if row_tile is None:
        row_tile = _choose_row_tile(N, D, x_itemsize, ew_itemsize)
    elif row_tile % _ROW_TILE_QUANTUM != 0:
        raise ValueError("row_tile must be a positive multiple of 1024")

    w1, b1, w2, b2, w3, b3, w4, b4 = params
    # Features stay in their original dtype (cast happens inside the kernel).
    x = features.reshape(N, D)
    # Weights: one-time cast, resident in VMEM across the whole grid.
    w1 = w1.astype(compute_dtype)
    w2 = w2.astype(compute_dtype)
    w3 = w3.astype(compute_dtype)
    b1 = b1.astype(elementwise_dtype)
    b2 = b2.astype(elementwise_dtype)
    b3 = b3.astype(jnp.float32)
    w4 = w4.astype(jnp.float32)
    b4 = b4.astype(jnp.float32)

    grid = (pl.cdiv(N, row_tile),)    # partial last block handled by Pallas
    out_rows = pl.cdiv(N, _LANES)     # lane-dense output slab

    def _const(shape):
        # Grid-invariant operand: constant index_map -> stays resident.
        nd = len(shape)
        return pl.BlockSpec(shape, lambda i: (0,) * nd)

    w_itemsize = jnp.dtype(compute_dtype).itemsize
    flops = 2 * N * (D * H1 + H1 * H2 + H2 * H3 + H3 * HOUT)
    bytes_accessed = (N * D * x_itemsize                               # x (once)
                      + (D * H1 + H1 * H2 + H2 * H3) * w_itemsize      # weights
                      + (H1 + H2) * ew_itemsize + (H3 + H3 + 2) * 4    # b/w4
                      + out_rows * _LANES * 4)                         # output
    cost = pl.CostEstimate(flops=flops, transcendentals=N,
                           bytes_accessed=bytes_accessed)

    kernel = functools.partial(_pause_mlp_kernel,
                               compute_dtype=compute_dtype,
                               ew_dtype=elementwise_dtype)

    out = pl.pallas_call(
        kernel,
        out_shape=jax.ShapeDtypeStruct((out_rows, _LANES), jnp.float32),
        grid_spec=pltpu.PrefetchScalarGridSpec(
            num_scalar_prefetch=0,
            grid=grid,
            in_specs=[
                pl.BlockSpec((row_tile, D), lambda i: (i, 0)),   # x row tile
                _const((D, H1)), _const((1, H1)),
                _const((H1, H2)), _const((1, H2)),
                _const((H2, H3)), _const((1, H3)),
                _const((1, 1, H3)), _const((1, 1)),
            ],
            out_specs=pl.BlockSpec((row_tile // _LANES, _LANES),
                                   lambda i: (i, 0)),
        ),
        compiler_params=pltpu.CompilerParams(
            dimension_semantics=("parallel",),          # megacore on v7x
            vmem_limit_bytes=_VMEM_LIMIT_BYTES),
        cost_estimate=cost,
    )(x, w1, b1, w2, b2, w3, b3, w4, b4)

    # out[r, c] holds the probability for flattened row r*128 + c; the tail
    # (garbage rows of the partial last block) is dropped here.
    return out.reshape(-1)[:N].reshape(B, T, 1)


def init_pause_detector_params(key, input_dim):
    """Deterministic init mimicking nn.Linear (uniform +/- 1/sqrt(fan_in))."""
    def linear(k, fan_in, fan_out, w_shape):
        kw, kb = jax.random.split(k)
        bound = 1.0 / jnp.sqrt(float(fan_in))
        w = jax.random.uniform(kw, w_shape, jnp.float32, -bound, bound)
        b = jax.random.uniform(kb, (1, fan_out), jnp.float32, -bound, bound)
        return w, b

    k1, k2, k3, k4 = jax.random.split(key, 4)
    w1, b1 = linear(k1, input_dim, H1, (input_dim, H1))
    w2, b2 = linear(k2, H1, H2, (H1, H2))
    w3, b3 = linear(k3, H2, H3, (H2, H3))
    # Last layer stored as a [1, 1, H3] row (PyTorch [out, in] layout) for the
    # lane-dense epilogue; its bias is [1, 1].
    w4, b4 = linear(k4, H3, HOUT, (1, 1, H3))
    return (w1, b1, w2, b2, w3, b3, w4, b4)


def _reference_forward(features, params):
    """Plain-JAX f32 reference of the PyTorch forward (dropout = identity)."""
    w1, b1, w2, b2, w3, b3, w4, b4 = params
    B, T, D = features.shape
    h = features.reshape(-1, D).astype(jnp.float32)
    h = jnp.maximum(h @ w1 + b1, 0.0)
    h = jnp.maximum(h @ w2 + b2, 0.0)
    h = jnp.maximum(h @ w3 + b3, 0.0)
    logits = h @ w4.reshape(HOUT, H3).T + b4.reshape(1, HOUT)
    return jax.nn.sigmoid(logits).reshape(B, T, 1)


if __name__ == "__main__":
    # TODO(synk): Dropout(0.1) is modeled as identity (inference mode); no RNG
    # masking is applied inside the kernel.
    key = jax.random.PRNGKey(0)

    # (B, T, D): small base case, an odd-N tail case (N not a multiple of 128
    # nor of row_tile), and a multi-grid-step case with a partial last block.
    cases = [(2, 8, 32), (3, 37, 48), (4, 600, 64)]
    for idx, (B, T, D) in enumerate(cases):
        k_feat, k_param = jax.random.split(jax.random.fold_in(key, idx))
        features = jax.random.normal(k_feat, (B, T, D), dtype=jnp.float32)
        params = init_pause_detector_params(k_param, D)

        pause_probs = pause_detector_forward(features, params)
        pause_probs = jax.block_until_ready(pause_probs)
        assert pause_probs.shape == (B, T, 1), pause_probs.shape

        ref = _reference_forward(features, params)
        # bf16 matmul operands (and bf16 bias/ReLU on v6e/v7x) with f32
        # accumulation => small drift vs the pure-f32 reference.
        err = float(jnp.max(jnp.abs(pause_probs.astype(jnp.float32) - ref)))
        assert jnp.allclose(pause_probs.astype(jnp.float32), ref,
                            atol=3e-2), (idx, err)

    print("KERNEL_OK")
</pallas_src>

<mosaic_0001>
module attributes {stable_mosaic.version = 11 : i64} {
  func.func @_pause_mlp_kernel(%arg0: i32, %arg1: memref<1024x32xf32, #tpu.memory_space<vmem>>, %arg2: memref<32x256xbf16, #tpu.memory_space<vmem>>, %arg3: memref<1x256xf32, #tpu.memory_space<vmem>>, %arg4: memref<256x128xbf16, #tpu.memory_space<vmem>>, %arg5: memref<1x128xf32, #tpu.memory_space<vmem>>, %arg6: memref<128x64xbf16, #tpu.memory_space<vmem>>, %arg7: memref<1x64xf32, #tpu.memory_space<vmem>>, %arg8: memref<1x1x64xf32, #tpu.memory_space<vmem>>, %arg9: memref<1x1xf32, #tpu.memory_space<vmem>>, %arg10: memref<8x128xf32, #tpu.memory_space<vmem>>) attributes {dimension_semantics = [#tpu.dimension_semantics<parallel>], iteration_bounds = array<i64: 1>, scalar_prefetch = 0 : i64, scratch_operands = 0 : i64, tpu.core_type = #tpu.core_type<tc>, window_params = [{transform_indices = @transform_0, window_bounds = array<i64: 1024, 32>}, {pipeline_mode = #tpu.pipeline_mode<synchronous>, transform_indices = @transform_1, window_bounds = array<i64: 32, 256>}, {pipeline_mode = #tpu.pipeline_mode<synchronous>, transform_indices = @transform_2, window_bounds = array<i64: 1, 256>}, {pipeline_mode = #tpu.pipeline_mode<synchronous>, transform_indices = @transform_3, window_bounds = array<i64: 256, 128>}, {pipeline_mode = #tpu.pipeline_mode<synchronous>, transform_indices = @transform_4, window_bounds = array<i64: 1, 128>}, {pipeline_mode = #tpu.pipeline_mode<synchronous>, transform_indices = @transform_5, window_bounds = array<i64: 128, 64>}, {pipeline_mode = #tpu.pipeline_mode<synchronous>, transform_indices = @transform_6, window_bounds = array<i64: 1, 64>}, {pipeline_mode = #tpu.pipeline_mode<synchronous>, transform_indices = @transform_7, window_bounds = array<i64: 1, 1, 64>}, {pipeline_mode = #tpu.pipeline_mode<synchronous>, transform_indices = @transform_8, window_bounds = array<i64: 1, 1>}, {transform_indices = @transform_9, window_bounds = array<i64: 8, 128>}]} {
    %c0 = arith.constant 0 : index
    %c0_0 = arith.constant 0 : index
    %0 = vector.load %arg1[%c0, %c0_0] : memref<1024x32xf32, #tpu.memory_space<vmem>>, vector<1024x32xf32>
    %1 = arith.truncf %0 : vector<1024x32xf32> to vector<1024x32xbf16>
    %c0_1 = arith.constant 0 : index
    %c0_2 = arith.constant 0 : index
    %2 = vector.load %arg2[%c0_1, %c0_2] : memref<32x256xbf16, #tpu.memory_space<vmem>>, vector<32x256xbf16>
    %cst = arith.constant dense<0.000000e+00> : vector<1024x256xf32>
    %3 = tpu.matmul %1, %2, %cst {dimension_numbers = #tpu.dot_dimension_numbers<[1], [0], [0], [1], [0, 0, 1, 1], [], []>} : vector<1024x32xbf16>, vector<32x256xbf16>, vector<1024x256xf32> -> vector<1024x256xf32>
    %c0_3 = arith.constant 0 : index
    %c0_4 = arith.constant 0 : index
    %4 = vector.load %arg3[%c0_3, %c0_4] : memref<1x256xf32, #tpu.memory_space<vmem>>, vector<1x256xf32>
    %5 = vector.broadcast %4 : vector<1x256xf32> to vector<1024x256xf32>
    %6 = arith.addf %3, %5 : vector<1024x256xf32>
    %cst_5 = arith.constant 0.000000e+00 : f32
    %7 = vector.broadcast %cst_5 : f32 to vector<1024x256xf32>
    %8 = arith.maximumf %6, %7 : vector<1024x256xf32>
    %9 = arith.truncf %8 : vector<1024x256xf32> to vector<1024x256xbf16>
    %c0_6 = arith.constant 0 : index
    %c0_7 = arith.constant 0 : index
    %10 = vector.load %arg4[%c0_6, %c0_7] : memref<256x128xbf16, #tpu.memory_space<vmem>>, vector<256x128xbf16>
    %cst_8 = arith.constant dense<0.000000e+00> : vector<1024x128xf32>
    %11 = tpu.matmul %9, %10, %cst_8 {dimension_numbers = #tpu.dot_dimension_numbers<[1], [0], [0], [1], [0, 0, 1, 1], [], []>} : vector<1024x256xbf16>, vector<256x128xbf16>, vector<1024x128xf32> -> vector<1024x128xf32>
    %c0_9 = arith.constant 0 : index
    %c0_10 = arith.constant 0 : index
    %12 = vector.load %arg5[%c0_9, %c0_10] : memref<1x128xf32, #tpu.memory_space<vmem>>, vector<1x128xf32>
    %13 = vector.broadcast %12 : vector<1x128xf32> to vector<1024x128xf32>
    %14 = arith.addf %11, %13 : vector<1024x128xf32>
    %cst_11 = arith.constant 0.000000e+00 : f32
    %15 = vector.broadcast %cst_11 : f32 to vector<1024x128xf32>
    %16 = arith.maximumf %14, %15 : vector<1024x128xf32>
    %17 = arith.truncf %16 : vector<1024x128xf32> to vector<1024x128xbf16>
    %c0_12 = arith.constant 0 : index
    %c0_13 = arith.constant 0 : index
    %18 = vector.load %arg6[%c0_12, %c0_13] : memref<128x64xbf16, #tpu.memory_space<vmem>>, vector<128x64xbf16>
    %cst_14 = arith.constant dense<0.000000e+00> : vector<1024x64xf32>
    %19 = tpu.matmul %17, %18, %cst_14 {dimension_numbers = #tpu.dot_dimension_numbers<[1], [0], [0], [1], [0, 0, 1, 1], [], []>} : vector<1024x128xbf16>, vector<128x64xbf16>, vector<1024x64xf32> -> vector<1024x64xf32>
    %c0_15 = arith.constant 0 : index
    %c0_16 = arith.constant 0 : index
    %20 = vector.load %arg7[%c0_15, %c0_16] : memref<1x64xf32, #tpu.memory_space<vmem>>, vector<1x64xf32>
    %21 = vector.broadcast %20 : vector<1x64xf32> to vector<1024x64xf32>
    %22 = arith.addf %19, %21 : vector<1024x64xf32>
    %cst_17 = arith.constant 0.000000e+00 : f32
    %23 = vector.broadcast %cst_17 : f32 to vector<1024x64xf32>
    %24 = arith.maximumf %22, %23 : vector<1024x64xf32>
    %25 = vector.shape_cast %24 : vector<1024x64xf32> to vector<8x128x64xf32>
    %c0_18 = arith.constant 0 : index
    %c0_19 = arith.constant 0 : index
    %c0_20 = arith.constant 0 : index
    %26 = vector.load %arg8[%c0_18, %c0_19, %c0_20] : memref<1x1x64xf32, #tpu.memory_space<vmem>>, vector<1x1x64xf32>
    %27 = vector.broadcast %26 : vector<1x1x64xf32> to vector<8x128x64xf32>
    %28 = arith.mulf %25, %27 : vector<8x128x64xf32>
    %cst_21 = arith.constant dense<0.000000e+00> : vector<8x128xf32>
    %29 = vector.multi_reduction <add>, %28, %cst_21 [2] : vector<8x128x64xf32> to vector<8x128xf32>
    %c0_22 = arith.constant 0 : index
    %c0_23 = arith.constant 0 : index
    %30 = vector.load %arg9[%c0_22, %c0_23] : memref<1x1xf32, #tpu.memory_space<vmem>>, vector<1x1xf32>
    %31 = vector.broadcast %30 : vector<1x1xf32> to vector<8x128xf32>
    %32 = arith.addf %29, %31 : vector<8x128xf32>
    %33 = arith.negf %32 : vector<8x128xf32>
    %34 = math.exp %33 : vector<8x128xf32>
    %cst_24 = arith.constant 1.000000e+00 : f32
    %35 = vector.broadcast %cst_24 : f32 to vector<8x128xf32>
    %36 = arith.addf %35, %34 : vector<8x128xf32>
    %37 = arith.divf %35, %36 : vector<8x128xf32>
    %c0_25 = arith.constant 0 : index
    %c0_26 = arith.constant 0 : index
    %38 = vector.load %arg10[%c0_25, %c0_26] : memref<8x128xf32, #tpu.memory_space<vmem>>, vector<8x128xf32>
    tpu.vector_store %arg10[%c0_25, %c0_26], %37 {strides = array<i32>} : memref<8x128xf32, #tpu.memory_space<vmem>>, vector<8x128xf32>,
    return
  }
  func.func @transform_0(%arg0: i32) -> (i32, i32) {
    %c0_i32 = arith.constant 0 : i32
    %c0_i32_0 = arith.constant 0 : i32
    return %arg0, %c0_i32 : i32, i32
  }
  func.func @transform_1(%arg0: i32) -> (i32, i32) {
    %c0_i32 = arith.constant 0 : i32
    %c0_i32_0 = arith.constant 0 : i32
    %c0_i32_1 = arith.constant 0 : i32
    return %c0_i32, %c0_i32_0 : i32, i32
  }
  func.func @transform_2(%arg0: i32) -> (i32, i32) {
    %c0_i32 = arith.constant 0 : i32
    %c0_i32_0 = arith.constant 0 : i32
    %c0_i32_1 = arith.constant 0 : i32
    return %c0_i32, %c0_i32_0 : i32, i32
  }
  func.func @transform_3(%arg0: i32) -> (i32, i32) {
    %c0_i32 = arith.constant 0 : i32
    %c0_i32_0 = arith.constant 0 : i32
    %c0_i32_1 = arith.constant 0 : i32
    return %c0_i32, %c0_i32_0 : i32, i32
  }
  func.func @transform_4(%arg0: i32) -> (i32, i32) {
    %c0_i32 = arith.constant 0 : i32
    %c0_i32_0 = arith.constant 0 : i32
    %c0_i32_1 = arith.constant 0 : i32
    return %c0_i32, %c0_i32_0 : i32, i32
  }
  func.func @transform_5(%arg0: i32) -> (i32, i32) {
    %c0_i32 = arith.constant 0 : i32
    %c0_i32_0 = arith.constant 0 : i32
    %c0_i32_1 = arith.constant 0 : i32
    return %c0_i32, %c0_i32_0 : i32, i32
  }
  func.func @transform_6(%arg0: i32) -> (i32, i32) {
    %c0_i32 = arith.constant 0 : i32
    %c0_i32_0 = arith.constant 0 : i32
    %c0_i32_1 = arith.constant 0 : i32
    return %c0_i32, %c0_i32_0 : i32, i32
  }
  func.func @transform_7(%arg0: i32) -> (i32, i32, i32) {
    %c0_i32 = arith.constant 0 : i32
    %c0_i32_0 = arith.constant 0 : i32
    %c0_i32_1 = arith.constant 0 : i32
    %c0_i32_2 = arith.constant 0 : i32
    return %c0_i32, %c0_i32_0, %c0_i32_1 : i32, i32, i32
  }
  func.func @transform_8(%arg0: i32) -> (i32, i32) {
    %c0_i32 = arith.constant 0 : i32
    %c0_i32_0 = arith.constant 0 : i32
    %c0_i32_1 = arith.constant 0 : i32
    return %c0_i32, %c0_i32_0 : i32, i32
  }
  func.func @transform_9(%arg0: i32) -> (i32, i32) {
    %c0_i32 = arith.constant 0 : i32
    %c0_i32_0 = arith.constant 0 : i32
    return %arg0, %c0_i32 : i32, i32
  }
}

</mosaic_0001>

<llo_original>
// kernel: pause_detector_forward.1
$region0: #{pause_detector_forward.1}
  #allocation0 [shape = 'u32[]', space=smem, size = 0x4, offset = 0x4, fixed_abs, tag = 'smem constant byte address 0x4 - core index']
  #allocation1 [shape = 'u32[144,128]{1,0:T(1,128)}', space=vmem, size = 0x12000, scoped, tag = 'internal scratch']
  #allocation2 [shape = 'f32[1,1]{1,0:T(1,128)S(1)}', space=vmem, size = 0x200, scoped, tag = 'scoped memory for pause_detector_forward.1']
  %s0 = inlined_call_operand.vmem [shape: f32[16,32], index: 0, kind: input, shape index: {}]
  %s1 = inlined_call_operand.vmem [shape: bf16[32,256], index: 1, kind: input, shape index: {}]
  %s2 = inlined_call_operand.vmem [shape: f32[1,256], index: 2, kind: input, shape index: {}]
  %s3 = inlined_call_operand.vmem [shape: bf16[256,128], index: 3, kind: input, shape index: {}]
  %s4 = inlined_call_operand.vmem [shape: f32[1,128], index: 4, kind: input, shape index: {}]
  %s5 = inlined_call_operand.vmem [shape: bf16[128,64], index: 5, kind: input, shape index: {}]
  %s6 = inlined_call_operand.vmem [shape: f32[1,64], index: 6, kind: input, shape index: {}]
  %s7 = inlined_call_operand.vmem [shape: f32[1,1,64], index: 7, kind: input, shape index: {}]
  %s8 = inlined_call_operand.<no memory space> [shape: f32[1,1], index: 8, kind: input, shape index: {}]
  %s9 = inlined_call_operand.vmem [shape: f32[1,128], index: 9, kind: output, shape index: {}]
  %s10 = sld [smem:[#allocation0]]
  $region76: #{pause_detector_forward.1} parent=0
    _
  %s12 = ssub.s32 1, %s10
  %s13 = scalar_select 0, %s12, %s10
  %v14 = vstv %s8
  %15 = vst [vmem:[#allocation2] sm:$0x1] %v14
  $region1: #{pause_detector_forward.1} parent=0
    #allocation3 [shape = 'u8[4096]{0}', space=vmem, size = 0x1000, scoped, tag = 'output window, operand 0, single buffered']
    // Predicated region
    $region2: #{pause_detector_forward.1} parent=1 // pred_check
      _
    $region3: #{pause_detector_forward.1} parent=1 // pred_check_branch
      %17 = sbr.rel (0) target = $region5
    $region4: #{pause_detector_forward.1} parent=1 // pred_region
      _
    $region5: #{pause_detector_forward.1} parent=1 // pred_fallthru
      _
    // Predicated region
    $region6: #{pause_detector_forward.1} parent=1 // pred_check
      _
    $region7: #{pause_detector_forward.1} parent=1 // pred_check_branch
      %19 = sbr.rel (0) target = $region9
    $region8: #{pause_detector_forward.1} parent=1 // pred_region
      _
    $region9: #{pause_detector_forward.1} parent=1 // pred_fallthru
      _
    // Predicated region
    $region10: #{pause_detector_forward.1} parent=1 // pred_check
      _
    $region11: #{pause_detector_forward.1} parent=1 // pred_check_branch
      %21 = sbr.rel (0) target = $region13
    $region12: #{pause_detector_forward.1} parent=1 // pred_region
      _
    $region13: #{pause_detector_forward.1} parent=1 // pred_fallthru
      _
    // Predicated region
    $region14: #{pause_detector_forward.1} parent=1 // pred_check
      _
    $region15: #{pause_detector_forward.1} parent=1 // pred_check_branch
      %23 = sbr.rel (0) target = $region17
    $region16: #{pause_detector_forward.1} parent=1 // pred_region
      _
    $region17: #{pause_detector_forward.1} parent=1 // pred_fallthru
      _
    // Predicated region
    $region18: #{pause_detector_forward.1} parent=1 // pred_check
      _
    $region19: #{pause_detector_forward.1} parent=1 // pred_check_branch
      %25 = sbr.rel (0) target = $region21
    $region20: #{pause_detector_forward.1} parent=1 // pred_region
      _
    $region21: #{pause_detector_forward.1} parent=1 // pred_fallthru
      _
    // Predicated region
    $region22: #{pause_detector_forward.1} parent=1 // pred_check
      _
    $region23: #{pause_detector_forward.1} parent=1 // pred_check_branch
      %27 = sbr.rel (0) target = $region25
    $region24: #{pause_detector_forward.1} parent=1 // pred_region
      _
    $region25: #{pause_detector_forward.1} parent=1 // pred_fallthru
      _
    // Predicated region
    $region26: #{pause_detector_forward.1} parent=1 // pred_check
      _
    $region27: #{pause_detector_forward.1} parent=1 // pred_check_branch
      %29 = sbr.rel (0) target = $region29
    $region28: #{pause_detector_forward.1} parent=1 // pred_region
      _
    $region29: #{pause_detector_forward.1} parent=1 // pred_fallthru
      _
    // Predicated region
    $region30: #{pause_detector_forward.1} parent=1 // pred_check
      _
    $region31: #{pause_detector_forward.1} parent=1 // pred_check_branch
      %31 = sbr.rel (0) target = $region33
    $region32: #{pause_detector_forward.1} parent=1 // pred_region
      _
    $region33: #{pause_detector_forward.1} parent=1 // pred_fallthru
      _
    // Predicated region
    $region34: #{pause_detector_forward.1} parent=1 // pred_check
      _
    $region35: #{pause_detector_forward.1} parent=1 // pred_check_branch
      %33 = sbr.rel (0) target = $region37
    $region36: #{pause_detector_forward.1} parent=1 // pred_region
      _
    $region37: #{pause_detector_forward.1} parent=1 // pred_fallthru
      _
    %v35 = vld [vmem:[%s0] sm:$0xff]
    %v36 = vld [vmem:[%s0 + $0x8] sm:$0xff]
    %v37 = vld [vmem:[%s0 + $0x10] sm:$0xff]
    %v38 = vld [vmem:[%s0 + $0x18] sm:$0xff]
    %v39 = vld [vmem:[%s0 + $0x20] sm:$0xff]
    %v40 = vld [vmem:[%s0 + $0x28] sm:$0xff]
    %v41 = vld [vmem:[%s0 + $0x30] sm:$0xff]
    %v42 = vld [vmem:[%s0 + $0x38] sm:$0xff]
    %v43 = vld [vmem:[%s0 + $0x40] sm:$0xff]
    %v44 = vld [vmem:[%s0 + $0x48] sm:$0xff]
    %v45 = vld [vmem:[%s0 + $0x50] sm:$0xff]
    %v46 = vld [vmem:[%s0 + $0x58] sm:$0xff]
    %v47 = vld [vmem:[%s0 + $0x60] sm:$0xff]
    %v48 = vld [vmem:[%s0 + $0x68] sm:$0xff]
    %v49 = vld [vmem:[%s0 + $0x70] sm:$0xff]
    %v50 = vld [vmem:[%s0 + $0x78] sm:$0xff]
    %v51 = vld [vmem:[%s0 + $0x80] sm:$0xff]
    %v52 = vld [vmem:[%s0 + $0x88] sm:$0xff]
    %v53 = vld [vmem:[%s0 + $0x90] sm:$0xff]
    %v54 = vld [vmem:[%s0 + $0x98] sm:$0xff]
    %v55 = vld [vmem:[%s0 + $0xa0] sm:$0xff]
    %v56 = vld [vmem:[%s0 + $0xa8] sm:$0xff]
    %v57 = vld [vmem:[%s0 + $0xb0] sm:$0xff]
    %v58 = vld [vmem:[%s0 + $0xb8] sm:$0xff]
    %v59 = vld [vmem:[%s0 + $0xc0] sm:$0xff]
    %v60 = vld [vmem:[%s0 + $0xc8] sm:$0xff]
    %v61 = vld [vmem:[%s0 + $0xd0] sm:$0xff]
    %v62 = vld [vmem:[%s0 + $0xd8] sm:$0xff]
    %v63 = vld [vmem:[%s0 + $0xe0] sm:$0xff]
    %v64 = vld [vmem:[%s0 + $0xe8] sm:$0xff]
    %v65 = vld [vmem:[%s0 + $0xf0] sm:$0xff]
    %v66 = vld [vmem:[%s0 + $0xf8] sm:$0xff]
    %v67 = vld [vmem:[%s0 + $0x100] sm:$0xff]
    %v68 = vld [vmem:[%s0 + $0x108] sm:$0xff]
    %v69 = vld [vmem:[%s0 + $0x110] sm:$0xff]
    %v70 = vld [vmem:[%s0 + $0x118] sm:$0xff]
    %v71 = vld [vmem:[%s0 + $0x120] sm:$0xff]
    %v72 = vld [vmem:[%s0 + $0x128] sm:$0xff]
    %v73 = vld [vmem:[%s0 + $0x130] sm:$0xff]
    %v74 = vld [vmem:[%s0 + $0x138] sm:$0xff]
    %v75 = vld [vmem:[%s0 + $0x140] sm:$0xff]
    %v76 = vld [vmem:[%s0 + $0x148] sm:$0xff]
    %v77 = vld [vmem:[%s0 + $0x150] sm:$0xff]
    %v78 = vld [vmem:[%s0 + $0x158] sm:$0xff]
    %v79 = vld [vmem:[%s0 + $0x160] sm:$0xff]
    %v80 = vld [vmem:[%s0 + $0x168] sm:$0xff]
    %v81 = vld [vmem:[%s0 + $0x170] sm:$0xff]
    %v82 = vld [vmem:[%s0 + $0x178] sm:$0xff]
    %v83 = vld [vmem:[%s0 + $0x180] sm:$0xff]
    %v84 = vld [vmem:[%s0 + $0x188] sm:$0xff]
    %v85 = vld [vmem:[%s0 + $0x190] sm:$0xff]
    %v86 = vld [vmem:[%s0 + $0x198] sm:$0xff]
    %v87 = vld [vmem:[%s0 + $0x1a0] sm:$0xff]
    %v88 = vld [vmem:[%s0 + $0x1a8] sm:$0xff]
    %v89 = vld [vmem:[%s0 + $0x1b0] sm:$0xff]
    %v90 = vld [vmem:[%s0 + $0x1b8] sm:$0xff]
    %v91 = vld [vmem:[%s0 + $0x1c0] sm:$0xff]
    %v92 = vld [vmem:[%s0 + $0x1c8] sm:$0xff]
    %v93 = vld [vmem:[%s0 + $0x1d0] sm:$0xff]
    %v94 = vld [vmem:[%s0 + $0x1d8] sm:$0xff]
    %v95 = vld [vmem:[%s0 + $0x1e0] sm:$0xff]
    %v96 = vld [vmem:[%s0 + $0x1e8] sm:$0xff]
    %v97 = vld [vmem:[%s0 + $0x1f0] sm:$0xff]
    %v98 = vld [vmem:[%s0 + $0x1f8] sm:$0xff]
    %v99 = vld [vmem:[%s0 + $0x200] sm:$0xff]
    %v100 = vld [vmem:[%s0 + $0x208] sm:$0xff]
    %v101 = vld [vmem:[%s0 + $0x210] sm:$0xff]
    %v102 = vld [vmem:[%s0 + $0x218] sm:$0xff]
    %v103 = vld [vmem:[%s0 + $0x220] sm:$0xff]
    %v104 = vld [vmem:[%s0 + $0x228] sm:$0xff]
    %v105 = vld [vmem:[%s0 + $0x230] sm:$0xff]
    %v106 = vld [vmem:[%s0 + $0x238] sm:$0xff]
    %v107 = vld [vmem:[%s0 + $0x240] sm:$0xff]
    %v108 = vld [vmem:[%s0 + $0x248] sm:$0xff]
    %v109 = vld [vmem:[%s0 + $0x250] sm:$0xff]
    %v110 = vld [vmem:[%s0 + $0x258] sm:$0xff]
    %v111 = vld [vmem:[%s0 + $0x260] sm:$0xff]
    %v112 = vld [vmem:[%s0 + $0x268] sm:$0xff]
    %v113 = vld [vmem:[%s0 + $0x270] sm:$0xff]
    %v114 = vld [vmem:[%s0 + $0x278] sm:$0xff]
    %v115 = vld [vmem:[%s0 + $0x280] sm:$0xff]
    %v116 = vld [vmem:[%s0 + $0x288] sm:$0xff]
    %v117 = vld [vmem:[%s0 + $0x290] sm:$0xff]
    %v118 = vld [vmem:[%s0 + $0x298] sm:$0xff]
    %v119 = vld [vmem:[%s0 + $0x2a0] sm:$0xff]
    %v120 = vld [vmem:[%s0 + $0x2a8] sm:$0xff]
    %v121 = vld [vmem:[%s0 + $0x2b0] sm:$0xff]
    %v122 = vld [vmem:[%s0 + $0x2b8] sm:$0xff]
    %v123 = vld [vmem:[%s0 + $0x2c0] sm:$0xff]
    %v124 = vld [vmem:[%s0 + $0x2c8] sm:$0xff]
    %v125 = vld [vmem:[%s0 + $0x2d0] sm:$0xff]
    %v126 = vld [vmem:[%s0 + $0x2d8] sm:$0xff]
    %v127 = vld [vmem:[%s0 + $0x2e0] sm:$0xff]
    %v128 = vld [vmem:[%s0 + $0x2e8] sm:$0xff]
    %v129 = vld [vmem:[%s0 + $0x2f0] sm:$0xff]
    %v130 = vld [vmem:[%s0 + $0x2f8] sm:$0xff]
    %v131 = vld [vmem:[%s0 + $0x300] sm:$0xff]
    %v132 = vld [vmem:[%s0 + $0x308] sm:$0xff]
    %v133 = vld [vmem:[%s0 + $0x310] sm:$0xff]
    %v134 = vld [vmem:[%s0 + $0x318] sm:$0xff]
    %v135 = vld [vmem:[%s0 + $0x320] sm:$0xff]
    %v136 = vld [vmem:[%s0 + $0x328] sm:$0xff]
    %v137 = vld [vmem:[%s0 + $0x330] sm:$0xff]
    %v138 = vld [vmem:[%s0 + $0x338] sm:$0xff]
    %v139 = vld [vmem:[%s0 + $0x340] sm:$0xff]
    %v140 = vld [vmem:[%s0 + $0x348] sm:$0xff]
    %v141 = vld [vmem:[%s0 + $0x350] sm:$0xff]
    %v142 = vld [vmem:[%s0 + $0x358] sm:$0xff]
    %v143 = vld [vmem:[%s0 + $0x360] sm:$0xff]
    %v144 = vld [vmem:[%s0 + $0x368] sm:$0xff]
    %v145 = vld [vmem:[%s0 + $0x370] sm:$0xff]
    %v146 = vld [vmem:[%s0 + $0x378] sm:$0xff]
    %v147 = vld [vmem:[%s0 + $0x380] sm:$0xff]
    %v148 = vld [vmem:[%s0 + $0x388] sm:$0xff]
    %v149 = vld [vmem:[%s0 + $0x390] sm:$0xff]
    %v150 = vld [vmem:[%s0 + $0x398] sm:$0xff]
    %v151 = vld [vmem:[%s0 + $0x3a0] sm:$0xff]
    %v152 = vld [vmem:[%s0 + $0x3a8] sm:$0xff]
    %v153 = vld [vmem:[%s0 + $0x3b0] sm:$0xff]
    %v154 = vld [vmem:[%s0 + $0x3b8] sm:$0xff]
    %v155 = vld [vmem:[%s0 + $0x3c0] sm:$0xff]
    %v156 = vld [vmem:[%s0 + $0x3c8] sm:$0xff]
    %v157 = vld [vmem:[%s0 + $0x3d0] sm:$0xff]
    %v158 = vld [vmem:[%s0 + $0x3d8] sm:$0xff]
    %v159 = vld [vmem:[%s0 + $0x3e0] sm:$0xff]
    %v160 = vld [vmem:[%s0 + $0x3e8] sm:$0xff]
    %v161 = vld [vmem:[%s0 + $0x3f0] sm:$0xff]
    %v162 = vld [vmem:[%s0 + $0x3f8] sm:$0xff]
    %v163 = vpack.c.bf16 %v36, %v35
    %v164 = vpack.c.bf16 %v38, %v37
    %v165 = vpack.c.bf16 %v40, %v39
    %v166 = vpack.c.bf16 %v42, %v41
    %v167 = vpack.c.bf16 %v44, %v43
    %v168 = vpack.c.bf16 %v46, %v45
    %v169 = vpack.c.bf16 %v48, %v47
    %v170 = vpack.c.bf16 %v50, %v49
    %v171 = vpack.c.bf16 %v52, %v51
    %v172 = vpack.c.bf16 %v54, %v53
    %v173 = vpack.c.bf16 %v56, %v55
    %v174 = vpack.c.bf16 %v58, %v57
    %v175 = vpack.c.bf16 %v60, %v59
    %v176 = vpack.c.bf16 %v62, %v61
    %v177 = vpack.c.bf16 %v64, %v63
    %v178 = vpack.c.bf16 %v66, %v65
    %v179 = vpack.c.bf16 %v68, %v67
    %v180 = vpack.c.bf16 %v70, %v69
    %v181 = vpack.c.bf16 %v72, %v71
    %v182 = vpack.c.bf16 %v74, %v73
    %v183 = vpack.c.bf16 %v76, %v75
    %v184 = vpack.c.bf16 %v78, %v77
    %v185 = vpack.c.bf16 %v80, %v79
    %v186 = vpack.c.bf16 %v82, %v81
    %v187 = vpack.c.bf16 %v84, %v83
    %v188 = vpack.c.bf16 %v86, %v85
    %v189 = vpack.c.bf16 %v88, %v87
    %v190 = vpack.c.bf16 %v90, %v89
    %v191 = vpack.c.bf16 %v92, %v91
    %v192 = vpack.c.bf16 %v94, %v93
    %v193 = vpack.c.bf16 %v96, %v95
    %v194 = vpack.c.bf16 %v98, %v97
    %v195 = vpack.c.bf16 %v100, %v99
    %v196 = vpack.c.bf16 %v102, %v101
    %v197 = vpack.c.bf16 %v104, %v103
    %v198 = vpack.c.bf16 %v106, %v105
    %v199 = vpack.c.bf16 %v108, %v107
    %v200 = vpack.c.bf16 %v110, %v109
    %v201 = vpack.c.bf16 %v112, %v111
    %v202 = vpack.c.bf16 %v114, %v113
    %v203 = vpack.c.bf16 %v116, %v115
    %v204 = vpack.c.bf16 %v118, %v117
    %v205 = vpack.c.bf16 %v120, %v119
    %v206 = vpack.c.bf16 %v122, %v121
    %v207 = vpack.c.bf16 %v124, %v123
    %v208 = vpack.c.bf16 %v126, %v125
    %v209 = vpack.c.bf16 %v128, %v127
    %v210 = vpack.c.bf16 %v130, %v129
    %v211 = vpack.c.bf16 %v132, %v131
    %v212 = vpack.c.bf16 %v134, %v133
    %v213 = vpack.c.bf16 %v136, %v135
    %v214 = vpack.c.bf16 %v138, %v137
    %v215 = vpack.c.bf16 %v140, %v139
    %v216 = vpack.c.bf16 %v142, %v141
    %v217 = vpack.c.bf16 %v144, %v143
    %v218 = vpack.c.bf16 %v146, %v145
    %v219 = vpack.c.bf16 %v148, %v147
    %v220 = vpack.c.bf16 %v150, %v149
    %v221 = vpack.c.bf16 %v152, %v151
    %v222 = vpack.c.bf16 %v154, %v153
    %v223 = vpack.c.bf16 %v156, %v155
    %v224 = vpack.c.bf16 %v158, %v157
    %v225 = vpack.c.bf16 %v160, %v159
    %v226 = vpack.c.bf16 %v162, %v161
    %v227 = vld [vmem:[%s1] sm:$0xff]
    %v228 = vld [vmem:[%s1 + $0x8] sm:$0xff]
    %v229 = vld [vmem:[%s1 + $0x10] sm:$0xff]
    %v230 = vld [vmem:[%s1 + $0x18] sm:$0xff]
    %v231 = vld [vmem:[%s2] sm:$0x3]
    %v233 = vlaneseq
    %v234 = vshrl.u32 %v233, 7
    %v235 = vsub.s32 0, %v234
    %v236 = vrot.slane %v231, %v235
    %v237 = vlaneseq
    %v238 = vshrl.u32 %v237, 7
    %v239 = vsub.s32 1, %v238
    %v240 = vrot.slane %v231, %v239
    %v247 = vunpack.c.l.b16 %v227
    %v248 = vunpack.c.h.b16 %v227
    %v249 = vunpack.c.l.b16 %v228
    %v250 = vunpack.c.h.b16 %v228
    %v251 = vunpack.c.l.b16 %v229
    %v252 = vunpack.c.h.b16 %v229
    %v253 = vunpack.c.l.b16 %v230
    %v254 = vunpack.c.h.b16 %v230
    %v255 = vpack.c.b16 %v249, %v247
    %v256 = vpack.c.b16 %v250, %v248
    %v257 = vpack.c.b16 %v253, %v251
    %v258 = vpack.c.b16 %v254, %v252
    %vm263 = vcmask 261120
    %v265 = vsel %vm263, %v163, 0
    %v268 = vsel %vm263, %v164, 0
    %v271 = vsel %vm263, %v165, 0
    %v274 = vsel %vm263, %v166, 0
    %v277 = vsel %vm263, %v167, 0
    %v280 = vsel %vm263, %v168, 0
    %v283 = vsel %vm263, %v169, 0
    %v286 = vsel %vm263, %v170, 0
    %v289 = vsel %vm263, %v171, 0
    %v292 = vsel %vm263, %v172, 0
    %v295 = vsel %vm263, %v173, 0
    %v298 = vsel %vm263, %v174, 0
    %v301 = vsel %vm263, %v175, 0
    %v304 = vsel %vm263, %v176, 0
    %v307 = vsel %vm263, %v177, 0
    %v310 = vsel %vm263, %v178, 0
    %v313 = vsel %vm263, %v179, 0
    %v316 = vsel %vm263, %v180, 0
    %v319 = vsel %vm263, %v181, 0
    %v322 = vsel %vm263, %v182, 0
    %v325 = vsel %vm263, %v183, 0
    %v328 = vsel %vm263, %v184, 0
    %v331 = vsel %vm263, %v185, 0
    %v334 = vsel %vm263, %v186, 0
    %v337 = vsel %vm263, %v187, 0
    %v340 = vsel %vm263, %v188, 0
    %v343 = vsel %vm263, %v189, 0
    %v346 = vsel %vm263, %v190, 0
    %v349 = vsel %vm263, %v191, 0
    %v352 = vsel %vm263, %v192, 0
    %v355 = vsel %vm263, %v193, 0
    %v358 = vsel %vm263, %v194, 0
    %v361 = vsel %vm263, %v195, 0
    %v364 = vsel %vm263, %v196, 0
    %v367 = vsel %vm263, %v197, 0
    %v370 = vsel %vm263, %v198, 0
    %v373 = vsel %vm263, %v199, 0
    %v376 = vsel %vm263, %v200, 0
    %v379 = vsel %vm263, %v201, 0
    %v382 = vsel %vm263, %v202, 0
    %v385 = vsel %vm263, %v203, 0
    %v388 = vsel %vm263, %v204, 0
    %v391 = vsel %vm263, %v205, 0
    %v394 = vsel %vm263, %v206, 0
    %v397 = vsel %vm263, %v207, 0
    %v400 = vsel %vm263, %v208, 0
    %v403 = vsel %vm263, %v209, 0
    %v406 = vsel %vm263, %v210, 0
    %v409 = vsel %vm263, %v211, 0
    %v412 = vsel %vm263, %v212, 0
    %v415 = vsel %vm263, %v213, 0
    %v418 = vsel %vm263, %v214, 0
    %v421 = vsel %vm263, %v215, 0
    %v424 = vsel %vm263, %v216, 0
    %v427 = vsel %vm263, %v217, 0
    %v430 = vsel %vm263, %v218, 0
    %v433 = vsel %vm263, %v219, 0
    %v436 = vsel %vm263, %v220, 0
    %v439 = vsel %vm263, %v221, 0
    %v442 = vsel %vm263, %v222, 0
    %v445 = vsel %vm263, %v223, 0
    %v448 = vsel %vm263, %v224, 0
    %v451 = vsel %vm263, %v225, 0
    %v454 = vsel %vm263, %v226, 0
    %456 = vmatprep.subr.bf16.mxu0 %v256
    %457 = vmatpush1.bf16.msra.mxu0 %v255
    %458 = vmatprep.subr.bf16.mxu0 %v258
    %459 = vmatpush1.bf16.msra.mxu0 %v257
    %460 = vmatprep.subr.bf16.mxu0 0
    %461 = vmatpush1.bf16.msra.mxu0 0
    %462 = vmatprep.subr.bf16.mxu0 0
    %463 = vmatpush1.bf16.msra.mxu0 0
    %464 = vmatprep.subr.bf16.mxu0 0
    %465 = vmatpush1.bf16.msra.mxu0 0
    %466 = vmatprep.subr.bf16.mxu0 0
    %467 = vmatpush1.bf16.msra.mxu0 0
    %468 = vmatprep.subr.bf16.mxu0 0
    %469 = vmatpush1.bf16.msra.mxu0 0
    %470 = vmatprep.subr.bf16.mxu0 0
    %471 = vmatpush1.bf16.msra.mxu0 0
    %472 = vmatprep.subr.bf16.mxu0 0
    %473 = vmatpush1.bf16.msra.mxu0 0
    %474 = vmatprep.subr.bf16.mxu0 0
    %475 = vmatpush1.bf16.msra.mxu0 0
    %476 = vmatprep.subr.bf16.mxu0 0
    %477 = vmatpush1.bf16.msra.mxu0 0
    %478 = vmatprep.subr.bf16.mxu0 0
    %479 = vmatpush1.bf16.msra.mxu0 0
    %480 = vmatprep.subr.bf16.mxu0 0
    %481 = vmatpush1.bf16.msra.mxu0 0
    %482 = vmatprep.subr.bf16.mxu0 0
    %483 = vmatpush1.bf16.msra.mxu0 0
    %484 = vmatprep.subr.bf16.mxu0 0
    %485 = vmatpush1.bf16.msra.mxu0 0
    %486 = vmatprep.subr.bf16.mxu0 0
    %487 = vmatpush1.bf16.msra.mxu0 0
    %488 = vmatprep.mubr.bf16.mxu0 0
    %489 = vmatmul.mubr.bf16.gmra.mrb[0].mxu0 %v265
    %v490 = vpop.f32.mrb[0].mxu0
    %v491 = vadd.f32 %v236, %v490
    %v492 = vpop.f32.mrb[0].mxu0
    %v493 = vadd.f32 %v240, %v492
    %v494 = vpop.f32.mrb[0].mxu0
    %v495 = vadd.f32 %v236, %v494
    %v496 = vpop.f32.mrb[0].mxu0
    %v497 = vadd.f32 %v240, %v496
    %498 = vmatprep.mubr.bf16.mxu0 0
    %499 = vmatmul.mubr.bf16.gmra.mrb[0].mxu0 %v268
    %v500 = vpop.f32.mrb[0].mxu0
    %v501 = vadd.f32 %v236, %v500
    %v502 = vpop.f32.mrb[0].mxu0
    %v503 = vadd.f32 %v240, %v502
    %v504 = vpop.f32.mrb[0].mxu0
    %v505 = vadd.f32 %v236, %v504
    %v506 = vpop.f32.mrb[0].mxu0
    %v507 = vadd.f32 %v240, %v506
    %508 = vmatprep.mubr.bf16.mxu0 0
    %509 = vmatmul.mubr.bf16.gmra.mrb[0].mxu0 %v271
    %v510 = vpop.f32.mrb[0].mxu0
    %v511 = vadd.f32 %v236, %v510
    %v512 = vpop.f32.mrb[0].mxu0
    %v513 = vadd.f32 %v240, %v512
    %v514 = vpop.f32.mrb[0].mxu0
    %v515 = vadd.f32 %v236, %v514
    %v516 = vpop.f32.mrb[0].mxu0
    %v517 = vadd.f32 %v240, %v516
    %518 = vmatprep.mubr.bf16.mxu0 0
    %519 = vmatmul.mubr.bf16.gmra.mrb[0].mxu0 %v274
    %v520 = vpop.f32.mrb[0].mxu0
    %v521 = vadd.f32 %v236, %v520
    %v522 = vpop.f32.mrb[0].mxu0
    %v523 = vadd.f32 %v240, %v522
    %v524 = vpop.f32.mrb[0].mxu0
    %v525 = vadd.f32 %v236, %v524
    %v526 = vpop.f32.mrb[0].mxu0
    %v527 = vadd.f32 %v240, %v526
    %528 = vmatprep.mubr.bf16.mxu0 0
    %529 = vmatmul.mubr.bf16.gmra.mrb[0].mxu0 %v277
    %v530 = vpop.f32.mrb[0].mxu0
    %v531 = vadd.f32 %v236, %v530
    %v532 = vpop.f32.mrb[0].mxu0
    %v533 = vadd.f32 %v240, %v532
    %v534 = vpop.f32.mrb[0].mxu0
    %v535 = vadd.f32 %v236, %v534
    %v536 = vpop.f32.mrb[0].mxu0
    %v537 = vadd.f32 %v240, %v536
    %538 = vmatprep.mubr.bf16.mxu0 0
    %539 = vmatmul.mubr.bf16.gmra.mrb[0].mxu0 %v280
    %v540 = vpop.f32.mrb[0].mxu0
    %v541 = vadd.f32 %v236, %v540
    %v542 = vpop.f32.mrb[0].mxu0
    %v543 = vadd.f32 %v240, %v542
    %v544 = vpop.f32.mrb[0].mxu0
    %v545 = vadd.f32 %v236, %v544
    %v546 = vpop.f32.mrb[0].mxu0
    %v547 = vadd.f32 %v240, %v546
    %548 = vmatprep.mubr.bf16.mxu0 0
    %549 = vmatmul.mubr.bf16.gmra.mrb[0].mxu0 %v283
    %v550 = vpop.f32.mrb[0].mxu0
    %v551 = vadd.f32 %v236, %v550
    %v552 = vpop.f32.mrb[0].mxu0
    %v553 = vadd.f32 %v240, %v552
    %v554 = vpop.f32.mrb[0].mxu0
    %v555 = vadd.f32 %v236, %v554
    %v556 = vpop.f32.mrb[0].mxu0
    %v557 = vadd.f32 %v240, %v556
    %558 = vmatprep.mubr.bf16.mxu0 0
    %559 = vmatmul.mubr.bf16.gmra.mrb[0].mxu0 %v286
    %v560 = vpop.f32.mrb[0].mxu0
    %v561 = vadd.f32 %v236, %v560
    %v562 = vpop.f32.mrb[0].mxu0
    %v563 = vadd.f32 %v240, %v562
    %v564 = vpop.f32.mrb[0].mxu0
    %v565 = vadd.f32 %v236, %v564
    %v566 = vpop.f32.mrb[0].mxu0
    %v567 = vadd.f32 %v240, %v566
    %568 = vmatprep.mubr.bf16.mxu0 0
    %569 = vmatmul.mubr.bf16.gmra.mrb[0].mxu0 %v289
    %v570 = vpop.f32.mrb[0].mxu0
    %v571 = vadd.f32 %v236, %v570
    %v572 = vpop.f32.mrb[0].mxu0
    %v573 = vadd.f32 %v240, %v572
    %v574 = vpop.f32.mrb[0].mxu0
    %v575 = vadd.f32 %v236, %v574
    %v576 = vpop.f32.mrb[0].mxu0
    %v577 = vadd.f32 %v240, %v576
    %578 = vmatprep.mubr.bf16.mxu0 0
    %579 = vmatmul.mubr.bf16.gmra.mrb[0].mxu0 %v292
    %v580 = vpop.f32.mrb[0].mxu0
    %v581 = vadd.f32 %v236, %v580
    %v582 = vpop.f32.mrb[0].mxu0
    %v583 = vadd.f32 %v240, %v582
    %v584 = vpop.f32.mrb[0].mxu0
    %v585 = vadd.f32 %v236, %v584
    %v586 = vpop.f32.mrb[0].mxu0
    %v587 = vadd.f32 %v240, %v586
    %588 = vmatprep.mubr.bf16.mxu0 0
    %589 = vmatmul.mubr.bf16.gmra.mrb[0].mxu0 %v295
    %v590 = vpop.f32.mrb[0].mxu0
    %v591 = vadd.f32 %v236, %v590
    %v592 = vpop.f32.mrb[0].mxu0
    %v593 = vadd.f32 %v240, %v592
    %v594 = vpop.f32.mrb[0].mxu0
    %v595 = vadd.f32 %v236, %v594
    %v596 = vpop.f32.mrb[0].mxu0
    %v597 = vadd.f32 %v240, %v596
    %598 = vmatprep.mubr.bf16.mxu0 0
    %599 = vmatmul.mubr.bf16.gmra.mrb[0].mxu0 %v298
    %v600 = vpop.f32.mrb[0].mxu0
    %v601 = vadd.f32 %v236, %v600
    %v602 = vpop.f32.mrb[0].mxu0
    %v603 = vadd.f32 %v240, %v602
    %v604 = vpop.f32.mrb[0].mxu0
    %v605 = vadd.f32 %v236, %v604
    %v606 = vpop.f32.mrb[0].mxu0
    %v607 = vadd.f32 %v240, %v606
    %608 = vmatprep.mubr.bf16.mxu0 0
    %609 = vmatmul.mubr.bf16.gmra.mrb[0].mxu0 %v301
    %v610 = vpop.f32.mrb[0].mxu0
    %v611 = vadd.f32 %v236, %v610
    %v612 = vpop.f32.mrb[0].mxu0
    %v613 = vadd.f32 %v240, %v612
    %v614 = vpop.f32.mrb[0].mxu0
    %v615 = vadd.f32 %v236, %v614
    %v616 = vpop.f32.mrb[0].mxu0
    %v617 = vadd.f32 %v240, %v616
    %618 = vmatprep.mubr.bf16.mxu0 0
    %619 = vmatmul.mubr.bf16.gmra.mrb[0].mxu0 %v304
    %v620 = vpop.f32.mrb[0].mxu0
    %v621 = vadd.f32 %v236, %v620
    %v622 = vpop.f32.mrb[0].mxu0
    %v623 = vadd.f32 %v240, %v622
    %v624 = vpop.f32.mrb[0].mxu0
    %v625 = vadd.f32 %v236, %v624
    %v626 = vpop.f32.mrb[0].mxu0
    %v627 = vadd.f32 %v240, %v626
    %628 = vmatprep.mubr.bf16.mxu0 0
    %629 = vmatmul.mubr.bf16.gmra.mrb[0].mxu0 %v307
    %v630 = vpop.f32.mrb[0].mxu0
    %v631 = vadd.f32 %v236, %v630
    %v632 = vpop.f32.mrb[0].mxu0
    %v633 = vadd.f32 %v240, %v632
    %v634 = vpop.f32.mrb[0].mxu0
    %v635 = vadd.f32 %v236, %v634
    %v636 = vpop.f32.mrb[0].mxu0
    %v637 = vadd.f32 %v240, %v636
    %638 = vmatprep.mubr.bf16.mxu0 0
    %639 = vmatmul.mubr.bf16.gmra.mrb[0].mxu0 %v310
    %v640 = vpop.f32.mrb[0].mxu0
    %v641 = vadd.f32 %v236, %v640
    %v642 = vpop.f32.mrb[0].mxu0
    %v643 = vadd.f32 %v240, %v642
    %v644 = vpop.f32.mrb[0].mxu0
    %v645 = vadd.f32 %v236, %v644
    %v646 = vpop.f32.mrb[0].mxu0
    %v647 = vadd.f32 %v240, %v646
    %648 = vmatprep.mubr.bf16.mxu0 0
    %649 = vmatmul.mubr.bf16.gmra.mrb[0].mxu0 %v313
    %v650 = vpop.f32.mrb[0].mxu0
    %v651 = vadd.f32 %v236, %v650
    %v652 = vpop.f32.mrb[0].mxu0
    %v653 = vadd.f32 %v240, %v652
    %v654 = vpop.f32.mrb[0].mxu0
    %v655 = vadd.f32 %v236, %v654
    %v656 = vpop.f32.mrb[0].mxu0
    %v657 = vadd.f32 %v240, %v656
    %658 = vmatprep.mubr.bf16.mxu0 0
    %659 = vmatmul.mubr.bf16.gmra.mrb[0].mxu0 %v316
    %v660 = vpop.f32.mrb[0].mxu0
    %v661 = vadd.f32 %v236, %v660
    %v662 = vpop.f32.mrb[0].mxu0
    %v663 = vadd.f32 %v240, %v662
    %v664 = vpop.f32.mrb[0].mxu0
    %v665 = vadd.f32 %v236, %v664
    %v666 = vpop.f32.mrb[0].mxu0
    %v667 = vadd.f32 %v240, %v666
    %668 = vmatprep.mubr.bf16.mxu0 0
    %669 = vmatmul.mubr.bf16.gmra.mrb[0].mxu0 %v319
    %v670 = vpop.f32.mrb[0].mxu0
    %v671 = vadd.f32 %v236, %v670
    %v672 = vpop.f32.mrb[0].mxu0
    %v673 = vadd.f32 %v240, %v672
    %v674 = vpop.f32.mrb[0].mxu0
    %v675 = vadd.f32 %v236, %v674
    %v676 = vpop.f32.mrb[0].mxu0
    %v677 = vadd.f32 %v240, %v676
    %678 = vmatprep.mubr.bf16.mxu0 0
    %679 = vmatmul.mubr.bf16.gmra.mrb[0].mxu0 %v322
    %v680 = vpop.f32.mrb[0].mxu0
    %v681 = vadd.f32 %v236, %v680
    %v682 = vpop.f32.mrb[0].mxu0
    %v683 = vadd.f32 %v240, %v682
    %v684 = vpop.f32.mrb[0].mxu0
    %v685 = vadd.f32 %v236, %v684
    %v686 = vpop.f32.mrb[0].mxu0
    %v687 = vadd.f32 %v240, %v686
    %688 = vmatprep.mubr.bf16.mxu0 0
    %689 = vmatmul.mubr.bf16.gmra.mrb[0].mxu0 %v325
    %v690 = vpop.f32.mrb[0].mxu0
    %v691 = vadd.f32 %v236, %v690
    %v692 = vpop.f32.mrb[0].mxu0
    %v693 = vadd.f32 %v240, %v692
    %v694 = vpop.f32.mrb[0].mxu0
    %v695 = vadd.f32 %v236, %v694
    %v696 = vpop.f32.mrb[0].mxu0
    %v697 = vadd.f32 %v240, %v696
    %698 = vmatprep.mubr.bf16.mxu0 0
    %699 = vmatmul.mubr.bf16.gmra.mrb[0].mxu0 %v328
    %v700 = vpop.f32.mrb[0].mxu0
    %v701 = vadd.f32 %v236, %v700
    %v702 = vpop.f32.mrb[0].mxu0
    %v703 = vadd.f32 %v240, %v702
    %v704 = vpop.f32.mrb[0].mxu0
    %v705 = vadd.f32 %v236, %v704
    %v706 = vpop.f32.mrb[0].mxu0
    %v707 = vadd.f32 %v240, %v706
    %708 = vmatprep.mubr.bf16.mxu0 0
    %709 = vmatmul.mubr.bf16.gmra.mrb[0].mxu0 %v331
    %v710 = vpop.f32.mrb[0].mxu0
    %v711 = vadd.f32 %v236, %v710
    %v712 = vpop.f32.mrb[0].mxu0
    %v713 = vadd.f32 %v240, %v712
    %v714 = vpop.f32.mrb[0].mxu0
    %v715 = vadd.f32 %v236, %v714
    %v716 = vpop.f32.mrb[0].mxu0
    %v717 = vadd.f32 %v240, %v716
    %718 = vmatprep.mubr.bf16.mxu0 0
    %719 = vmatmul.mubr.bf16.gmra.mrb[0].mxu0 %v334
    %v720 = vpop.f32.mrb[0].mxu0
    %v721 = vadd.f32 %v236, %v720
    %v722 = vpop.f32.mrb[0].mxu0
    %v723 = vadd.f32 %v240, %v722
    %v724 = vpop.f32.mrb[0].mxu0
    %v725 = vadd.f32 %v236, %v724
    %v726 = vpop.f32.mrb[0].mxu0
    %v727 = vadd.f32 %v240, %v726
    %728 = vmatprep.mubr.bf16.mxu0 0
    %729 = vmatmul.mubr.bf16.gmra.mrb[0].mxu0 %v337
    %v730 = vpop.f32.mrb[0].mxu0
    %v731 = vadd.f32 %v236, %v730
    %v732 = vpop.f32.mrb[0].mxu0
    %v733 = vadd.f32 %v240, %v732
    %v734 = vpop.f32.mrb[0].mxu0
    %v735 = vadd.f32 %v236, %v734
    %v736 = vpop.f32.mrb[0].mxu0
    %v737 = vadd.f32 %v240, %v736
    %738 = vmatprep.mubr.bf16.mxu0 0
    %739 = vmatmul.mubr.bf16.gmra.mrb[0].mxu0 %v340
    %v740 = vpop.f32.mrb[0].mxu0
    %v741 = vadd.f32 %v236, %v740
    %v742 = vpop.f32.mrb[0].mxu0
    %v743 = vadd.f32 %v240, %v742
    %v744 = vpop.f32.mrb[0].mxu0
    %v745 = vadd.f32 %v236, %v744
    %v746 = vpop.f32.mrb[0].mxu0
    %v747 = vadd.f32 %v240, %v746
    %748 = vmatprep.mubr.bf16.mxu0 0
    %749 = vmatmul.mubr.bf16.gmra.mrb[0].mxu0 %v343
    %v750 = vpop.f32.mrb[0].mxu0
    %v751 = vadd.f32 %v236, %v750
    %v752 = vpop.f32.mrb[0].mxu0
    %v753 = vadd.f32 %v240, %v752
    %v754 = vpop.f32.mrb[0].mxu0
    %v755 = vadd.f32 %v236, %v754
    %v756 = vpop.f32.mrb[0].mxu0
    %v757 = vadd.f32 %v240, %v756
    %758 = vmatprep.mubr.bf16.mxu0 0
    %759 = vmatmul.mubr.bf16.gmra.mrb[0].mxu0 %v346
    %v760 = vpop.f32.mrb[0].mxu0
    %v761 = vadd.f32 %v236, %v760
    %v762 = vpop.f32.mrb[0].mxu0
    %v763 = vadd.f32 %v240, %v762
    %v764 = vpop.f32.mrb[0].mxu0
    %v765 = vadd.f32 %v236, %v764
    %v766 = vpop.f32.mrb[0].mxu0
    %v767 = vadd.f32 %v240, %v766
    %768 = vmatprep.mubr.bf16.mxu0 0
    %769 = vmatmul.mubr.bf16.gmra.mrb[0].mxu0 %v349
    %v770 = vpop.f32.mrb[0].mxu0
    %v771 = vadd.f32 %v236, %v770
    %v772 = vpop.f32.mrb[0].mxu0
    %v773 = vadd.f32 %v240, %v772
    %v774 = vpop.f32.mrb[0].mxu0
    %v775 = vadd.f32 %v236, %v774
    %v776 = vpop.f32.mrb[0].mxu0
    %v777 = vadd.f32 %v240, %v776
    %778 = vmatprep.mubr.bf16.mxu0 0
    %779 = vmatmul.mubr.bf16.gmra.mrb[0].mxu0 %v352
    %v780 = vpop.f32.mrb[0].mxu0
    %v781 = vadd.f32 %v236, %v780
    %v782 = vpop.f32.mrb[0].mxu0
    %v783 = vadd.f32 %v240, %v782
    %v784 = vpop.f32.mrb[0].mxu0
    %v785 = vadd.f32 %v236, %v784
    %v786 = vpop.f32.mrb[0].mxu0
    %v787 = vadd.f32 %v240, %v786
    %788 = vmatprep.mubr.bf16.mxu0 0
    %789 = vmatmul.mubr.bf16.gmra.mrb[0].mxu0 %v355
    %v790 = vpop.f32.mrb[0].mxu0
    %v791 = vadd.f32 %v236, %v790
    %v792 = vpop.f32.mrb[0].mxu0
    %v793 = vadd.f32 %v240, %v792
    %v794 = vpop.f32.mrb[0].mxu0
    %v795 = vadd.f32 %v236, %v794
    %v796 = vpop.f32.mrb[0].mxu0
    %v797 = vadd.f32 %v240, %v796
    %798 = vmatprep.mubr.bf16.mxu0 0
    %799 = vmatmul.mubr.bf16.gmra.mrb[0].mxu0 %v358
    %v800 = vpop.f32.mrb[0].mxu0
    %v801 = vadd.f32 %v236, %v800
    %v802 = vpop.f32.mrb[0].mxu0
    %v803 = vadd.f32 %v240, %v802
    %v804 = vpop.f32.mrb[0].mxu0
    %v805 = vadd.f32 %v236, %v804
    %v806 = vpop.f32.mrb[0].mxu0
    %v807 = vadd.f32 %v240, %v806
    %808 = vmatprep.mubr.bf16.mxu0 0
    %809 = vmatmul.mubr.bf16.gmra.mrb[0].mxu0 %v361
    %v810 = vpop.f32.mrb[0].mxu0
    %v811 = vadd.f32 %v236, %v810
    %v812 = vpop.f32.mrb[0].mxu0
    %v813 = vadd.f32 %v240, %v812
    %v814 = vpop.f32.mrb[0].mxu0
    %v815 = vadd.f32 %v236, %v814
    %v816 = vpop.f32.mrb[0].mxu0
    %v817 = vadd.f32 %v240, %v816
    %818 = vmatprep.mubr.bf16.mxu0 0
    %819 = vmatmul.mubr.bf16.gmra.mrb[0].mxu0 %v364
    %v820 = vpop.f32.mrb[0].mxu0
    %v821 = vadd.f32 %v236, %v820
    %v822 = vpop.f32.mrb[0].mxu0
    %v823 = vadd.f32 %v240, %v822
    %v824 = vpop.f32.mrb[0].mxu0
    %v825 = vadd.f32 %v236, %v824
    %v826 = vpop.f32.mrb[0].mxu0
    %v827 = vadd.f32 %v240, %v826
    %828 = vmatprep.mubr.bf16.mxu0 0
    %829 = vmatmul.mubr.bf16.gmra.mrb[0].mxu0 %v367
    %v830 = vpop.f32.mrb[0].mxu0
    %v831 = vadd.f32 %v236, %v830
    %v832 = vpop.f32.mrb[0].mxu0
    %v833 = vadd.f32 %v240, %v832
    %v834 = vpop.f32.mrb[0].mxu0
    %v835 = vadd.f32 %v236, %v834
    %v836 = vpop.f32.mrb[0].mxu0
    %v837 = vadd.f32 %v240, %v836
    %838 = vmatprep.mubr.bf16.mxu0 0
    %839 = vmatmul.mubr.bf16.gmra.mrb[0].mxu0 %v370
    %v840 = vpop.f32.mrb[0].mxu0
    %v841 = vadd.f32 %v236, %v840
    %v842 = vpop.f32.mrb[0].mxu0
    %v843 = vadd.f32 %v240, %v842
    %v844 = vpop.f32.mrb[0].mxu0
    %v845 = vadd.f32 %v236, %v844
    %v846 = vpop.f32.mrb[0].mxu0
    %v847 = vadd.f32 %v240, %v846
    %848 = vmatprep.mubr.bf16.mxu0 0
    %849 = vmatmul.mubr.bf16.gmra.mrb[0].mxu0 %v373
    %v850 = vpop.f32.mrb[0].mxu0
    %v851 = vadd.f32 %v236, %v850
    %v852 = vpop.f32.mrb[0].mxu0
    %v853 = vadd.f32 %v240, %v852
    %v854 = vpop.f32.mrb[0].mxu0
    %v855 = vadd.f32 %v236, %v854
    %v856 = vpop.f32.mrb[0].mxu0
    %v857 = vadd.f32 %v240, %v856
    %858 = vmatprep.mubr.bf16.mxu0 0
    %859 = vmatmul.mubr.bf16.gmra.mrb[0].mxu0 %v376
    %v860 = vpop.f32.mrb[0].mxu0
    %v861 = vadd.f32 %v236, %v860
    %v862 = vpop.f32.mrb[0].mxu0
    %v863 = vadd.f32 %v240, %v862
    %v864 = vpop.f32.mrb[0].mxu0
    %v865 = vadd.f32 %v236, %v864
    %v866 = vpop.f32.mrb[0].mxu0
    %v867 = vadd.f32 %v240, %v866
    %868 = vmatprep.mubr.bf16.mxu0 0
    %869 = vmatmul.mubr.bf16.gmra.mrb[0].mxu0 %v379
    %v870 = vpop.f32.mrb[0].mxu0
    %v871 = vadd.f32 %v236, %v870
    %v872 = vpop.f32.mrb[0].mxu0
    %v873 = vadd.f32 %v240, %v872
    %v874 = vpop.f32.mrb[0].mxu0
    %v875 = vadd.f32 %v236, %v874
    %v876 = vpop.f32.mrb[0].mxu0
    %v877 = vadd.f32 %v240, %v876
    %878 = vmatprep.mubr.bf16.mxu0 0
    %879 = vmatmul.mubr.bf16.gmra.mrb[0].mxu0 %v382
    %v880 = vpop.f32.mrb[0].mxu0
    %v881 = vadd.f32 %v236, %v880
    %v882 = vpop.f32.mrb[0].mxu0
    %v883 = vadd.f32 %v240, %v882
    %v884 = vpop.f32.mrb[0].mxu0
    %v885 = vadd.f32 %v236, %v884
    %v886 = vpop.f32.mrb[0].mxu0
    %v887 = vadd.f32 %v240, %v886
    %888 = vmatprep.mubr.bf16.mxu0 0
    %889 = vmatmul.mubr.bf16.gmra.mrb[0].mxu0 %v385
    %v890 = vpop.f32.mrb[0].mxu0
    %v891 = vadd.f32 %v236, %v890
    %v892 = vpop.f32.mrb[0].mxu0
    %v893 = vadd.f32 %v240, %v892
    %v894 = vpop.f32.mrb[0].mxu0
    %v895 = vadd.f32 %v236, %v894
    %v896 = vpop.f32.mrb[0].mxu0
    %v897 = vadd.f32 %v240, %v896
    %898 = vmatprep.mubr.bf16.mxu0 0
    %899 = vmatmul.mubr.bf16.gmra.mrb[0].mxu0 %v388
    %v900 = vpop.f32.mrb[0].mxu0
    %v901 = vadd.f32 %v236, %v900
    %v902 = vpop.f32.mrb[0].mxu0
    %v903 = vadd.f32 %v240, %v902
    %v904 = vpop.f32.mrb[0].mxu0
    %v905 = vadd.f32 %v236, %v904
    %v906 = vpop.f32.mrb[0].mxu0
    %v907 = vadd.f32 %v240, %v906
    %908 = vmatprep.mubr.bf16.mxu0 0
    %909 = vmatmul.mubr.bf16.gmra.mrb[0].mxu0 %v391
    %v910 = vpop.f32.mrb[0].mxu0
    %v911 = vadd.f32 %v236, %v910
    %v912 = vpop.f32.mrb[0].mxu0
    %v913 = vadd.f32 %v240, %v912
    %v914 = vpop.f32.mrb[0].mxu0
    %v915 = vadd.f32 %v236, %v914
    %v916 = vpop.f32.mrb[0].mxu0
    %v917 = vadd.f32 %v240, %v916
    %918 = vmatprep.mubr.bf16.mxu0 0
    %919 = vmatmul.mubr.bf16.gmra.mrb[0].mxu0 %v394
    %v920 = vpop.f32.mrb[0].mxu0
    %v921 = vadd.f32 %v236, %v920
    %v922 = vpop.f32.mrb[0].mxu0
    %v923 = vadd.f32 %v240, %v922
    %v924 = vpop.f32.mrb[0].mxu0
    %v925 = vadd.f32 %v236, %v924
    %v926 = vpop.f32.mrb[0].mxu0
    %v927 = vadd.f32 %v240, %v926
    %928 = vmatprep.mubr.bf16.mxu0 0
    %929 = vmatmul.mubr.bf16.gmra.mrb[0].mxu0 %v397
    %v930 = vpop.f32.mrb[0].mxu0
    %v931 = vadd.f32 %v236, %v930
    %v932 = vpop.f32.mrb[0].mxu0
    %v933 = vadd.f32 %v240, %v932
    %v934 = vpop.f32.mrb[0].mxu0
    %v935 = vadd.f32 %v236, %v934
    %v936 = vpop.f32.mrb[0].mxu0
    %v937 = vadd.f32 %v240, %v936
    %938 = vmatprep.mubr.bf16.mxu0 0
    %939 = vmatmul.mubr.bf16.gmra.mrb[0].mxu0 %v400
    %v940 = vpop.f32.mrb[0].mxu0
    %v941 = vadd.f32 %v236, %v940
    %v942 = vpop.f32.mrb[0].mxu0
    %v943 = vadd.f32 %v240, %v942
    %v944 = vpop.f32.mrb[0].mxu0
    %v945 = vadd.f32 %v236, %v944
    %v946 = vpop.f32.mrb[0].mxu0
    %v947 = vadd.f32 %v240, %v946
    %948 = vmatprep.mubr.bf16.mxu0 0
    %949 = vmatmul.mubr.bf16.gmra.mrb[0].mxu0 %v403
    %v950 = vpop.f32.mrb[0].mxu0
    %v951 = vadd.f32 %v236, %v950
    %v952 = vpop.f32.mrb[0].mxu0
    %v953 = vadd.f32 %v240, %v952
    %v954 = vpop.f32.mrb[0].mxu0
    %v955 = vadd.f32 %v236, %v954
    %v956 = vpop.f32.mrb[0].mxu0
    %v957 = vadd.f32 %v240, %v956
    %958 = vmatprep.mubr.bf16.mxu0 0
    %959 = vmatmul.mubr.bf16.gmra.mrb[0].mxu0 %v406
    %v960 = vpop.f32.mrb[0].mxu0
    %v961 = vadd.f32 %v236, %v960
    %v962 = vpop.f32.mrb[0].mxu0
    %v963 = vadd.f32 %v240, %v962
    %v964 = vpop.f32.mrb[0].mxu0
    %v965 = vadd.f32 %v236, %v964
    %v966 = vpop.f32.mrb[0].mxu0
    %v967 = vadd.f32 %v240, %v966
    %968 = vmatprep.mubr.bf16.mxu0 0
    %969 = vmatmul.mubr.bf16.gmra.mrb[0].mxu0 %v409
    %v970 = vpop.f32.mrb[0].mxu0
    %v971 = vadd.f32 %v236, %v970
    %v972 = vpop.f32.mrb[0].mxu0
    %v973 = vadd.f32 %v240, %v972
    %v974 = vpop.f32.mrb[0].mxu0
    %v975 = vadd.f32 %v236, %v974
    %v976 = vpop.f32.mrb[0].mxu0
    %v977 = vadd.f32 %v240, %v976
    %978 = vmatprep.mubr.bf16.mxu0 0
    %979 = vmatmul.mubr.bf16.gmra.mrb[0].mxu0 %v412
    %v980 = vpop.f32.mrb[0].mxu0
    %v981 = vadd.f32 %v236, %v980
    %v982 = vpop.f32.mrb[0].mxu0
    %v983 = vadd.f32 %v240, %v982
    %v984 = vpop.f32.mrb[0].mxu0
    %v985 = vadd.f32 %v236, %v984
    %v986 = vpop.f32.mrb[0].mxu0
    %v987 = vadd.f32 %v240, %v986
    %988 = vmatprep.mubr.bf16.mxu0 0
    %989 = vmatmul.mubr.bf16.gmra.mrb[0].mxu0 %v415
    %v990 = vpop.f32.mrb[0].mxu0
    %v991 = vadd.f32 %v236, %v990
    %v992 = vpop.f32.mrb[0].mxu0
    %v993 = vadd.f32 %v240, %v992
    %v994 = vpop.f32.mrb[0].mxu0
    %v995 = vadd.f32 %v236, %v994
    %v996 = vpop.f32.mrb[0].mxu0
    %v997 = vadd.f32 %v240, %v996
    %998 = vmatprep.mubr.bf16.mxu0 0
    %999 = vmatmul.mubr.bf16.gmra.mrb[0].mxu0 %v418
    %v1000 = vpop.f32.mrb[0].mxu0
    %v1001 = vadd.f32 %v236, %v1000
    %v1002 = vpop.f32.mrb[0].mxu0
    %v1003 = vadd.f32 %v240, %v1002
    %v1004 = vpop.f32.mrb[0].mxu0
    %v1005 = vadd.f32 %v236, %v1004
    %v1006 = vpop.f32.mrb[0].mxu0
    %v1007 = vadd.f32 %v240, %v1006
    %1008 = vmatprep.mubr.bf16.mxu0 0
    %1009 = vmatmul.mubr.bf16.gmra.mrb[0].mxu0 %v421
    %v1010 = vpop.f32.mrb[0].mxu0
    %v1011 = vadd.f32 %v236, %v1010
    %v1012 = vpop.f32.mrb[0].mxu0
    %v1013 = vadd.f32 %v240, %v1012
    %v1014 = vpop.f32.mrb[0].mxu0
    %v1015 = vadd.f32 %v236, %v1014
    %v1016 = vpop.f32.mrb[0].mxu0
    %v1017 = vadd.f32 %v240, %v1016
    %1018 = vmatprep.mubr.bf16.mxu0 0
    %1019 = vmatmul.mubr.bf16.gmra.mrb[0].mxu0 %v424
    %v1020 = vpop.f32.mrb[0].mxu0
    %v1021 = vadd.f32 %v236, %v1020
    %v1022 = vpop.f32.mrb[0].mxu0
    %v1023 = vadd.f32 %v240, %v1022
    %v1024 = vpop.f32.mrb[0].mxu0
    %v1025 = vadd.f32 %v236, %v1024
    %v1026 = vpop.f32.mrb[0].mxu0
    %v1027 = vadd.f32 %v240, %v1026
    %1028 = vmatprep.mubr.bf16.mxu0 0
    %1029 = vmatmul.mubr.bf16.gmra.mrb[0].mxu0 %v427
    %v1030 = vpop.f32.mrb[0].mxu0
    %v1031 = vadd.f32 %v236, %v1030
    %v1032 = vpop.f32.mrb[0].mxu0
    %v1033 = vadd.f32 %v240, %v1032
    %v1034 = vpop.f32.mrb[0].mxu0
    %v1035 = vadd.f32 %v236, %v1034
    %v1036 = vpop.f32.mrb[0].mxu0
    %v1037 = vadd.f32 %v240, %v1036
    %1038 = vmatprep.mubr.bf16.mxu0 0
    %1039 = vmatmul.mubr.bf16.gmra.mrb[0].mxu0 %v430
    %v1040 = vpop.f32.mrb[0].mxu0
    %v1041 = vadd.f32 %v236, %v1040
    %v1042 = vpop.f32.mrb[0].mxu0
    %v1043 = vadd.f32 %v240, %v1042
    %v1044 = vpop.f32.mrb[0].mxu0
    %v1045 = vadd.f32 %v236, %v1044
    %v1046 = vpop.f32.mrb[0].mxu0
    %v1047 = vadd.f32 %v240, %v1046
    %1048 = vmatprep.mubr.bf16.mxu0 0
    %1049 = vmatmul.mubr.bf16.gmra.mrb[0].mxu0 %v433
    %v1050 = vpop.f32.mrb[0].mxu0
    %v1051 = vadd.f32 %v236, %v1050
    %v1052 = vpop.f32.mrb[0].mxu0
    %v1053 = vadd.f32 %v240, %v1052
    %v1054 = vpop.f32.mrb[0].mxu0
    %v1055 = vadd.f32 %v236, %v1054
    %v1056 = vpop.f32.mrb[0].mxu0
    %v1057 = vadd.f32 %v240, %v1056
    %1058 = vmatprep.mubr.bf16.mxu0 0
    %1059 = vmatmul.mubr.bf16.gmra.mrb[0].mxu0 %v436
    %v1060 = vpop.f32.mrb[0].mxu0
    %v1061 = vadd.f32 %v236, %v1060
    %v1062 = vpop.f32.mrb[0].mxu0
    %v1063 = vadd.f32 %v240, %v1062
    %v1064 = vpop.f32.mrb[0].mxu0
    %v1065 = vadd.f32 %v236, %v1064
    %v1066 = vpop.f32.mrb[0].mxu0
    %v1067 = vadd.f32 %v240, %v1066
    %1068 = vmatprep.mubr.bf16.mxu0 0
    %1069 = vmatmul.mubr.bf16.gmra.mrb[0].mxu0 %v439
    %v1070 = vpop.f32.mrb[0].mxu0
    %v1071 = vadd.f32 %v236, %v1070
    %v1072 = vpop.f32.mrb[0].mxu0
    %v1073 = vadd.f32 %v240, %v1072
    %v1074 = vpop.f32.mrb[0].mxu0
    %v1075 = vadd.f32 %v236, %v1074
    %v1076 = vpop.f32.mrb[0].mxu0
    %v1077 = vadd.f32 %v240, %v1076
    %1078 = vmatprep.mubr.bf16.mxu0 0
    %1079 = vmatmul.mubr.bf16.gmra.mrb[0].mxu0 %v442
    %v1080 = vpop.f32.mrb[0].mxu0
    %v1081 = vadd.f32 %v236, %v1080
    %v1082 = vpop.f32.mrb[0].mxu0
    %v1083 = vadd.f32 %v240, %v1082
    %v1084 = vpop.f32.mrb[0].mxu0
    %v1085 = vadd.f32 %v236, %v1084
    %v1086 = vpop.f32.mrb[0].mxu0
    %v1087 = vadd.f32 %v240, %v1086
    %1088 = vmatprep.mubr.bf16.mxu0 0
    %1089 = vmatmul.mubr.bf16.gmra.mrb[0].mxu0 %v445
    %v1090 = vpop.f32.mrb[0].mxu0
    %v1091 = vadd.f32 %v236, %v1090
    %v1092 = vpop.f32.mrb[0].mxu0
    %v1093 = vadd.f32 %v240, %v1092
    %v1094 = vpop.f32.mrb[0].mxu0
    %v1095 = vadd.f32 %v236, %v1094
    %v1096 = vpop.f32.mrb[0].mxu0
    %v1097 = vadd.f32 %v240, %v1096
    %1098 = vmatprep.mubr.bf16.mxu0 0
    %1099 = vmatmul.mubr.bf16.gmra.mrb[0].mxu0 %v448
    %v1100 = vpop.f32.mrb[0].mxu0
    %v1101 = vadd.f32 %v236, %v1100
    %v1102 = vpop.f32.mrb[0].mxu0
    %v1103 = vadd.f32 %v240, %v1102
    %v1104 = vpop.f32.mrb[0].mxu0
    %v1105 = vadd.f32 %v236, %v1104
    %v1106 = vpop.f32.mrb[0].mxu0
    %v1107 = vadd.f32 %v240, %v1106
    %1108 = vmatprep.mubr.bf16.mxu0 0
    %1109 = vmatmul.mubr.bf16.gmra.mrb[0].mxu0 %v451
    %v1110 = vpop.f32.mrb[0].mxu0
    %v1111 = vadd.f32 %v236, %v1110
    %v1112 = vpop.f32.mrb[0].mxu0
    %v1113 = vadd.f32 %v240, %v1112
    %v1114 = vpop.f32.mrb[0].mxu0
    %v1115 = vadd.f32 %v236, %v1114
    %v1116 = vpop.f32.mrb[0].mxu0
    %v1117 = vadd.f32 %v240, %v1116
    %1118 = vmatprep.mubr.bf16.mxu0 0
    %1119 = vmatmul.mubr.bf16.gmra.mrb[0].mxu0 %v454
    %v1120 = vpop.f32.mrb[0].mxu0
    %v1121 = vadd.f32 %v236, %v1120
    %v1122 = vpop.f32.mrb[0].mxu0
    %v1123 = vadd.f32 %v240, %v1122
    %v1124 = vpop.f32.mrb[0].mxu0
    %v1125 = vadd.f32 %v236, %v1124
    %v1126 = vpop.f32.mrb[0].mxu0
    %v1127 = vadd.f32 %v240, %v1126
    %1128 = vdwg.mxu0
    %v1129 = vmax.f32 %v491, 0.0
    %v1130 = vmax.f32 %v493, 0.0
    %v1131 = vmax.f32 %v495, 0.0
    %v1132 = vmax.f32 %v497, 0.0
    %v1133 = vmax.f32 %v501, 0.0
    %v1134 = vmax.f32 %v503, 0.0
    %v1135 = vmax.f32 %v505, 0.0
    %v1136 = vmax.f32 %v507, 0.0
    %v1137 = vmax.f32 %v511, 0.0
    %v1138 = vmax.f32 %v513, 0.0
    %v1139 = vmax.f32 %v515, 0.0
    %v1140 = vmax.f32 %v517, 0.0
    %v1141 = vmax.f32 %v521, 0.0
    %v1142 = vmax.f32 %v523, 0.0
    %v1143 = vmax.f32 %v525, 0.0
    %v1144 = vmax.f32 %v527, 0.0
    %v1145 = vmax.f32 %v531, 0.0
    %v1146 = vmax.f32 %v533, 0.0
    %v1147 = vmax.f32 %v535, 0.0
    %v1148 = vmax.f32 %v537, 0.0
    %v1149 = vmax.f32 %v541, 0.0
    %v1150 = vmax.f32 %v543, 0.0
    %v1151 = vmax.f32 %v545, 0.0
    %v1152 = vmax.f32 %v547, 0.0
    %v1153 = vmax.f32 %v551, 0.0
    %v1154 = vmax.f32 %v553, 0.0
    %v1155 = vmax.f32 %v555, 0.0
    %v1156 = vmax.f32 %v557, 0.0
    %v1157 = vmax.f32 %v561, 0.0
    %v1158 = vmax.f32 %v563, 0.0
    %v1159 = vmax.f32 %v565, 0.0
    %v1160 = vmax.f32 %v567, 0.0
    %v1161 = vmax.f32 %v571, 0.0
    %v1162 = vmax.f32 %v573, 0.0
    %v1163 = vmax.f32 %v575, 0.0
    %v1164 = vmax.f32 %v577, 0.0
    %v1165 = vmax.f32 %v581, 0.0
    %v1166 = vmax.f32 %v583, 0.0
    %v1167 = vmax.f32 %v585, 0.0
    %v1168 = vmax.f32 %v587, 0.0
    %v1169 = vmax.f32 %v591, 0.0
    %v1170 = vmax.f32 %v593, 0.0
    %v1171 = vmax.f32 %v595, 0.0
    %v1172 = vmax.f32 %v597, 0.0
    %v1173 = vmax.f32 %v601, 0.0
    %v1174 = vmax.f32 %v603, 0.0
    %v1175 = vmax.f32 %v605, 0.0
    %v1176 = vmax.f32 %v607, 0.0
    %v1177 = vmax.f32 %v611, 0.0
    %v1178 = vmax.f32 %v613, 0.0
    %v1179 = vmax.f32 %v615, 0.0
    %v1180 = vmax.f32 %v617, 0.0
    %v1181 = vmax.f32 %v621, 0.0
    %v1182 = vmax.f32 %v623, 0.0
    %v1183 = vmax.f32 %v625, 0.0
    %v1184 = vmax.f32 %v627, 0.0
    %v1185 = vmax.f32 %v631, 0.0
    %v1186 = vmax.f32 %v633, 0.0
    %v1187 = vmax.f32 %v635, 0.0
    %v1188 = vmax.f32 %v637, 0.0
    %v1189 = vmax.f32 %v641, 0.0
    %v1190 = vmax.f32 %v643, 0.0
    %v1191 = vmax.f32 %v645, 0.0
    %v1192 = vmax.f32 %v647, 0.0
    %v1193 = vmax.f32 %v651, 0.0
    %v1194 = vmax.f32 %v653, 0.0
    %v1195 = vmax.f32 %v655, 0.0
    %v1196 = vmax.f32 %v657, 0.0
    %v1197 = vmax.f32 %v661, 0.0
    %v1198 = vmax.f32 %v663, 0.0
    %v1199 = vmax.f32 %v665, 0.0
    %v1200 = vmax.f32 %v667, 0.0
    %v1201 = vmax.f32 %v671, 0.0
    %v1202 = vmax.f32 %v673, 0.0
    %v1203 = vmax.f32 %v675, 0.0
    %v1204 = vmax.f32 %v677, 0.0
    %v1205 = vmax.f32 %v681, 0.0
    %v1206 = vmax.f32 %v683, 0.0
    %v1207 = vmax.f32 %v685, 0.0
    %v1208 = vmax.f32 %v687, 0.0
    %v1209 = vmax.f32 %v691, 0.0
    %v1210 = vmax.f32 %v693, 0.0
    %v1211 = vmax.f32 %v695, 0.0
    %v1212 = vmax.f32 %v697, 0.0
    %v1213 = vmax.f32 %v701, 0.0
    %v1214 = vmax.f32 %v703, 0.0
    %v1215 = vmax.f32 %v705, 0.0
    %v1216 = vmax.f32 %v707, 0.0
    %v1217 = vmax.f32 %v711, 0.0
    %v1218 = vmax.f32 %v713, 0.0
    %v1219 = vmax.f32 %v715, 0.0
    %v1220 = vmax.f32 %v717, 0.0
    %v1221 = vmax.f32 %v721, 0.0
    %v1222 = vmax.f32 %v723, 0.0
    %v1223 = vmax.f32 %v725, 0.0
    %v1224 = vmax.f32 %v727, 0.0
    %v1225 = vmax.f32 %v731, 0.0
    %v1226 = vmax.f32 %v733, 0.0
    %v1227 = vmax.f32 %v735, 0.0
    %v1228 = vmax.f32 %v737, 0.0
    %v1229 = vmax.f32 %v741, 0.0
    %v1230 = vmax.f32 %v743, 0.0
    %v1231 = vmax.f32 %v745, 0.0
    %v1232 = vmax.f32 %v747, 0.0
    %v1233 = vmax.f32 %v751, 0.0
    %v1234 = vmax.f32 %v753, 0.0
    %v1235 = vmax.f32 %v755, 0.0
    %v1236 = vmax.f32 %v757, 0.0
    %v1237 = vmax.f32 %v761, 0.0
    %v1238 = vmax.f32 %v763, 0.0
    %v1239 = vmax.f32 %v765, 0.0
    %v1240 = vmax.f32 %v767, 0.0
    %v1241 = vmax.f32 %v771, 0.0
    %v1242 = vmax.f32 %v773, 0.0
    %v1243 = vmax.f32 %v775, 0.0
    %v1244 = vmax.f32 %v777, 0.0
    %v1245 = vmax.f32 %v781, 0.0
    %v1246 = vmax.f32 %v783, 0.0
    %v1247 = vmax.f32 %v785, 0.0
    %v1248 = vmax.f32 %v787, 0.0
    %v1249 = vmax.f32 %v791, 0.0
    %v1250 = vmax.f32 %v793, 0.0
    %v1251 = vmax.f32 %v795, 0.0
    %v1252 = vmax.f32 %v797, 0.0
    %v1253 = vmax.f32 %v801, 0.0
    %v1254 = vmax.f32 %v803, 0.0
    %v1255 = vmax.f32 %v805, 0.0
    %v1256 = vmax.f32 %v807, 0.0
    %v1257 = vmax.f32 %v811, 0.0
    %v1258 = vmax.f32 %v813, 0.0
    %v1259 = vmax.f32 %v815, 0.0
    %v1260 = vmax.f32 %v817, 0.0
    %v1261 = vmax.f32 %v821, 0.0
    %v1262 = vmax.f32 %v823, 0.0
    %v1263 = vmax.f32 %v825, 0.0
    %v1264 = vmax.f32 %v827, 0.0
    %v1265 = vmax.f32 %v831, 0.0
    %v1266 = vmax.f32 %v833, 0.0
    %v1267 = vmax.f32 %v835, 0.0
    %v1268 = vmax.f32 %v837, 0.0
    %v1269 = vmax.f32 %v841, 0.0
    %v1270 = vmax.f32 %v843, 0.0
    %v1271 = vmax.f32 %v845, 0.0
    %v1272 = vmax.f32 %v847, 0.0
    %v1273 = vmax.f32 %v851, 0.0
    %v1274 = vmax.f32 %v853, 0.0
    %v1275 = vmax.f32 %v855, 0.0
    %v1276 = vmax.f32 %v857, 0.0
    %v1277 = vmax.f32 %v861, 0.0
    %v1278 = vmax.f32 %v863, 0.0
    %v1279 = vmax.f32 %v865, 0.0
    %v1280 = vmax.f32 %v867, 0.0
    %v1281 = vmax.f32 %v871, 0.0
    %v1282 = vmax.f32 %v873, 0.0
    %v1283 = vmax.f32 %v875, 0.0
    %v1284 = vmax.f32 %v877, 0.0
    %v1285 = vmax.f32 %v881, 0.0
    %v1286 = vmax.f32 %v883, 0.0
    %v1287 = vmax.f32 %v885, 0.0
    %v1288 = vmax.f32 %v887, 0.0
    %v1289 = vmax.f32 %v891, 0.0
    %v1290 = vmax.f32 %v893, 0.0
    %v1291 = vmax.f32 %v895, 0.0
    %v1292 = vmax.f32 %v897, 0.0
    %v1293 = vmax.f32 %v901, 0.0
    %v1294 = vmax.f32 %v903, 0.0
    %v1295 = vmax.f32 %v905, 0.0
    %v1296 = vmax.f32 %v907, 0.0
    %v1297 = vmax.f32 %v911, 0.0
    %v1298 = vmax.f32 %v913, 0.0
    %v1299 = vmax.f32 %v915, 0.0
    %v1300 = vmax.f32 %v917, 0.0
    %v1301 = vmax.f32 %v921, 0.0
    %v1302 = vmax.f32 %v923, 0.0
    %v1303 = vmax.f32 %v925, 0.0
    %v1304 = vmax.f32 %v927, 0.0
    %v1305 = vmax.f32 %v931, 0.0
    %v1306 = vmax.f32 %v933, 0.0
    %v1307 = vmax.f32 %v935, 0.0
    %v1308 = vmax.f32 %v937, 0.0
    %v1309 = vmax.f32 %v941, 0.0
    %v1310 = vmax.f32 %v943, 0.0
    %v1311 = vmax.f32 %v945, 0.0
    %v1312 = vmax.f32 %v947, 0.0
    %v1313 = vmax.f32 %v951, 0.0
    %v1314 = vmax.f32 %v953, 0.0
    %v1315 = vmax.f32 %v955, 0.0
    %v1316 = vmax.f32 %v957, 0.0
    %v1317 = vmax.f32 %v961, 0.0
    %v1318 = vmax.f32 %v963, 0.0
    %v1319 = vmax.f32 %v965, 0.0
    %v1320 = vmax.f32 %v967, 0.0
    %v1321 = vmax.f32 %v971, 0.0
    %v1322 = vmax.f32 %v973, 0.0
    %v1323 = vmax.f32 %v975, 0.0
    %v1324 = vmax.f32 %v977, 0.0
    %v1325 = vmax.f32 %v981, 0.0
    %v1326 = vmax.f32 %v983, 0.0
    %v1327 = vmax.f32 %v985, 0.0
    %v1328 = vmax.f32 %v987, 0.0
    %v1329 = vmax.f32 %v991, 0.0
    %v1330 = vmax.f32 %v993, 0.0
    %v1331 = vmax.f32 %v995, 0.0
    %v1332 = vmax.f32 %v997, 0.0
    %v1333 = vmax.f32 %v1001, 0.0
    %v1334 = vmax.f32 %v1003, 0.0
    %v1335 = vmax.f32 %v1005, 0.0
    %v1336 = vmax.f32 %v1007, 0.0
    %v1337 = vmax.f32 %v1011, 0.0
    %v1338 = vmax.f32 %v1013, 0.0
    %v1339 = vmax.f32 %v1015, 0.0
    %v1340 = vmax.f32 %v1017, 0.0
    %v1341 = vmax.f32 %v1021, 0.0
    %v1342 = vmax.f32 %v1023, 0.0
    %v1343 = vmax.f32 %v1025, 0.0
    %v1344 = vmax.f32 %v1027, 0.0
    %v1345 = vmax.f32 %v1031, 0.0
    %v1346 = vmax.f32 %v1033, 0.0
    %v1347 = vmax.f32 %v1035, 0.0
    %v1348 = vmax.f32 %v1037, 0.0
    %v1349 = vmax.f32 %v1041, 0.0
    %v1350 = vmax.f32 %v1043, 0.0
    %v1351 = vmax.f32 %v1045, 0.0
    %v1352 = vmax.f32 %v1047, 0.0
    %v1353 = vmax.f32 %v1051, 0.0
    %v1354 = vmax.f32 %v1053, 0.0
    %v1355 = vmax.f32 %v1055, 0.0
    %v1356 = vmax.f32 %v1057, 0.0
    %v1357 = vmax.f32 %v1061, 0.0
    %v1358 = vmax.f32 %v1063, 0.0
    %v1359 = vmax.f32 %v1065, 0.0
    %v1360 = vmax.f32 %v1067, 0.0
    %v1361 = vmax.f32 %v1071, 0.0
    %v1362 = vmax.f32 %v1073, 0.0
    %v1363 = vmax.f32 %v1075, 0.0
    %v1364 = vmax.f32 %v1077, 0.0
    %v1365 = vmax.f32 %v1081, 0.0
    %v1366 = vmax.f32 %v1083, 0.0
    %v1367 = vmax.f32 %v1085, 0.0
    %v1368 = vmax.f32 %v1087, 0.0
    %v1369 = vmax.f32 %v1091, 0.0
    %v1370 = vmax.f32 %v1093, 0.0
    %v1371 = vmax.f32 %v1095, 0.0
    %v1372 = vmax.f32 %v1097, 0.0
    %v1373 = vmax.f32 %v1101, 0.0
    %v1374 = vmax.f32 %v1103, 0.0
    %v1375 = vmax.f32 %v1105, 0.0
    %v1376 = vmax.f32 %v1107, 0.0
    %v1377 = vmax.f32 %v1111, 0.0
    %v1378 = vmax.f32 %v1113, 0.0
    %v1379 = vmax.f32 %v1115, 0.0
    %v1380 = vmax.f32 %v1117, 0.0
    %v1381 = vmax.f32 %v1121, 0.0
    %v1382 = vmax.f32 %v1123, 0.0
    %v1383 = vmax.f32 %v1125, 0.0
    %v1384 = vmax.f32 %v1127, 0.0
    %v1385 = vpack.c.bf16 %v1131, %v1129
    %v1386 = vpack.c.bf16 %v1132, %v1130
    %v1387 = vpack.c.bf16 %v1135, %v1133
    %v1388 = vpack.c.bf16 %v1136, %v1134
    %v1389 = vpack.c.bf16 %v1139, %v1137
    %v1390 = vpack.c.bf16 %v1140, %v1138
    %v1391 = vpack.c.bf16 %v1143, %v1141
    %v1392 = vpack.c.bf16 %v1144, %v1142
    %v1393 = vpack.c.bf16 %v1147, %v1145
    %v1394 = vpack.c.bf16 %v1148, %v1146
    %v1395 = vpack.c.bf16 %v1151, %v1149
    %v1396 = vpack.c.bf16 %v1152, %v1150
    %v1397 = vpack.c.bf16 %v1155, %v1153
    %v1398 = vpack.c.bf16 %v1156, %v1154
    %v1399 = vpack.c.bf16 %v1159, %v1157
    %v1400 = vpack.c.bf16 %v1160, %v1158
    %v1401 = vpack.c.bf16 %v1163, %v1161
    %v1402 = vpack.c.bf16 %v1164, %v1162
    %v1403 = vpack.c.bf16 %v1167, %v1165
    %v1404 = vpack.c.bf16 %v1168, %v1166
    %v1405 = vpack.c.bf16 %v1171, %v1169
    %v1406 = vpack.c.bf16 %v1172, %v1170
    %v1407 = vpack.c.bf16 %v1175, %v1173
    %v1408 = vpack.c.bf16 %v1176, %v1174
    %v1409 = vpack.c.bf16 %v1179, %v1177
    %v1410 = vpack.c.bf16 %v1180, %v1178
    %v1411 = vpack.c.bf16 %v1183, %v1181
    %v1412 = vpack.c.bf16 %v1184, %v1182
    %v1413 = vpack.c.bf16 %v1187, %v1185
    %v1414 = vpack.c.bf16 %v1188, %v1186
    %v1415 = vpack.c.bf16 %v1191, %v1189
    %v1416 = vpack.c.bf16 %v1192, %v1190
    %v1417 = vpack.c.bf16 %v1195, %v1193
    %v1418 = vpack.c.bf16 %v1196, %v1194
    %v1419 = vpack.c.bf16 %v1199, %v1197
    %v1420 = vpack.c.bf16 %v1200, %v1198
    %v1421 = vpack.c.bf16 %v1203, %v1201
    %v1422 = vpack.c.bf16 %v1204, %v1202
    %v1423 = vpack.c.bf16 %v1207, %v1205
    %v1424 = vpack.c.bf16 %v1208, %v1206
    %v1425 = vpack.c.bf16 %v1211, %v1209
    %v1426 = vpack.c.bf16 %v1212, %v1210
    %v1427 = vpack.c.bf16 %v1215, %v1213
    %v1428 = vpack.c.bf16 %v1216, %v1214
    %v1429 = vpack.c.bf16 %v1219, %v1217
    %v1430 = vpack.c.bf16 %v1220, %v1218
    %v1431 = vpack.c.bf16 %v1223, %v1221
    %v1432 = vpack.c.bf16 %v1224, %v1222
    %v1433 = vpack.c.bf16 %v1227, %v1225
    %v1434 = vpack.c.bf16 %v1228, %v1226
    %v1435 = vpack.c.bf16 %v1231, %v1229
    %v1436 = vpack.c.bf16 %v1232, %v1230
    %v1437 = vpack.c.bf16 %v1235, %v1233
    %v1438 = vpack.c.bf16 %v1236, %v1234
    %v1439 = vpack.c.bf16 %v1239, %v1237
    %v1440 = vpack.c.bf16 %v1240, %v1238
    %v1441 = vpack.c.bf16 %v1243, %v1241
    %v1442 = vpack.c.bf16 %v1244, %v1242
    %v1443 = vpack.c.bf16 %v1247, %v1245
    %v1444 = vpack.c.bf16 %v1248, %v1246
    %v1445 = vpack.c.bf16 %v1251, %v1249
    %v1446 = vpack.c.bf16 %v1252, %v1250
    %v1447 = vpack.c.bf16 %v1255, %v1253
    %v1448 = vpack.c.bf16 %v1256, %v1254
    %v1449 = vpack.c.bf16 %v1259, %v1257
    %v1450 = vpack.c.bf16 %v1260, %v1258
    %v1451 = vpack.c.bf16 %v1263, %v1261
    %v1452 = vpack.c.bf16 %v1264, %v1262
    %v1453 = vpack.c.bf16 %v1267, %v1265
    %v1454 = vpack.c.bf16 %v1268, %v1266
    %v1455 = vpack.c.bf16 %v1271, %v1269
    %v1456 = vpack.c.bf16 %v1272, %v1270
    %v1457 = vpack.c.bf16 %v1275, %v1273
    %v1458 = vpack.c.bf16 %v1276, %v1274
    %v1459 = vpack.c.bf16 %v1279, %v1277
    %v1460 = vpack.c.bf16 %v1280, %v1278
    %v1461 = vpack.c.bf16 %v1283, %v1281
    %v1462 = vpack.c.bf16 %v1284, %v1282
    %v1463 = vpack.c.bf16 %v1287, %v1285
    %v1464 = vpack.c.bf16 %v1288, %v1286
    %v1465 = vpack.c.bf16 %v1291, %v1289
    %v1466 = vpack.c.bf16 %v1292, %v1290
    %v1467 = vpack.c.bf16 %v1295, %v1293
    %v1468 = vpack.c.bf16 %v1296, %v1294
    %v1469 = vpack.c.bf16 %v1299, %v1297
    %v1470 = vpack.c.bf16 %v1300, %v1298
    %v1471 = vpack.c.bf16 %v1303, %v1301
    %v1472 = vpack.c.bf16 %v1304, %v1302
    %v1473 = vpack.c.bf16 %v1307, %v1305
    %v1474 = vpack.c.bf16 %v1308, %v1306
    %v1475 = vpack.c.bf16 %v1311, %v1309
    %v1476 = vpack.c.bf16 %v1312, %v1310
    %v1477 = vpack.c.bf16 %v1315, %v1313
    %v1478 = vpack.c.bf16 %v1316, %v1314
    %v1479 = vpack.c.bf16 %v1319, %v1317
    %v1480 = vpack.c.bf16 %v1320, %v1318
    %v1481 = vpack.c.bf16 %v1323, %v1321
    %v1482 = vpack.c.bf16 %v1324, %v1322
    %v1483 = vpack.c.bf16 %v1327, %v1325
    %v1484 = vpack.c.bf16 %v1328, %v1326
    %v1485 = vpack.c.bf16 %v1331, %v1329
    %v1486 = vpack.c.bf16 %v1332, %v1330
    %v1487 = vpack.c.bf16 %v1335, %v1333
    %v1488 = vpack.c.bf16 %v1336, %v1334
    %v1489 = vpack.c.bf16 %v1339, %v1337
    %v1490 = vpack.c.bf16 %v1340, %v1338
    %v1491 = vpack.c.bf16 %v1343, %v1341
    %v1492 = vpack.c.bf16 %v1344, %v1342
    %v1493 = vpack.c.bf16 %v1347, %v1345
    %v1494 = vpack.c.bf16 %v1348, %v1346
    %v1495 = vpack.c.bf16 %v1351, %v1349
    %v1496 = vpack.c.bf16 %v1352, %v1350
    %v1497 = vpack.c.bf16 %v1355, %v1353
    %v1498 = vpack.c.bf16 %v1356, %v1354
    %v1499 = vpack.c.bf16 %v1359, %v1357
    %v1500 = vpack.c.bf16 %v1360, %v1358
    %v1501 = vpack.c.bf16 %v1363, %v1361
    %v1502 = vpack.c.bf16 %v1364, %v1362
    %v1503 = vpack.c.bf16 %v1367, %v1365
    %v1504 = vpack.c.bf16 %v1368, %v1366
    %v1505 = vpack.c.bf16 %v1371, %v1369
    %v1506 = vpack.c.bf16 %v1372, %v1370
    %v1507 = vpack.c.bf16 %v1375, %v1373
    %v1508 = vpack.c.bf16 %v1376, %v1374
    %v1509 = vpack.c.bf16 %v1379, %v1377
    %v1510 = vpack.c.bf16 %v1380, %v1378
    %v1511 = vpack.c.bf16 %v1383, %v1381
    %v1512 = vpack.c.bf16 %v1384, %v1382
    %v1513 = vld [vmem:[%s3] sm:$0xf]
    %v1514 = vld [vmem:[%s3 + $0x4] sm:$0xf]
    %v1515 = vld [vmem:[%s3 + $0x8] sm:$0xf]
    %v1516 = vld [vmem:[%s3 + $0xc] sm:$0xf]
    %v1517 = vld [vmem:[%s3 + $0x10] sm:$0xf]
    %v1518 = vld [vmem:[%s3 + $0x14] sm:$0xf]
    %v1519 = vld [vmem:[%s3 + $0x18] sm:$0xf]
    %v1520 = vld [vmem:[%s3 + $0x1c] sm:$0xf]
    %v1521 = vld [vmem:[%s3 + $0x20] sm:$0xf]
    %v1522 = vld [vmem:[%s3 + $0x24] sm:$0xf]
    %v1523 = vld [vmem:[%s3 + $0x28] sm:$0xf]
    %v1524 = vld [vmem:[%s3 + $0x2c] sm:$0xf]
    %v1525 = vld [vmem:[%s3 + $0x30] sm:$0xf]
    %v1526 = vld [vmem:[%s3 + $0x34] sm:$0xf]
    %v1527 = vld [vmem:[%s3 + $0x38] sm:$0xf]
    %v1528 = vld [vmem:[%s3 + $0x3c] sm:$0xf]
    %v1529 = vld [vmem:[%s3 + $0x40] sm:$0xf]
    %v1530 = vld [vmem:[%s3 + $0x44] sm:$0xf]
    %v1531 = vld [vmem:[%s3 + $0x48] sm:$0xf]
    %v1532 = vld [vmem:[%s3 + $0x4c] sm:$0xf]
    %v1533 = vld [vmem:[%s3 + $0x50] sm:$0xf]
    %v1534 = vld [vmem:[%s3 + $0x54] sm:$0xf]
    %v1535 = vld [vmem:[%s3 + $0x58] sm:$0xf]
    %v1536 = vld [vmem:[%s3 + $0x5c] sm:$0xf]
    %v1537 = vld [vmem:[%s3 + $0x60] sm:$0xf]
    %v1538 = vld [vmem:[%s3 + $0x64] sm:$0xf]
    %v1539 = vld [vmem:[%s3 + $0x68] sm:$0xf]
    %v1540 = vld [vmem:[%s3 + $0x6c] sm:$0xf]
    %v1541 = vld [vmem:[%s3 + $0x70] sm:$0xf]
    %v1542 = vld [vmem:[%s3 + $0x74] sm:$0xf]
    %v1543 = vld [vmem:[%s3 + $0x78] sm:$0xf]
    %v1544 = vld [vmem:[%s3 + $0x7c] sm:$0xf]
    %v1545 = vld [vmem:[%s4] sm:$0x1]
    %v1547 = vlaneseq
    %v1548 = vshrl.u32 %v1547, 7
    %v1549 = vsub.s32 0, %v1548
    %v1550 = vrot.slane %v1545, %v1549
    %v1584 = vunpack.c.l.b16 %v1513
    %v1585 = vunpack.c.l.b16 %v1514
    %v1586 = vunpack.c.l.b16 %v1515
    %v1587 = vunpack.c.l.b16 %v1516
    %v1588 = vunpack.c.l.b16 %v1517
    %v1589 = vunpack.c.l.b16 %v1518
    %v1590 = vunpack.c.l.b16 %v1519
    %v1591 = vunpack.c.l.b16 %v1520
    %v1592 = vunpack.c.l.b16 %v1521
    %v1593 = vunpack.c.l.b16 %v1522
    %v1594 = vunpack.c.l.b16 %v1523
    %v1595 = vunpack.c.l.b16 %v1524
    %v1596 = vunpack.c.l.b16 %v1525
    %v1597 = vunpack.c.l.b16 %v1526
    %v1598 = vunpack.c.l.b16 %v1527
    %v1599 = vunpack.c.l.b16 %v1528
    %v1600 = vunpack.c.l.b16 %v1529
    %v1601 = vunpack.c.l.b16 %v1530
    %v1602 = vunpack.c.l.b16 %v1531
    %v1603 = vunpack.c.l.b16 %v1532
    %v1604 = vunpack.c.l.b16 %v1533
    %v1605 = vunpack.c.l.b16 %v1534
    %v1606 = vunpack.c.l.b16 %v1535
    %v1607 = vunpack.c.l.b16 %v1536
    %v1608 = vunpack.c.l.b16 %v1537
    %v1609 = vunpack.c.l.b16 %v1538
    %v1610 = vunpack.c.l.b16 %v1539
    %v1611 = vunpack.c.l.b16 %v1540
    %v1612 = vunpack.c.l.b16 %v1541
    %v1613 = vunpack.c.l.b16 %v1542
    %v1614 = vunpack.c.l.b16 %v1543
    %v1615 = vunpack.c.l.b16 %v1544
    %v1616 = vpack.c.b16 %v1585, %v1584
    %v1617 = vpack.c.b16 %v1587, %v1586
    %v1618 = vpack.c.b16 %v1589, %v1588
    %v1619 = vpack.c.b16 %v1591, %v1590
    %v1620 = vpack.c.b16 %v1593, %v1592
    %v1621 = vpack.c.b16 %v1595, %v1594
    %v1622 = vpack.c.b16 %v1597, %v1596
    %v1623 = vpack.c.b16 %v1599, %v1598
    %v1624 = vpack.c.b16 %v1601, %v1600
    %v1625 = vpack.c.b16 %v1603, %v1602
    %v1626 = vpack.c.b16 %v1605, %v1604
    %v1627 = vpack.c.b16 %v1607, %v1606
    %v1628 = vpack.c.b16 %v1609, %v1608
    %v1629 = vpack.c.b16 %v1611, %v1610
    %v1630 = vpack.c.b16 %v1613, %v1612
    %v1631 = vpack.c.b16 %v1615, %v1614
    %1648 = vmatprep.subr.bf16.mxu0 0
    %1649 = vmatpush1.bf16.msra.mxu0 %v1616
    %1650 = vmatprep.subr.bf16.mxu0 0
    %1651 = vmatpush1.bf16.msra.mxu0 %v1617
    %1652 = vmatprep.subr.bf16.mxu0 0
    %1653 = vmatpush1.bf16.msra.mxu0 %v1618
    %1654 = vmatprep.subr.bf16.mxu0 0
    %1655 = vmatpush1.bf16.msra.mxu0 %v1619
    %1656 = vmatprep.subr.bf16.mxu0 0
    %1657 = vmatpush1.bf16.msra.mxu0 %v1620
    %1658 = vmatprep.subr.bf16.mxu0 0
    %1659 = vmatpush1.bf16.msra.mxu0 %v1621
    %1660 = vmatprep.subr.bf16.mxu0 0
    %1661 = vmatpush1.bf16.msra.mxu0 %v1622
    %1662 = vmatprep.subr.bf16.mxu0 0
    %1663 = vmatpush1.bf16.msra.mxu0 %v1623
    %1664 = vmatprep.subr.bf16.mxu0 0
    %1665 = vmatpush1.bf16.msra.mxu0 %v1624
    %1666 = vmatprep.subr.bf16.mxu0 0
    %1667 = vmatpush1.bf16.msra.mxu0 %v1625
    %1668 = vmatprep.subr.bf16.mxu0 0
    %1669 = vmatpush1.bf16.msra.mxu0 %v1626
    %1670 = vmatprep.subr.bf16.mxu0 0
    %1671 = vmatpush1.bf16.msra.mxu0 %v1627
    %1672 = vmatprep.subr.bf16.mxu0 0
    %1673 = vmatpush1.bf16.msra.mxu0 %v1628
    %1674 = vmatprep.subr.bf16.mxu0 0
    %1675 = vmatpush1.bf16.msra.mxu0 %v1629
    %1676 = vmatprep.subr.bf16.mxu0 0
    %1677 = vmatpush1.bf16.msra.mxu0 %v1630
    %1678 = vmatprep.subr.bf16.mxu0 0
    %1679 = vmatpush1.bf16.msra.mxu0 %v1631
    %1680 = vmatprep.mubr.bf16.mxu0 %v1386
    %1681 = vmatmul.mubr.bf16.gmra.mrb[0].mxu0 %v1385
    %v1682 = vpop.f32.mrb[0].mxu0
    %v1683 = vadd.f32 %v1550, %v1682
    %v1684 = vpop.f32.mrb[0].mxu0
    %v1685 = vpop.f32.mrb[0].mxu0
    %v1686 = vadd.f32 %v1550, %v1685
    %v1687 = vpop.f32.mrb[0].mxu0
    %1688 = vmatprep.mubr.bf16.mxu0 %v1388
    %1689 = vmatmul.mubr.bf16.gmra.mrb[0].mxu0 %v1387
    %v1690 = vpop.f32.mrb[0].mxu0
    %v1691 = vadd.f32 %v1550, %v1690
    %v1692 = vpop.f32.mrb[0].mxu0
    %v1693 = vpop.f32.mrb[0].mxu0
    %v1694 = vadd.f32 %v1550, %v1693
    %v1695 = vpop.f32.mrb[0].mxu0
    %1696 = vmatprep.mubr.bf16.mxu0 %v1390
    %1697 = vmatmul.mubr.bf16.gmra.mrb[0].mxu0 %v1389
    %v1698 = vpop.f32.mrb[0].mxu0
    %v1699 = vadd.f32 %v1550, %v1698
    %v1700 = vpop.f32.mrb[0].mxu0
    %v1701 = vpop.f32.mrb[0].mxu0
    %v1702 = vadd.f32 %v1550, %v1701
    %v1703 = vpop.f32.mrb[0].mxu0
    %1704 = vmatprep.mubr.bf16.mxu0 %v1392
    %1705 = vmatmul.mubr.bf16.gmra.mrb[0].mxu0 %v1391
    %v1706 = vpop.f32.mrb[0].mxu0
    %v1707 = vadd.f32 %v1550, %v1706
    %v1708 = vpop.f32.mrb[0].mxu0
    %v1709 = vpop.f32.mrb[0].mxu0
    %v1710 = vadd.f32 %v1550, %v1709
    %v1711 = vpop.f32.mrb[0].mxu0
    %1712 = vmatprep.mubr.bf16.mxu0 %v1394
    %1713 = vmatmul.mubr.bf16.gmra.mrb[0].mxu0 %v1393
    %v1714 = vpop.f32.mrb[0].mxu0
    %v1715 = vadd.f32 %v1550, %v1714
    %v1716 = vpop.f32.mrb[0].mxu0
    %v1717 = vpop.f32.mrb[0].mxu0
    %v1718 = vadd.f32 %v1550, %v1717
    %v1719 = vpop.f32.mrb[0].mxu0
    %1720 = vmatprep.mubr.bf16.mxu0 %v1396
    %1721 = vmatmul.mubr.bf16.gmra.mrb[0].mxu0 %v1395
    %v1722 = vpop.f32.mrb[0].mxu0
    %v1723 = vadd.f32 %v1550, %v1722
    %v1724 = vpop.f32.mrb[0].mxu0
    %v1725 = vpop.f32.mrb[0].mxu0
    %v1726 = vadd.f32 %v1550, %v1725
    %v1727 = vpop.f32.mrb[0].mxu0
    %1728 = vmatprep.mubr.bf16.mxu0 %v1398
    %1729 = vmatmul.mubr.bf16.gmra.mrb[0].mxu0 %v1397
    %v1730 = vpop.f32.mrb[0].mxu0
    %v1731 = vadd.f32 %v1550, %v1730
    %v1732 = vpop.f32.mrb[0].mxu0
    %v1733 = vpop.f32.mrb[0].mxu0
    %v1734 = vadd.f32 %v1550, %v1733
    %v1735 = vpop.f32.mrb[0].mxu0
    %1736 = vmatprep.mubr.bf16.mxu0 %v1400
    %1737 = vmatmul.mubr.bf16.gmra.mrb[0].mxu0 %v1399
    %v1738 = vpop.f32.mrb[0].mxu0
    %v1739 = vadd.f32 %v1550, %v1738
    %v1740 = vpop.f32.mrb[0].mxu0
    %v1741 = vpop.f32.mrb[0].mxu0
    %v1742 = vadd.f32 %v1550, %v1741
    %v1743 = vpop.f32.mrb[0].mxu0
    %1744 = vmatprep.mubr.bf16.mxu0 %v1402
    %1745 = vmatmul.mubr.bf16.gmra.mrb[0].mxu0 %v1401
    %v1746 = vpop.f32.mrb[0].mxu0
    %v1747 = vadd.f32 %v1550, %v1746
    %v1748 = vpop.f32.mrb[0].mxu0
    %v1749 = vpop.f32.mrb[0].mxu0
    %v1750 = vadd.f32 %v1550, %v1749
    %v1751 = vpop.f32.mrb[0].mxu0
    %1752 = vmatprep.mubr.bf16.mxu0 %v1404
    %1753 = vmatmul.mubr.bf16.gmra.mrb[0].mxu0 %v1403
    %v1754 = vpop.f32.mrb[0].mxu0
    %v1755 = vadd.f32 %v1550, %v1754
    %v1756 = vpop.f32.mrb[0].mxu0
    %v1757 = vpop.f32.mrb[0].mxu0
    %v1758 = vadd.f32 %v1550, %v1757
    %v1759 = vpop.f32.mrb[0].mxu0
    %1760 = vmatprep.mubr.bf16.mxu0 %v1406
    %1761 = vmatmul.mubr.bf16.gmra.mrb[0].mxu0 %v1405
    %v1762 = vpop.f32.mrb[0].mxu0
    %v1763 = vadd.f32 %v1550, %v1762
    %v1764 = vpop.f32.mrb[0].mxu0
    %v1765 = vpop.f32.mrb[0].mxu0
    %v1766 = vadd.f32 %v1550, %v1765
    %v1767 = vpop.f32.mrb[0].mxu0
    %1768 = vmatprep.mubr.bf16.mxu0 %v1408
    %1769 = vmatmul.mubr.bf16.gmra.mrb[0].mxu0 %v1407
    %v1770 = vpop.f32.mrb[0].mxu0
    %v1771 = vadd.f32 %v1550, %v1770
    %v1772 = vpop.f32.mrb[0].mxu0
    %v1773 = vpop.f32.mrb[0].mxu0
    %v1774 = vadd.f32 %v1550, %v1773
    %v1775 = vpop.f32.mrb[0].mxu0
    %1776 = vmatprep.mubr.bf16.mxu0 %v1410
    %1777 = vmatmul.mubr.bf16.gmra.mrb[0].mxu0 %v1409
    %v1778 = vpop.f32.mrb[0].mxu0
    %v1779 = vadd.f32 %v1550, %v1778
    %v1780 = vpop.f32.mrb[0].mxu0
    %v1781 = vpop.f32.mrb[0].mxu0
    %v1782 = vadd.f32 %v1550, %v1781
    %v1783 = vpop.f32.mrb[0].mxu0
    %1784 = vmatprep.mubr.bf16.mxu0 %v1412
    %1785 = vmatmul.mubr.bf16.gmra.mrb[0].mxu0 %v1411
    %v1786 = vpop.f32.mrb[0].mxu0
    %v1787 = vadd.f32 %v1550, %v1786
    %v1788 = vpop.f32.mrb[0].mxu0
    %v1789 = vpop.f32.mrb[0].mxu0
    %v1790 = vadd.f32 %v1550, %v1789
    %v1791 = vpop.f32.mrb[0].mxu0
    %1792 = vmatprep.mubr.bf16.mxu0 %v1414
    %1793 = vmatmul.mubr.bf16.gmra.mrb[0].mxu0 %v1413
    %v1794 = vpop.f32.mrb[0].mxu0
    %v1795 = vadd.f32 %v1550, %v1794
    %v1796 = vpop.f32.mrb[0].mxu0
    %v1797 = vpop.f32.mrb[0].mxu0
    %v1798 = vadd.f32 %v1550, %v1797
    %v1799 = vpop.f32.mrb[0].mxu0
    %1800 = vmatprep.mubr.bf16.mxu0 %v1416
    %1801 = vmatmul.mubr.bf16.gmra.mrb[0].mxu0 %v1415
    %v1802 = vpop.f32.mrb[0].mxu0
    %v1803 = vadd.f32 %v1550, %v1802
    %v1804 = vpop.f32.mrb[0].mxu0
    %v1805 = vpop.f32.mrb[0].mxu0
    %v1806 = vadd.f32 %v1550, %v1805
    %v1807 = vpop.f32.mrb[0].mxu0
    %1808 = vmatprep.mubr.bf16.mxu0 %v1418
    %1809 = vmatmul.mubr.bf16.gmra.mrb[0].mxu0 %v1417
    %v1810 = vpop.f32.mrb[0].mxu0
    %v1811 = vadd.f32 %v1550, %v1810
    %v1812 = vpop.f32.mrb[0].mxu0
    %v1813 = vpop.f32.mrb[0].mxu0
    %v1814 = vadd.f32 %v1550, %v1813
    %v1815 = vpop.f32.mrb[0].mxu0
    %1816 = vmatprep.mubr.bf16.mxu0 %v1420
    %1817 = vmatmul.mubr.bf16.gmra.mrb[0].mxu0 %v1419
    %v1818 = vpop.f32.mrb[0].mxu0
    %v1819 = vadd.f32 %v1550, %v1818
    %v1820 = vpop.f32.mrb[0].mxu0
    %v1821 = vpop.f32.mrb[0].mxu0
    %v1822 = vadd.f32 %v1550, %v1821
    %v1823 = vpop.f32.mrb[0].mxu0
    %1824 = vmatprep.mubr.bf16.mxu0 %v1422
    %1825 = vmatmul.mubr.bf16.gmra.mrb[0].mxu0 %v1421
    %v1826 = vpop.f32.mrb[0].mxu0
    %v1827 = vadd.f32 %v1550, %v1826
    %v1828 = vpop.f32.mrb[0].mxu0
    %v1829 = vpop.f32.mrb[0].mxu0
    %v1830 = vadd.f32 %v1550, %v1829
    %v1831 = vpop.f32.mrb[0].mxu0
    %1832 = vmatprep.mubr.bf16.mxu0 %v1424
    %1833 = vmatmul.mubr.bf16.gmra.mrb[0].mxu0 %v1423
    %v1834 = vpop.f32.mrb[0].mxu0
    %v1835 = vadd.f32 %v1550, %v1834
    %v1836 = vpop.f32.mrb[0].mxu0
    %v1837 = vpop.f32.mrb[0].mxu0
    %v1838 = vadd.f32 %v1550, %v1837
    %v1839 = vpop.f32.mrb[0].mxu0
    %1840 = vmatprep.mubr.bf16.mxu0 %v1426
    %1841 = vmatmul.mubr.bf16.gmra.mrb[0].mxu0 %v1425
    %v1842 = vpop.f32.mrb[0].mxu0
    %v1843 = vadd.f32 %v1550, %v1842
    %v1844 = vpop.f32.mrb[0].mxu0
    %v1845 = vpop.f32.mrb[0].mxu0
    %v1846 = vadd.f32 %v1550, %v1845
    %v1847 = vpop.f32.mrb[0].mxu0
    %1848 = vmatprep.mubr.bf16.mxu0 %v1428
    %1849 = vmatmul.mubr.bf16.gmra.mrb[0].mxu0 %v1427
    %v1850 = vpop.f32.mrb[0].mxu0
    %v1851 = vadd.f32 %v1550, %v1850
    %v1852 = vpop.f32.mrb[0].mxu0
    %v1853 = vpop.f32.mrb[0].mxu0
    %v1854 = vadd.f32 %v1550, %v1853
    %v1855 = vpop.f32.mrb[0].mxu0
    %1856 = vmatprep.mubr.bf16.mxu0 %v1430
    %1857 = vmatmul.mubr.bf16.gmra.mrb[0].mxu0 %v1429
    %v1858 = vpop.f32.mrb[0].mxu0
    %v1859 = vadd.f32 %v1550, %v1858
    %v1860 = vpop.f32.mrb[0].mxu0
    %v1861 = vpop.f32.mrb[0].mxu0
    %v1862 = vadd.f32 %v1550, %v1861
    %v1863 = vpop.f32.mrb[0].mxu0
    %1864 = vmatprep.mubr.bf16.mxu0 %v1432
    %1865 = vmatmul.mubr.bf16.gmra.mrb[0].mxu0 %v1431
    %v1866 = vpop.f32.mrb[0].mxu0
    %v1867 = vadd.f32 %v1550, %v1866
    %v1868 = vpop.f32.mrb[0].mxu0
    %v1869 = vpop.f32.mrb[0].mxu0
    %v1870 = vadd.f32 %v1550, %v1869
    %v1871 = vpop.f32.mrb[0].mxu0
    %1872 = vmatprep.mubr.bf16.mxu0 %v1434
    %1873 = vmatmul.mubr.bf16.gmra.mrb[0].mxu0 %v1433
    %v1874 = vpop.f32.mrb[0].mxu0
    %v1875 = vadd.f32 %v1550, %v1874
    %v1876 = vpop.f32.mrb[0].mxu0
    %v1877 = vpop.f32.mrb[0].mxu0
    %v1878 = vadd.f32 %v1550, %v1877
    %v1879 = vpop.f32.mrb[0].mxu0
    %1880 = vmatprep.mubr.bf16.mxu0 %v1436
    %1881 = vmatmul.mubr.bf16.gmra.mrb[0].mxu0 %v1435
    %v1882 = vpop.f32.mrb[0].mxu0
    %v1883 = vadd.f32 %v1550, %v1882
    %v1884 = vpop.f32.mrb[0].mxu0
    %v1885 = vpop.f32.mrb[0].mxu0
    %v1886 = vadd.f32 %v1550, %v1885
    %v1887 = vpop.f32.mrb[0].mxu0
    %1888 = vmatprep.mubr.bf16.mxu0 %v1438
    %1889 = vmatmul.mubr.bf16.gmra.mrb[0].mxu0 %v1437
    %v1890 = vpop.f32.mrb[0].mxu0
    %v1891 = vadd.f32 %v1550, %v1890
    %v1892 = vpop.f32.mrb[0].mxu0
    %v1893 = vpop.f32.mrb[0].mxu0
    %v1894 = vadd.f32 %v1550, %v1893
    %v1895 = vpop.f32.mrb[0].mxu0
    %1896 = vmatprep.mubr.bf16.mxu0 %v1440
    %1897 = vmatmul.mubr.bf16.gmra.mrb[0].mxu0 %v1439
    %v1898 = vpop.f32.mrb[0].mxu0
    %v1899 = vadd.f32 %v1550, %v1898
    %v1900 = vpop.f32.mrb[0].mxu0
    %v1901 = vpop.f32.mrb[0].mxu0
    %v1902 = vadd.f32 %v1550, %v1901
    %v1903 = vpop.f32.mrb[0].mxu0
    %1904 = vmatprep.mubr.bf16.mxu0 %v1442
    %1905 = vmatmul.mubr.bf16.gmra.mrb[0].mxu0 %v1441
    %v1906 = vpop.f32.mrb[0].mxu0
    %v1907 = vadd.f32 %v1550, %v1906
    %v1908 = vpop.f32.mrb[0].mxu0
    %v1909 = vpop.f32.mrb[0].mxu0
    %v1910 = vadd.f32 %v1550, %v1909
    %v1911 = vpop.f32.mrb[0].mxu0
    %1912 = vmatprep.mubr.bf16.mxu0 %v1444
    %1913 = vmatmul.mubr.bf16.gmra.mrb[0].mxu0 %v1443
    %v1914 = vpop.f32.mrb[0].mxu0
    %v1915 = vadd.f32 %v1550, %v1914
    %v1916 = vpop.f32.mrb[0].mxu0
    %v1917 = vpop.f32.mrb[0].mxu0
    %v1918 = vadd.f32 %v1550, %v1917
    %v1919 = vpop.f32.mrb[0].mxu0
    %1920 = vmatprep.mubr.bf16.mxu0 %v1446
    %1921 = vmatmul.mubr.bf16.gmra.mrb[0].mxu0 %v1445
    %v1922 = vpop.f32.mrb[0].mxu0
    %v1923 = vadd.f32 %v1550, %v1922
    %v1924 = vpop.f32.mrb[0].mxu0
    %v1925 = vpop.f32.mrb[0].mxu0
    %v1926 = vadd.f32 %v1550, %v1925
    %v1927 = vpop.f32.mrb[0].mxu0
    %1928 = vmatprep.mubr.bf16.mxu0 %v1448
    %1929 = vmatmul.mubr.bf16.gmra.mrb[0].mxu0 %v1447
    %v1930 = vpop.f32.mrb[0].mxu0
    %v1931 = vadd.f32 %v1550, %v1930
    %v1932 = vpop.f32.mrb[0].mxu0
    %v1933 = vpop.f32.mrb[0].mxu0
    %v1934 = vadd.f32 %v1550, %v1933
    %v1935 = vpop.f32.mrb[0].mxu0
    %1936 = vmatprep.mubr.bf16.mxu0 %v1450
    %1937 = vmatmul.mubr.bf16.gmra.mrb[0].mxu0 %v1449
    %v1938 = vpop.f32.mrb[0].mxu0
    %v1939 = vadd.f32 %v1550, %v1938
    %v1940 = vpop.f32.mrb[0].mxu0
    %v1941 = vpop.f32.mrb[0].mxu0
    %v1942 = vadd.f32 %v1550, %v1941
    %v1943 = vpop.f32.mrb[0].mxu0
    %1944 = vmatprep.mubr.bf16.mxu0 %v1452
    %1945 = vmatmul.mubr.bf16.gmra.mrb[0].mxu0 %v1451
    %v1946 = vpop.f32.mrb[0].mxu0
    %v1947 = vadd.f32 %v1550, %v1946
    %v1948 = vpop.f32.mrb[0].mxu0
    %v1949 = vpop.f32.mrb[0].mxu0
    %v1950 = vadd.f32 %v1550, %v1949
    %v1951 = vpop.f32.mrb[0].mxu0
    %1952 = vmatprep.mubr.bf16.mxu0 %v1454
    %1953 = vmatmul.mubr.bf16.gmra.mrb[0].mxu0 %v1453
    %v1954 = vpop.f32.mrb[0].mxu0
    %v1955 = vadd.f32 %v1550, %v1954
    %v1956 = vpop.f32.mrb[0].mxu0
    %v1957 = vpop.f32.mrb[0].mxu0
    %v1958 = vadd.f32 %v1550, %v1957
    %v1959 = vpop.f32.mrb[0].mxu0
    %1960 = vmatprep.mubr.bf16.mxu0 %v1456
    %1961 = vmatmul.mubr.bf16.gmra.mrb[0].mxu0 %v1455
    %v1962 = vpop.f32.mrb[0].mxu0
    %v1963 = vadd.f32 %v1550, %v1962
    %v1964 = vpop.f32.mrb[0].mxu0
    %v1965 = vpop.f32.mrb[0].mxu0
    %v1966 = vadd.f32 %v1550, %v1965
    %v1967 = vpop.f32.mrb[0].mxu0
    %1968 = vmatprep.mubr.bf16.mxu0 %v1458
    %1969 = vmatmul.mubr.bf16.gmra.mrb[0].mxu0 %v1457
    %v1970 = vpop.f32.mrb[0].mxu0
    %v1971 = vadd.f32 %v1550, %v1970
    %v1972 = vpop.f32.mrb[0].mxu0
    %v1973 = vpop.f32.mrb[0].mxu0
    %v1974 = vadd.f32 %v1550, %v1973
    %v1975 = vpop.f32.mrb[0].mxu0
    %1976 = vmatprep.mubr.bf16.mxu0 %v1460
    %1977 = vmatmul.mubr.bf16.gmra.mrb[0].mxu0 %v1459
    %v1978 = vpop.f32.mrb[0].mxu0
    %v1979 = vadd.f32 %v1550, %v1978
    %v1980 = vpop.f32.mrb[0].mxu0
    %v1981 = vpop.f32.mrb[0].mxu0
    %v1982 = vadd.f32 %v1550, %v1981
    %v1983 = vpop.f32.mrb[0].mxu0
    %1984 = vmatprep.mubr.bf16.mxu0 %v1462
    %1985 = vmatmul.mubr.bf16.gmra.mrb[0].mxu0 %v1461
    %v1986 = vpop.f32.mrb[0].mxu0
    %v1987 = vadd.f32 %v1550, %v1986
    %v1988 = vpop.f32.mrb[0].mxu0
    %v1989 = vpop.f32.mrb[0].mxu0
    %v1990 = vadd.f32 %v1550, %v1989
    %v1991 = vpop.f32.mrb[0].mxu0
    %1992 = vmatprep.mubr.bf16.mxu0 %v1464
    %1993 = vmatmul.mubr.bf16.gmra.mrb[0].mxu0 %v1463
    %v1994 = vpop.f32.mrb[0].mxu0
    %v1995 = vadd.f32 %v1550, %v1994
    %v1996 = vpop.f32.mrb[0].mxu0
    %v1997 = vpop.f32.mrb[0].mxu0
    %v1998 = vadd.f32 %v1550, %v1997
    %v1999 = vpop.f32.mrb[0].mxu0
    %2000 = vmatprep.mubr.bf16.mxu0 %v1466
    %2001 = vmatmul.mubr.bf16.gmra.mrb[0].mxu0 %v1465
    %v2002 = vpop.f32.mrb[0].mxu0
    %v2003 = vadd.f32 %v1550, %v2002
    %v2004 = vpop.f32.mrb[0].mxu0
    %v2005 = vpop.f32.mrb[0].mxu0
    %v2006 = vadd.f32 %v1550, %v2005
    %v2007 = vpop.f32.mrb[0].mxu0
    %2008 = vmatprep.mubr.bf16.mxu0 %v1468
    %2009 = vmatmul.mubr.bf16.gmra.mrb[0].mxu0 %v1467
    %v2010 = vpop.f32.mrb[0].mxu0
    %v2011 = vadd.f32 %v1550, %v2010
    %v2012 = vpop.f32.mrb[0].mxu0
    %v2013 = vpop.f32.mrb[0].mxu0
    %v2014 = vadd.f32 %v1550, %v2013
    %v2015 = vpop.f32.mrb[0].mxu0
    %2016 = vmatprep.mubr.bf16.mxu0 %v1470
    %2017 = vmatmul.mubr.bf16.gmra.mrb[0].mxu0 %v1469
    %v2018 = vpop.f32.mrb[0].mxu0
    %v2019 = vadd.f32 %v1550, %v2018
    %v2020 = vpop.f32.mrb[0].mxu0
    %v2021 = vpop.f32.mrb[0].mxu0
    %v2022 = vadd.f32 %v1550, %v2021
    %v2023 = vpop.f32.mrb[0].mxu0
    %2024 = vmatprep.mubr.bf16.mxu0 %v1472
    %2025 = vmatmul.mubr.bf16.gmra.mrb[0].mxu0 %v1471
    %v2026 = vpop.f32.mrb[0].mxu0
    %v2027 = vadd.f32 %v1550, %v2026
    %v2028 = vpop.f32.mrb[0].mxu0
    %v2029 = vpop.f32.mrb[0].mxu0
    %v2030 = vadd.f32 %v1550, %v2029
    %v2031 = vpop.f32.mrb[0].mxu0
    %2032 = vmatprep.mubr.bf16.mxu0 %v1474
    %2033 = vmatmul.mubr.bf16.gmra.mrb[0].mxu0 %v1473
    %v2034 = vpop.f32.mrb[0].mxu0
    %v2035 = vadd.f32 %v1550, %v2034
    %v2036 = vpop.f32.mrb[0].mxu0
    %v2037 = vpop.f32.mrb[0].mxu0
    %v2038 = vadd.f32 %v1550, %v2037
    %v2039 = vpop.f32.mrb[0].mxu0
    %2040 = vmatprep.mubr.bf16.mxu0 %v1476
    %2041 = vmatmul.mubr.bf16.gmra.mrb[0].mxu0 %v1475
    %v2042 = vpop.f32.mrb[0].mxu0
    %v2043 = vadd.f32 %v1550, %v2042
    %v2044 = vpop.f32.mrb[0].mxu0
    %v2045 = vpop.f32.mrb[0].mxu0
    %v2046 = vadd.f32 %v1550, %v2045
    %v2047 = vpop.f32.mrb[0].mxu0
    %2048 = vmatprep.mubr.bf16.mxu0 %v1478
    %2049 = vmatmul.mubr.bf16.gmra.mrb[0].mxu0 %v1477
    %v2050 = vpop.f32.mrb[0].mxu0
    %v2051 = vadd.f32 %v1550, %v2050
    %v2052 = vpop.f32.mrb[0].mxu0
    %v2053 = vpop.f32.mrb[0].mxu0
    %v2054 = vadd.f32 %v1550, %v2053
    %v2055 = vpop.f32.mrb[0].mxu0
    %2056 = vmatprep.mubr.bf16.mxu0 %v1480
    %2057 = vmatmul.mubr.bf16.gmra.mrb[0].mxu0 %v1479
    %v2058 = vpop.f32.mrb[0].mxu0
    %v2059 = vadd.f32 %v1550, %v2058
    %v2060 = vpop.f32.mrb[0].mxu0
    %v2061 = vpop.f32.mrb[0].mxu0
    %v2062 = vadd.f32 %v1550, %v2061
    %v2063 = vpop.f32.mrb[0].mxu0
    %2064 = vmatprep.mubr.bf16.mxu0 %v1482
    %2065 = vmatmul.mubr.bf16.gmra.mrb[0].mxu0 %v1481
    %v2066 = vpop.f32.mrb[0].mxu0
    %v2067 = vadd.f32 %v1550, %v2066
    %v2068 = vpop.f32.mrb[0].mxu0
    %v2069 = vpop.f32.mrb[0].mxu0
    %v2070 = vadd.f32 %v1550, %v2069
    %v2071 = vpop.f32.mrb[0].mxu0
    %2072 = vmatprep.mubr.bf16.mxu0 %v1484
    %2073 = vmatmul.mubr.bf16.gmra.mrb[0].mxu0 %v1483
    %v2074 = vpop.f32.mrb[0].mxu0
    %v2075 = vadd.f32 %v1550, %v2074
    %v2076 = vpop.f32.mrb[0].mxu0
    %v2077 = vpop.f32.mrb[0].mxu0
    %v2078 = vadd.f32 %v1550, %v2077
    %v2079 = vpop.f32.mrb[0].mxu0
    %2080 = vmatprep.mubr.bf16.mxu0 %v1486
    %2081 = vmatmul.mubr.bf16.gmra.mrb[0].mxu0 %v1485
    %v2082 = vpop.f32.mrb[0].mxu0
    %v2083 = vadd.f32 %v1550, %v2082
    %v2084 = vpop.f32.mrb[0].mxu0
    %v2085 = vpop.f32.mrb[0].mxu0
    %v2086 = vadd.f32 %v1550, %v2085
    %v2087 = vpop.f32.mrb[0].mxu0
    %2088 = vmatprep.mubr.bf16.mxu0 %v1488
    %2089 = vmatmul.mubr.bf16.gmra.mrb[0].mxu0 %v1487
    %v2090 = vpop.f32.mrb[0].mxu0
    %v2091 = vadd.f32 %v1550, %v2090
    %v2092 = vpop.f32.mrb[0].mxu0
    %v2093 = vpop.f32.mrb[0].mxu0
    %v2094 = vadd.f32 %v1550, %v2093
    %v2095 = vpop.f32.mrb[0].mxu0
    %2096 = vmatprep.mubr.bf16.mxu0 %v1490
    %2097 = vmatmul.mubr.bf16.gmra.mrb[0].mxu0 %v1489
    %v2098 = vpop.f32.mrb[0].mxu0
    %v2099 = vadd.f32 %v1550, %v2098
    %v2100 = vpop.f32.mrb[0].mxu0
    %v2101 = vpop.f32.mrb[0].mxu0
    %v2102 = vadd.f32 %v1550, %v2101
    %v2103 = vpop.f32.mrb[0].mxu0
    %2104 = vmatprep.mubr.bf16.mxu0 %v1492
    %2105 = vmatmul.mubr.bf16.gmra.mrb[0].mxu0 %v1491
    %v2106 = vpop.f32.mrb[0].mxu0
    %v2107 = vadd.f32 %v1550, %v2106
    %v2108 = vpop.f32.mrb[0].mxu0
    %v2109 = vpop.f32.mrb[0].mxu0
    %v2110 = vadd.f32 %v1550, %v2109
    %v2111 = vpop.f32.mrb[0].mxu0
    %2112 = vmatprep.mubr.bf16.mxu0 %v1494
    %2113 = vmatmul.mubr.bf16.gmra.mrb[0].mxu0 %v1493
    %v2114 = vpop.f32.mrb[0].mxu0
    %v2115 = vadd.f32 %v1550, %v2114
    %v2116 = vpop.f32.mrb[0].mxu0
    %v2117 = vpop.f32.mrb[0].mxu0
    %v2118 = vadd.f32 %v1550, %v2117
    %v2119 = vpop.f32.mrb[0].mxu0
    %2120 = vmatprep.mubr.bf16.mxu0 %v1496
    %2121 = vmatmul.mubr.bf16.gmra.mrb[0].mxu0 %v1495
    %v2122 = vpop.f32.mrb[0].mxu0
    %v2123 = vadd.f32 %v1550, %v2122
    %v2124 = vpop.f32.mrb[0].mxu0
    %v2125 = vpop.f32.mrb[0].mxu0
    %v2126 = vadd.f32 %v1550, %v2125
    %v2127 = vpop.f32.mrb[0].mxu0
    %2128 = vmatprep.mubr.bf16.mxu0 %v1498
    %2129 = vmatmul.mubr.bf16.gmra.mrb[0].mxu0 %v1497
    %v2130 = vpop.f32.mrb[0].mxu0
    %v2131 = vadd.f32 %v1550, %v2130
    %v2132 = vpop.f32.mrb[0].mxu0
    %v2133 = vpop.f32.mrb[0].mxu0
    %v2134 = vadd.f32 %v1550, %v2133
    %v2135 = vpop.f32.mrb[0].mxu0
    %2136 = vmatprep.mubr.bf16.mxu0 %v1500
    %2137 = vmatmul.mubr.bf16.gmra.mrb[0].mxu0 %v1499
    %v2138 = vpop.f32.mrb[0].mxu0
    %v2139 = vadd.f32 %v1550, %v2138
    %v2140 = vpop.f32.mrb[0].mxu0
    %v2141 = vpop.f32.mrb[0].mxu0
    %v2142 = vadd.f32 %v1550, %v2141
    %v2143 = vpop.f32.mrb[0].mxu0
    %2144 = vmatprep.mubr.bf16.mxu0 %v1502
    %2145 = vmatmul.mubr.bf16.gmra.mrb[0].mxu0 %v1501
    %v2146 = vpop.f32.mrb[0].mxu0
    %v2147 = vadd.f32 %v1550, %v2146
    %v2148 = vpop.f32.mrb[0].mxu0
    %v2149 = vpop.f32.mrb[0].mxu0
    %v2150 = vadd.f32 %v1550, %v2149
    %v2151 = vpop.f32.mrb[0].mxu0
    %2152 = vmatprep.mubr.bf16.mxu0 %v1504
    %2153 = vmatmul.mubr.bf16.gmra.mrb[0].mxu0 %v1503
    %v2154 = vpop.f32.mrb[0].mxu0
    %v2155 = vadd.f32 %v1550, %v2154
    %v2156 = vpop.f32.mrb[0].mxu0
    %v2157 = vpop.f32.mrb[0].mxu0
    %v2158 = vadd.f32 %v1550, %v2157
    %v2159 = vpop.f32.mrb[0].mxu0
    %2160 = vmatprep.mubr.bf16.mxu0 %v1506
    %2161 = vmatmul.mubr.bf16.gmra.mrb[0].mxu0 %v1505
    %v2162 = vpop.f32.mrb[0].mxu0
    %v2163 = vadd.f32 %v1550, %v2162
    %v2164 = vpop.f32.mrb[0].mxu0
    %v2165 = vpop.f32.mrb[0].mxu0
    %v2166 = vadd.f32 %v1550, %v2165
    %v2167 = vpop.f32.mrb[0].mxu0
    %2168 = vmatprep.mubr.bf16.mxu0 %v1508
    %2169 = vmatmul.mubr.bf16.gmra.mrb[0].mxu0 %v1507
    %v2170 = vpop.f32.mrb[0].mxu0
    %v2171 = vadd.f32 %v1550, %v2170
    %v2172 = vpop.f32.mrb[0].mxu0
    %v2173 = vpop.f32.mrb[0].mxu0
    %v2174 = vadd.f32 %v1550, %v2173
    %v2175 = vpop.f32.mrb[0].mxu0
    %2176 = vmatprep.mubr.bf16.mxu0 %v1510
    %2177 = vmatmul.mubr.bf16.gmra.mrb[0].mxu0 %v1509
    %v2178 = vpop.f32.mrb[0].mxu0
    %v2179 = vadd.f32 %v1550, %v2178
    %v2180 = vpop.f32.mrb[0].mxu0
    %v2181 = vpop.f32.mrb[0].mxu0
    %v2182 = vadd.f32 %v1550, %v2181
    %v2183 = vpop.f32.mrb[0].mxu0
    %2184 = vmatprep.mubr.bf16.mxu0 %v1512
    %2185 = vmatmul.mubr.bf16.gmra.mrb[0].mxu0 %v1511
    %v2186 = vpop.f32.mrb[0].mxu0
    %v2187 = vadd.f32 %v1550, %v2186
    %v2188 = vpop.f32.mrb[0].mxu0
    %v2189 = vpop.f32.mrb[0].mxu0
    %v2190 = vadd.f32 %v1550, %v2189
    %v2191 = vpop.f32.mrb[0].mxu0
    %2192 = vdwg.mxu0
    %v2193 = vmax.f32 %v1683, 0.0
    %v2194 = vmax.f32 %v1686, 0.0
    %v2195 = vmax.f32 %v1691, 0.0
    %v2196 = vmax.f32 %v1694, 0.0
    %v2197 = vmax.f32 %v1699, 0.0
    %v2198 = vmax.f32 %v1702, 0.0
    %v2199 = vmax.f32 %v1707, 0.0
    %v2200 = vmax.f32 %v1710, 0.0
    %v2201 = vmax.f32 %v1715, 0.0
    %v2202 = vmax.f32 %v1718, 0.0
    %v2203 = vmax.f32 %v1723, 0.0
    %v2204 = vmax.f32 %v1726, 0.0
    %v2205 = vmax.f32 %v1731, 0.0
    %v2206 = vmax.f32 %v1734, 0.0
    %v2207 = vmax.f32 %v1739, 0.0
    %v2208 = vmax.f32 %v1742, 0.0
    %v2209 = vmax.f32 %v1747, 0.0
    %v2210 = vmax.f32 %v1750, 0.0
    %v2211 = vmax.f32 %v1755, 0.0
    %v2212 = vmax.f32 %v1758, 0.0
    %v2213 = vmax.f32 %v1763, 0.0
    %v2214 = vmax.f32 %v1766, 0.0
    %v2215 = vmax.f32 %v1771, 0.0
    %v2216 = vmax.f32 %v1774, 0.0
    %v2217 = vmax.f32 %v1779, 0.0
    %v2218 = vmax.f32 %v1782, 0.0
    %v2219 = vmax.f32 %v1787, 0.0
    %v2220 = vmax.f32 %v1790, 0.0
    %v2221 = vmax.f32 %v1795, 0.0
    %v2222 = vmax.f32 %v1798, 0.0
    %v2223 = vmax.f32 %v1803, 0.0
    %v2224 = vmax.f32 %v1806, 0.0
    %v2225 = vmax.f32 %v1811, 0.0
    %v2226 = vmax.f32 %v1814, 0.0
    %v2227 = vmax.f32 %v1819, 0.0
    %v2228 = vmax.f32 %v1822, 0.0
    %v2229 = vmax.f32 %v1827, 0.0
    %v2230 = vmax.f32 %v1830, 0.0
    %v2231 = vmax.f32 %v1835, 0.0
    %v2232 = vmax.f32 %v1838, 0.0
    %v2233 = vmax.f32 %v1843, 0.0
    %v2234 = vmax.f32 %v1846, 0.0
    %v2235 = vmax.f32 %v1851, 0.0
    %v2236 = vmax.f32 %v1854, 0.0
    %v2237 = vmax.f32 %v1859, 0.0
    %v2238 = vmax.f32 %v1862, 0.0
    %v2239 = vmax.f32 %v1867, 0.0
    %v2240 = vmax.f32 %v1870, 0.0
    %v2241 = vmax.f32 %v1875, 0.0
    %v2242 = vmax.f32 %v1878, 0.0
    %v2243 = vmax.f32 %v1883, 0.0
    %v2244 = vmax.f32 %v1886, 0.0
    %v2245 = vmax.f32 %v1891, 0.0
    %v2246 = vmax.f32 %v1894, 0.0
    %v2247 = vmax.f32 %v1899, 0.0
    %v2248 = vmax.f32 %v1902, 0.0
    %v2249 = vmax.f32 %v1907, 0.0
    %v2250 = vmax.f32 %v1910, 0.0
    %v2251 = vmax.f32 %v1915, 0.0
    %v2252 = vmax.f32 %v1918, 0.0
    %v2253 = vmax.f32 %v1923, 0.0
    %v2254 = vmax.f32 %v1926, 0.0
    %v2255 = vmax.f32 %v1931, 0.0
    %v2256 = vmax.f32 %v1934, 0.0
    %v2257 = vmax.f32 %v1939, 0.0
    %v2258 = vmax.f32 %v1942, 0.0
    %v2259 = vmax.f32 %v1947, 0.0
    %v2260 = vmax.f32 %v1950, 0.0
    %v2261 = vmax.f32 %v1955, 0.0
    %v2262 = vmax.f32 %v1958, 0.0
    %v2263 = vmax.f32 %v1963, 0.0
    %v2264 = vmax.f32 %v1966, 0.0
    %v2265 = vmax.f32 %v1971, 0.0
    %v2266 = vmax.f32 %v1974, 0.0
    %v2267 = vmax.f32 %v1979, 0.0
    %v2268 = vmax.f32 %v1982, 0.0
    %v2269 = vmax.f32 %v1987, 0.0
    %v2270 = vmax.f32 %v1990, 0.0
    %v2271 = vmax.f32 %v1995, 0.0
    %v2272 = vmax.f32 %v1998, 0.0
    %v2273 = vmax.f32 %v2003, 0.0
    %v2274 = vmax.f32 %v2006, 0.0
    %v2275 = vmax.f32 %v2011, 0.0
    %v2276 = vmax.f32 %v2014, 0.0
    %v2277 = vmax.f32 %v2019, 0.0
    %v2278 = vmax.f32 %v2022, 0.0
    %v2279 = vmax.f32 %v2027, 0.0
    %v2280 = vmax.f32 %v2030, 0.0
    %v2281 = vmax.f32 %v2035, 0.0
    %v2282 = vmax.f32 %v2038, 0.0
    %v2283 = vmax.f32 %v2043, 0.0
    %v2284 = vmax.f32 %v2046, 0.0
    %v2285 = vmax.f32 %v2051, 0.0
    %v2286 = vmax.f32 %v2054, 0.0
    %v2287 = vmax.f32 %v2059, 0.0
    %v2288 = vmax.f32 %v2062, 0.0
    %v2289 = vmax.f32 %v2067, 0.0
    %v2290 = vmax.f32 %v2070, 0.0
    %v2291 = vmax.f32 %v2075, 0.0
    %v2292 = vmax.f32 %v2078, 0.0
    %v2293 = vmax.f32 %v2083, 0.0
    %v2294 = vmax.f32 %v2086, 0.0
    %v2295 = vmax.f32 %v2091, 0.0
    %v2296 = vmax.f32 %v2094, 0.0
    %v2297 = vmax.f32 %v2099, 0.0
    %v2298 = vmax.f32 %v2102, 0.0
    %v2299 = vmax.f32 %v2107, 0.0
    %v2300 = vmax.f32 %v2110, 0.0
    %v2301 = vmax.f32 %v2115, 0.0
    %v2302 = vmax.f32 %v2118, 0.0
    %v2303 = vmax.f32 %v2123, 0.0
    %v2304 = vmax.f32 %v2126, 0.0
    %v2305 = vmax.f32 %v2131, 0.0
    %v2306 = vmax.f32 %v2134, 0.0
    %v2307 = vmax.f32 %v2139, 0.0
    %v2308 = vmax.f32 %v2142, 0.0
    %v2309 = vmax.f32 %v2147, 0.0
    %v2310 = vmax.f32 %v2150, 0.0
    %v2311 = vmax.f32 %v2155, 0.0
    %v2312 = vmax.f32 %v2158, 0.0
    %v2313 = vmax.f32 %v2163, 0.0
    %v2314 = vmax.f32 %v2166, 0.0
    %v2315 = vmax.f32 %v2171, 0.0
    %v2316 = vmax.f32 %v2174, 0.0
    %v2317 = vmax.f32 %v2179, 0.0
    %v2318 = vmax.f32 %v2182, 0.0
    %v2319 = vmax.f32 %v2187, 0.0
    %v2320 = vmax.f32 %v2190, 0.0
    %v2321 = vpack.c.bf16 %v2194, %v2193
    %v2322 = vpack.c.bf16 %v2196, %v2195
    %v2323 = vpack.c.bf16 %v2198, %v2197
    %v2324 = vpack.c.bf16 %v2200, %v2199
    %v2325 = vpack.c.bf16 %v2202, %v2201
    %v2326 = vpack.c.bf16 %v2204, %v2203
    %v2327 = vpack.c.bf16 %v2206, %v2205
    %v2328 = vpack.c.bf16 %v2208, %v2207
    %v2329 = vpack.c.bf16 %v2210, %v2209
    %v2330 = vpack.c.bf16 %v2212, %v2211
    %v2331 = vpack.c.bf16 %v2214, %v2213
    %v2332 = vpack.c.bf16 %v2216, %v2215
    %v2333 = vpack.c.bf16 %v2218, %v2217
    %v2334 = vpack.c.bf16 %v2220, %v2219
    %v2335 = vpack.c.bf16 %v2222, %v2221
    %v2336 = vpack.c.bf16 %v2224, %v2223
    %v2337 = vpack.c.bf16 %v2226, %v2225
    %v2338 = vpack.c.bf16 %v2228, %v2227
    %v2339 = vpack.c.bf16 %v2230, %v2229
    %v2340 = vpack.c.bf16 %v2232, %v2231
    %v2341 = vpack.c.bf16 %v2234, %v2233
    %v2342 = vpack.c.bf16 %v2236, %v2235
    %v2343 = vpack.c.bf16 %v2238, %v2237
    %v2344 = vpack.c.bf16 %v2240, %v2239
    %v2345 = vpack.c.bf16 %v2242, %v2241
    %v2346 = vpack.c.bf16 %v2244, %v2243
    %v2347 = vpack.c.bf16 %v2246, %v2245
    %v2348 = vpack.c.bf16 %v2248, %v2247
    %v2349 = vpack.c.bf16 %v2250, %v2249
    %v2350 = vpack.c.bf16 %v2252, %v2251
    %v2351 = vpack.c.bf16 %v2254, %v2253
    %v2352 = vpack.c.bf16 %v2256, %v2255
    %v2353 = vpack.c.bf16 %v2258, %v2257
    %v2354 = vpack.c.bf16 %v2260, %v2259
    %v2355 = vpack.c.bf16 %v2262, %v2261
    %v2356 = vpack.c.bf16 %v2264, %v2263
    %v2357 = vpack.c.bf16 %v2266, %v2265
    %v2358 = vpack.c.bf16 %v2268, %v2267
    %v2359 = vpack.c.bf16 %v2270, %v2269
    %v2360 = vpack.c.bf16 %v2272, %v2271
    %v2361 = vpack.c.bf16 %v2274, %v2273
    %v2362 = vpack.c.bf16 %v2276, %v2275
    %v2363 = vpack.c.bf16 %v2278, %v2277
    %v2364 = vpack.c.bf16 %v2280, %v2279
    %v2365 = vpack.c.bf16 %v2282, %v2281
    %v2366 = vpack.c.bf16 %v2284, %v2283
    %v2367 = vpack.c.bf16 %v2286, %v2285
    %v2368 = vpack.c.bf16 %v2288, %v2287
    %v2369 = vpack.c.bf16 %v2290, %v2289
    %v2370 = vpack.c.bf16 %v2292, %v2291
    %v2371 = vpack.c.bf16 %v2294, %v2293
    %v2372 = vpack.c.bf16 %v2296, %v2295
    %v2373 = vpack.c.bf16 %v2298, %v2297
    %v2374 = vpack.c.bf16 %v2300, %v2299
    %v2375 = vpack.c.bf16 %v2302, %v2301
    %v2376 = vpack.c.bf16 %v2304, %v2303
    %v2377 = vpack.c.bf16 %v2306, %v2305
    %v2378 = vpack.c.bf16 %v2308, %v2307
    %v2379 = vpack.c.bf16 %v2310, %v2309
    %v2380 = vpack.c.bf16 %v2312, %v2311
    %v2381 = vpack.c.bf16 %v2314, %v2313
    %v2382 = vpack.c.bf16 %v2316, %v2315
    %v2383 = vpack.c.bf16 %v2318, %v2317
    %v2384 = vpack.c.bf16 %v2320, %v2319
    %v2385 = vld [vmem:[%s5] sm:$0xf]
    %v2386 = vld [vmem:[%s5 + $0x4] sm:$0xf]
    %v2387 = vld [vmem:[%s5 + $0x8] sm:$0xf]
    %v2388 = vld [vmem:[%s5 + $0xc] sm:$0xf]
    %v2389 = vld [vmem:[%s5 + $0x10] sm:$0xf]
    %v2390 = vld [vmem:[%s5 + $0x14] sm:$0xf]
    %v2391 = vld [vmem:[%s5 + $0x18] sm:$0xf]
    %v2392 = vld [vmem:[%s5 + $0x1c] sm:$0xf]
    %v2393 = vld [vmem:[%s5 + $0x20] sm:$0xf]
    %v2394 = vld [vmem:[%s5 + $0x24] sm:$0xf]
    %v2395 = vld [vmem:[%s5 + $0x28] sm:$0xf]
    %v2396 = vld [vmem:[%s5 + $0x2c] sm:$0xf]
    %v2397 = vld [vmem:[%s5 + $0x30] sm:$0xf]
    %v2398 = vld [vmem:[%s5 + $0x34] sm:$0xf]
    %v2399 = vld [vmem:[%s5 + $0x38] sm:$0xf]
    %v2400 = vld [vmem:[%s5 + $0x3c] sm:$0xf]
    %v2401 = vld [vmem:[%s6] sm:$0x1]
    %v2403 = vlaneseq
    %v2404 = vshrl.u32 %v2403, 7
    %v2405 = vsub.s32 0, %v2404
    %v2406 = vrot.slane %v2401, %v2405
    %v2424 = vunpack.c.l.b16 %v2385
    %v2425 = vunpack.c.l.b16 %v2386
    %v2426 = vunpack.c.l.b16 %v2387
    %v2427 = vunpack.c.l.b16 %v2388
    %v2428 = vunpack.c.l.b16 %v2389
    %v2429 = vunpack.c.l.b16 %v2390
    %v2430 = vunpack.c.l.b16 %v2391
    %v2431 = vunpack.c.l.b16 %v2392
    %v2432 = vunpack.c.l.b16 %v2393
    %v2433 = vunpack.c.l.b16 %v2394
    %v2434 = vunpack.c.l.b16 %v2395
    %v2435 = vunpack.c.l.b16 %v2396
    %v2436 = vunpack.c.l.b16 %v2397
    %v2437 = vunpack.c.l.b16 %v2398
    %v2438 = vunpack.c.l.b16 %v2399
    %v2439 = vunpack.c.l.b16 %v2400
    %v2440 = vpack.c.b16 %v2425, %v2424
    %v2441 = vpack.c.b16 %v2427, %v2426
    %v2442 = vpack.c.b16 %v2429, %v2428
    %v2443 = vpack.c.b16 %v2431, %v2430
    %v2444 = vpack.c.b16 %v2433, %v2432
    %v2445 = vpack.c.b16 %v2435, %v2434
    %v2446 = vpack.c.b16 %v2437, %v2436
    %v2447 = vpack.c.b16 %v2439, %v2438
    %2456 = vmatprep.subr.bf16.mxu0 0
    %2457 = vmatpush1.bf16.msra.mxu0 %v2440
    %2458 = vmatprep.subr.bf16.mxu0 0
    %2459 = vmatpush1.bf16.msra.mxu0 %v2441
    %2460 = vmatprep.subr.bf16.mxu0 0
    %2461 = vmatpush1.bf16.msra.mxu0 %v2442
    %2462 = vmatprep.subr.bf16.mxu0 0
    %2463 = vmatpush1.bf16.msra.mxu0 %v2443
    %2464 = vmatprep.subr.bf16.mxu0 0
    %2465 = vmatpush1.bf16.msra.mxu0 %v2444
    %2466 = vmatprep.subr.bf16.mxu0 0
    %2467 = vmatpush1.bf16.msra.mxu0 %v2445
    %2468 = vmatprep.subr.bf16.mxu0 0
    %2469 = vmatpush1.bf16.msra.mxu0 %v2446
    %2470 = vmatprep.subr.bf16.mxu0 0
    %2471 = vmatpush1.bf16.msra.mxu0 %v2447
    %2472 = vmatprep.subr.bf16.mxu0 0
    %2473 = vmatpush1.bf16.msra.mxu0 0
    %2474 = vmatprep.subr.bf16.mxu0 0
    %2475 = vmatpush1.bf16.msra.mxu0 0
    %2476 = vmatprep.subr.bf16.mxu0 0
    %2477 = vmatpush1.bf16.msra.mxu0 0
    %2478 = vmatprep.subr.bf16.mxu0 0
    %2479 = vmatpush1.bf16.msra.mxu0 0
    %2480 = vmatprep.subr.bf16.mxu0 0
    %2481 = vmatpush1.bf16.msra.mxu0 0
    %2482 = vmatprep.subr.bf16.mxu0 0
    %2483 = vmatpush1.bf16.msra.mxu0 0
    %2484 = vmatprep.subr.bf16.mxu0 0
    %2485 = vmatpush1.bf16.msra.mxu0 0
    %2486 = vmatprep.subr.bf16.mxu0 0
    %2487 = vmatpush1.bf16.msra.mxu0 0
    %2488 = vmatprep.mubr.bf16.mxu0 0
    %2489 = vmatmul.mubr.bf16.gmra.mrb[0].mxu0 %v2321
    %v2490 = vpop.f32.mrb[0].mxu0
    %v2491 = vadd.f32 %v2406, %v2490
    %v2492 = vpop.f32.mrb[0].mxu0
    %v2493 = vpop.f32.mrb[0].mxu0
    %v2494 = vadd.f32 %v2406, %v2493
    %v2495 = vpop.f32.mrb[0].mxu0
    %2496 = vmatprep.mubr.bf16.mxu0 0
    %2497 = vmatmul.mubr.bf16.gmra.mrb[0].mxu0 %v2322
    %v2498 = vpop.f32.mrb[0].mxu0
    %v2499 = vadd.f32 %v2406, %v2498
    %v2500 = vpop.f32.mrb[0].mxu0
    %v2501 = vpop.f32.mrb[0].mxu0
    %v2502 = vadd.f32 %v2406, %v2501
    %v2503 = vpop.f32.mrb[0].mxu0
    %2504 = vmatprep.mubr.bf16.mxu0 0
    %2505 = vmatmul.mubr.bf16.gmra.mrb[0].mxu0 %v2323
    %v2506 = vpop.f32.mrb[0].mxu0
    %v2507 = vadd.f32 %v2406, %v2506
    %v2508 = vpop.f32.mrb[0].mxu0
    %v2509 = vpop.f32.mrb[0].mxu0
    %v2510 = vadd.f32 %v2406, %v2509
    %v2511 = vpop.f32.mrb[0].mxu0
    %2512 = vmatprep.mubr.bf16.mxu0 0
    %2513 = vmatmul.mubr.bf16.gmra.mrb[0].mxu0 %v2324
    %v2514 = vpop.f32.mrb[0].mxu0
    %v2515 = vadd.f32 %v2406, %v2514
    %v2516 = vpop.f32.mrb[0].mxu0
    %v2517 = vpop.f32.mrb[0].mxu0
    %v2518 = vadd.f32 %v2406, %v2517
    %v2519 = vpop.f32.mrb[0].mxu0
    %2520 = vmatprep.mubr.bf16.mxu0 0
    %2521 = vmatmul.mubr.bf16.gmra.mrb[0].mxu0 %v2325
    %v2522 = vpop.f32.mrb[0].mxu0
    %v2523 = vadd.f32 %v2406, %v2522
    %v2524 = vpop.f32.mrb[0].mxu0
    %v2525 = vpop.f32.mrb[0].mxu0
    %v2526 = vadd.f32 %v2406, %v2525
    %v2527 = vpop.f32.mrb[0].mxu0
    %2528 = vmatprep.mubr.bf16.mxu0 0
    %2529 = vmatmul.mubr.bf16.gmra.mrb[0].mxu0 %v2326
    %v2530 = vpop.f32.mrb[0].mxu0
    %v2531 = vadd.f32 %v2406, %v2530
    %v2532 = vpop.f32.mrb[0].mxu0
    %v2533 = vpop.f32.mrb[0].mxu0
    %v2534 = vadd.f32 %v2406, %v2533
    %v2535 = vpop.f32.mrb[0].mxu0
    %2536 = vmatprep.mubr.bf16.mxu0 0
    %2537 = vmatmul.mubr.bf16.gmra.mrb[0].mxu0 %v2327
    %v2538 = vpop.f32.mrb[0].mxu0
    %v2539 = vadd.f32 %v2406, %v2538
    %v2540 = vpop.f32.mrb[0].mxu0
    %v2541 = vpop.f32.mrb[0].mxu0
    %v2542 = vadd.f32 %v2406, %v2541
    %v2543 = vpop.f32.mrb[0].mxu0
    %2544 = vmatprep.mubr.bf16.mxu0 0
    %2545 = vmatmul.mubr.bf16.gmra.mrb[0].mxu0 %v2328
    %v2546 = vpop.f32.mrb[0].mxu0
    %v2547 = vadd.f32 %v2406, %v2546
    %v2548 = vpop.f32.mrb[0].mxu0
    %v2549 = vpop.f32.mrb[0].mxu0
    %v2550 = vadd.f32 %v2406, %v2549
    %v2551 = vpop.f32.mrb[0].mxu0
    %2552 = vmatprep.mubr.bf16.mxu0 0
    %2553 = vmatmul.mubr.bf16.gmra.mrb[0].mxu0 %v2329
    %v2554 = vpop.f32.mrb[0].mxu0
    %v2555 = vadd.f32 %v2406, %v2554
    %v2556 = vpop.f32.mrb[0].mxu0
    %v2557 = vpop.f32.mrb[0].mxu0
    %v2558 = vadd.f32 %v2406, %v2557
    %v2559 = vpop.f32.mrb[0].mxu0
    %2560 = vmatprep.mubr.bf16.mxu0 0
    %2561 = vmatmul.mubr.bf16.gmra.mrb[0].mxu0 %v2330
    %v2562 = vpop.f32.mrb[0].mxu0
    %v2563 = vadd.f32 %v2406, %v2562
    %v2564 = vpop.f32.mrb[0].mxu0
    %v2565 = vpop.f32.mrb[0].mxu0
    %v2566 = vadd.f32 %v2406, %v2565
    %v2567 = vpop.f32.mrb[0].mxu0
    %2568 = vmatprep.mubr.bf16.mxu0 0
    %2569 = vmatmul.mubr.bf16.gmra.mrb[0].mxu0 %v2331
    %v2570 = vpop.f32.mrb[0].mxu0
    %v2571 = vadd.f32 %v2406, %v2570
    %v2572 = vpop.f32.mrb[0].mxu0
    %v2573 = vpop.f32.mrb[0].mxu0
    %v2574 = vadd.f32 %v2406, %v2573
    %v2575 = vpop.f32.mrb[0].mxu0
    %2576 = vmatprep.mubr.bf16.mxu0 0
    %2577 = vmatmul.mubr.bf16.gmra.mrb[0].mxu0 %v2332
    %v2578 = vpop.f32.mrb[0].mxu0
    %v2579 = vadd.f32 %v2406, %v2578
    %v2580 = vpop.f32.mrb[0].mxu0
    %v2581 = vpop.f32.mrb[0].mxu0
    %v2582 = vadd.f32 %v2406, %v2581
    %v2583 = vpop.f32.mrb[0].mxu0
    %2584 = vmatprep.mubr.bf16.mxu0 0
    %2585 = vmatmul.mubr.bf16.gmra.mrb[0].mxu0 %v2333
    %v2586 = vpop.f32.mrb[0].mxu0
    %v2587 = vadd.f32 %v2406, %v2586
    %v2588 = vpop.f32.mrb[0].mxu0
    %v2589 = vpop.f32.mrb[0].mxu0
    %v2590 = vadd.f32 %v2406, %v2589
    %v2591 = vpop.f32.mrb[0].mxu0
    %2592 = vmatprep.mubr.bf16.mxu0 0
    %2593 = vmatmul.mubr.bf16.gmra.mrb[0].mxu0 %v2334
    %v2594 = vpop.f32.mrb[0].mxu0
    %v2595 = vadd.f32 %v2406, %v2594
    %v2596 = vpop.f32.mrb[0].mxu0
    %v2597 = vpop.f32.mrb[0].mxu0
    %v2598 = vadd.f32 %v2406, %v2597
    %v2599 = vpop.f32.mrb[0].mxu0
    %2600 = vmatprep.mubr.bf16.mxu0 0
    %2601 = vmatmul.mubr.bf16.gmra.mrb[0].mxu0 %v2335
    %v2602 = vpop.f32.mrb[0].mxu0
    %v2603 = vadd.f32 %v2406, %v2602
    %v2604 = vpop.f32.mrb[0].mxu0
    %v2605 = vpop.f32.mrb[0].mxu0
    %v2606 = vadd.f32 %v2406, %v2605
    %v2607 = vpop.f32.mrb[0].mxu0
    %2608 = vmatprep.mubr.bf16.mxu0 0
    %2609 = vmatmul.mubr.bf16.gmra.mrb[0].mxu0 %v2336
    %v2610 = vpop.f32.mrb[0].mxu0
    %v2611 = vadd.f32 %v2406, %v2610
    %v2612 = vpop.f32.mrb[0].mxu0
    %v2613 = vpop.f32.mrb[0].mxu0
    %v2614 = vadd.f32 %v2406, %v2613
    %v2615 = vpop.f32.mrb[0].mxu0
    %2616 = vmatprep.mubr.bf16.mxu0 0
    %2617 = vmatmul.mubr.bf16.gmra.mrb[0].mxu0 %v2337
    %v2618 = vpop.f32.mrb[0].mxu0
    %v2619 = vadd.f32 %v2406, %v2618
    %v2620 = vpop.f32.mrb[0].mxu0
    %v2621 = vpop.f32.mrb[0].mxu0
    %v2622 = vadd.f32 %v2406, %v2621
    %v2623 = vpop.f32.mrb[0].mxu0
    %2624 = vmatprep.mubr.bf16.mxu0 0
    %2625 = vmatmul.mubr.bf16.gmra.mrb[0].mxu0 %v2338
    %v2626 = vpop.f32.mrb[0].mxu0
    %v2627 = vadd.f32 %v2406, %v2626
    %v2628 = vpop.f32.mrb[0].mxu0
    %v2629 = vpop.f32.mrb[0].mxu0
    %v2630 = vadd.f32 %v2406, %v2629
    %v2631 = vpop.f32.mrb[0].mxu0
    %2632 = vmatprep.mubr.bf16.mxu0 0
    %2633 = vmatmul.mubr.bf16.gmra.mrb[0].mxu0 %v2339
    %v2634 = vpop.f32.mrb[0].mxu0
    %v2635 = vadd.f32 %v2406, %v2634
    %v2636 = vpop.f32.mrb[0].mxu0
    %v2637 = vpop.f32.mrb[0].mxu0
    %v2638 = vadd.f32 %v2406, %v2637
    %v2639 = vpop.f32.mrb[0].mxu0
    %2640 = vmatprep.mubr.bf16.mxu0 0
    %2641 = vmatmul.mubr.bf16.gmra.mrb[0].mxu0 %v2340
    %v2642 = vpop.f32.mrb[0].mxu0
    %v2643 = vadd.f32 %v2406, %v2642
    %v2644 = vpop.f32.mrb[0].mxu0
    %v2645 = vpop.f32.mrb[0].mxu0
    %v2646 = vadd.f32 %v2406, %v2645
    %v2647 = vpop.f32.mrb[0].mxu0
    %2648 = vmatprep.mubr.bf16.mxu0 0
    %2649 = vmatmul.mubr.bf16.gmra.mrb[0].mxu0 %v2341
    %v2650 = vpop.f32.mrb[0].mxu0
    %v2651 = vadd.f32 %v2406, %v2650
    %v2652 = vpop.f32.mrb[0].mxu0
    %v2653 = vpop.f32.mrb[0].mxu0
    %v2654 = vadd.f32 %v2406, %v2653
    %v2655 = vpop.f32.mrb[0].mxu0
    %2656 = vmatprep.mubr.bf16.mxu0 0
    %2657 = vmatmul.mubr.bf16.gmra.mrb[0].mxu0 %v2342
    %v2658 = vpop.f32.mrb[0].mxu0
    %v2659 = vadd.f32 %v2406, %v2658
    %v2660 = vpop.f32.mrb[0].mxu0
    %v2661 = vpop.f32.mrb[0].mxu0
    %v2662 = vadd.f32 %v2406, %v2661
    %v2663 = vpop.f32.mrb[0].mxu0
    %2664 = vmatprep.mubr.bf16.mxu0 0
    %2665 = vmatmul.mubr.bf16.gmra.mrb[0].mxu0 %v2343
    %v2666 = vpop.f32.mrb[0].mxu0
    %v2667 = vadd.f32 %v2406, %v2666
    %v2668 = vpop.f32.mrb[0].mxu0
    %v2669 = vpop.f32.mrb[0].mxu0
    %v2670 = vadd.f32 %v2406, %v2669
    %v2671 = vpop.f32.mrb[0].mxu0
    %2672 = vmatprep.mubr.bf16.mxu0 0
    %2673 = vmatmul.mubr.bf16.gmra.mrb[0].mxu0 %v2344
    %v2674 = vpop.f32.mrb[0].mxu0
    %v2675 = vadd.f32 %v2406, %v2674
    %v2676 = vpop.f32.mrb[0].mxu0
    %v2677 = vpop.f32.mrb[0].mxu0
    %v2678 = vadd.f32 %v2406, %v2677
    %v2679 = vpop.f32.mrb[0].mxu0
    %2680 = vmatprep.mubr.bf16.mxu0 0
    %2681 = vmatmul.mubr.bf16.gmra.mrb[0].mxu0 %v2345
    %v2682 = vpop.f32.mrb[0].mxu0
    %v2683 = vadd.f32 %v2406, %v2682
    %v2684 = vpop.f32.mrb[0].mxu0
    %v2685 = vpop.f32.mrb[0].mxu0
    %v2686 = vadd.f32 %v2406, %v2685
    %v2687 = vpop.f32.mrb[0].mxu0
    %2688 = vmatprep.mubr.bf16.mxu0 0
    %2689 = vmatmul.mubr.bf16.gmra.mrb[0].mxu0 %v2346
    %v2690 = vpop.f32.mrb[0].mxu0
    %v2691 = vadd.f32 %v2406, %v2690
    %v2692 = vpop.f32.mrb[0].mxu0
    %v2693 = vpop.f32.mrb[0].mxu0
    %v2694 = vadd.f32 %v2406, %v2693
    %v2695 = vpop.f32.mrb[0].mxu0
    %2696 = vmatprep.mubr.bf16.mxu0 0
    %2697 = vmatmul.mubr.bf16.gmra.mrb[0].mxu0 %v2347
    %v2698 = vpop.f32.mrb[0].mxu0
    %v2699 = vadd.f32 %v2406, %v2698
    %v2700 = vpop.f32.mrb[0].mxu0
    %v2701 = vpop.f32.mrb[0].mxu0
    %v2702 = vadd.f32 %v2406, %v2701
    %v2703 = vpop.f32.mrb[0].mxu0
    %2704 = vmatprep.mubr.bf16.mxu0 0
    %2705 = vmatmul.mubr.bf16.gmra.mrb[0].mxu0 %v2348
    %v2706 = vpop.f32.mrb[0].mxu0
    %v2707 = vadd.f32 %v2406, %v2706
    %v2708 = vpop.f32.mrb[0].mxu0
    %v2709 = vpop.f32.mrb[0].mxu0
    %v2710 = vadd.f32 %v2406, %v2709
    %v2711 = vpop.f32.mrb[0].mxu0
    %2712 = vmatprep.mubr.bf16.mxu0 0
    %2713 = vmatmul.mubr.bf16.gmra.mrb[0].mxu0 %v2349
    %v2714 = vpop.f32.mrb[0].mxu0
    %v2715 = vadd.f32 %v2406, %v2714
    %v2716 = vpop.f32.mrb[0].mxu0
    %v2717 = vpop.f32.mrb[0].mxu0
    %v2718 = vadd.f32 %v2406, %v2717
    %v2719 = vpop.f32.mrb[0].mxu0
    %2720 = vmatprep.mubr.bf16.mxu0 0
    %2721 = vmatmul.mubr.bf16.gmra.mrb[0].mxu0 %v2350
    %v2722 = vpop.f32.mrb[0].mxu0
    %v2723 = vadd.f32 %v2406, %v2722
    %v2724 = vpop.f32.mrb[0].mxu0
    %v2725 = vpop.f32.mrb[0].mxu0
    %v2726 = vadd.f32 %v2406, %v2725
    %v2727 = vpop.f32.mrb[0].mxu0
    %2728 = vmatprep.mubr.bf16.mxu0 0
    %2729 = vmatmul.mubr.bf16.gmra.mrb[0].mxu0 %v2351
    %v2730 = vpop.f32.mrb[0].mxu0
    %v2731 = vadd.f32 %v2406, %v2730
    %v2732 = vpop.f32.mrb[0].mxu0
    %v2733 = vpop.f32.mrb[0].mxu0
    %v2734 = vadd.f32 %v2406, %v2733
    %v2735 = vpop.f32.mrb[0].mxu0
    %2736 = vmatprep.mubr.bf16.mxu0 0
    %2737 = vmatmul.mubr.bf16.gmra.mrb[0].mxu0 %v2352
    %v2738 = vpop.f32.mrb[0].mxu0
    %v2739 = vadd.f32 %v2406, %v2738
    %v2740 = vpop.f32.mrb[0].mxu0
    %v2741 = vpop.f32.mrb[0].mxu0
    %v2742 = vadd.f32 %v2406, %v2741
    %v2743 = vpop.f32.mrb[0].mxu0
    %2744 = vmatprep.mubr.bf16.mxu0 0
    %2745 = vmatmul.mubr.bf16.gmra.mrb[0].mxu0 %v2353
    %v2746 = vpop.f32.mrb[0].mxu0
    %v2747 = vadd.f32 %v2406, %v2746
    %v2748 = vpop.f32.mrb[0].mxu0
    %v2749 = vpop.f32.mrb[0].mxu0
    %v2750 = vadd.f32 %v2406, %v2749
    %v2751 = vpop.f32.mrb[0].mxu0
    %2752 = vmatprep.mubr.bf16.mxu0 0
    %2753 = vmatmul.mubr.bf16.gmra.mrb[0].mxu0 %v2354
    %v2754 = vpop.f32.mrb[0].mxu0
    %v2755 = vadd.f32 %v2406, %v2754
    %v2756 = vpop.f32.mrb[0].mxu0
    %v2757 = vpop.f32.mrb[0].mxu0
    %v2758 = vadd.f32 %v2406, %v2757
    %v2759 = vpop.f32.mrb[0].mxu0
    %2760 = vmatprep.mubr.bf16.mxu0 0
    %2761 = vmatmul.mubr.bf16.gmra.mrb[0].mxu0 %v2355
    %v2762 = vpop.f32.mrb[0].mxu0
    %v2763 = vadd.f32 %v2406, %v2762
    %v2764 = vpop.f32.mrb[0].mxu0
    %v2765 = vpop.f32.mrb[0].mxu0
    %v2766 = vadd.f32 %v2406, %v2765
    %v2767 = vpop.f32.mrb[0].mxu0
    %2768 = vmatprep.mubr.bf16.mxu0 0
    %2769 = vmatmul.mubr.bf16.gmra.mrb[0].mxu0 %v2356
    %v2770 = vpop.f32.mrb[0].mxu0
    %v2771 = vadd.f32 %v2406, %v2770
    %v2772 = vpop.f32.mrb[0].mxu0
    %v2773 = vpop.f32.mrb[0].mxu0
    %v2774 = vadd.f32 %v2406, %v2773
    %v2775 = vpop.f32.mrb[0].mxu0
    %2776 = vmatprep.mubr.bf16.mxu0 0
    %2777 = vmatmul.mubr.bf16.gmra.mrb[0].mxu0 %v2357
    %v2778 = vpop.f32.mrb[0].mxu0
    %v2779 = vadd.f32 %v2406, %v2778
    %v2780 = vpop.f32.mrb[0].mxu0
    %v2781 = vpop.f32.mrb[0].mxu0
    %v2782 = vadd.f32 %v2406, %v2781
    %v2783 = vpop.f32.mrb[0].mxu0
    %2784 = vmatprep.mubr.bf16.mxu0 0
    %2785 = vmatmul.mubr.bf16.gmra.mrb[0].mxu0 %v2358
    %v2786 = vpop.f32.mrb[0].mxu0
    %v2787 = vadd.f32 %v2406, %v2786
    %v2788 = vpop.f32.mrb[0].mxu0
    %v2789 = vpop.f32.mrb[0].mxu0
    %v2790 = vadd.f32 %v2406, %v2789
    %v2791 = vpop.f32.mrb[0].mxu0
    %2792 = vmatprep.mubr.bf16.mxu0 0
    %2793 = vmatmul.mubr.bf16.gmra.mrb[0].mxu0 %v2359
    %v2794 = vpop.f32.mrb[0].mxu0
    %v2795 = vadd.f32 %v2406, %v2794
    %v2796 = vpop.f32.mrb[0].mxu0
    %v2797 = vpop.f32.mrb[0].mxu0
    %v2798 = vadd.f32 %v2406, %v2797
    %v2799 = vpop.f32.mrb[0].mxu0
    %2800 = vmatprep.mubr.bf16.mxu0 0
    %2801 = vmatmul.mubr.bf16.gmra.mrb[0].mxu0 %v2360
    %v2802 = vpop.f32.mrb[0].mxu0
    %v2803 = vadd.f32 %v2406, %v2802
    %v2804 = vpop.f32.mrb[0].mxu0
    %v2805 = vpop.f32.mrb[0].mxu0
    %v2806 = vadd.f32 %v2406, %v2805
    %v2807 = vpop.f32.mrb[0].mxu0
    %2808 = vmatprep.mubr.bf16.mxu0 0
    %2809 = vmatmul.mubr.bf16.gmra.mrb[0].mxu0 %v2361
    %v2810 = vpop.f32.mrb[0].mxu0
    %v2811 = vadd.f32 %v2406, %v2810
    %v2812 = vpop.f32.mrb[0].mxu0
    %v2813 = vpop.f32.mrb[0].mxu0
    %v2814 = vadd.f32 %v2406, %v2813
    %v2815 = vpop.f32.mrb[0].mxu0
    %2816 = vmatprep.mubr.bf16.mxu0 0
    %2817 = vmatmul.mubr.bf16.gmra.mrb[0].mxu0 %v2362
    %v2818 = vpop.f32.mrb[0].mxu0
    %v2819 = vadd.f32 %v2406, %v2818
    %v2820 = vpop.f32.mrb[0].mxu0
    %v2821 = vpop.f32.mrb[0].mxu0
    %v2822 = vadd.f32 %v2406, %v2821
    %v2823 = vpop.f32.mrb[0].mxu0
    %2824 = vmatprep.mubr.bf16.mxu0 0
    %2825 = vmatmul.mubr.bf16.gmra.mrb[0].mxu0 %v2363
    %v2826 = vpop.f32.mrb[0].mxu0
    %v2827 = vadd.f32 %v2406, %v2826
    %v2828 = vpop.f32.mrb[0].mxu0
    %v2829 = vpop.f32.mrb[0].mxu0
    %v2830 = vadd.f32 %v2406, %v2829
    %v2831 = vpop.f32.mrb[0].mxu0
    %2832 = vmatprep.mubr.bf16.mxu0 0
    %2833 = vmatmul.mubr.bf16.gmra.mrb[0].mxu0 %v2364
    %v2834 = vpop.f32.mrb[0].mxu0
    %v2835 = vadd.f32 %v2406, %v2834
    %v2836 = vpop.f32.mrb[0].mxu0
    %v2837 = vpop.f32.mrb[0].mxu0
    %v2838 = vadd.f32 %v2406, %v2837
    %v2839 = vpop.f32.mrb[0].mxu0
    %2840 = vmatprep.mubr.bf16.mxu0 0
    %2841 = vmatmul.mubr.bf16.gmra.mrb[0].mxu0 %v2365
    %v2842 = vpop.f32.mrb[0].mxu0
    %v2843 = vadd.f32 %v2406, %v2842
    %v2844 = vpop.f32.mrb[0].mxu0
    %v2845 = vpop.f32.mrb[0].mxu0
    %v2846 = vadd.f32 %v2406, %v2845
    %v2847 = vpop.f32.mrb[0].mxu0
    %2848 = vmatprep.mubr.bf16.mxu0 0
    %2849 = vmatmul.mubr.bf16.gmra.mrb[0].mxu0 %v2366
    %v2850 = vpop.f32.mrb[0].mxu0
    %v2851 = vadd.f32 %v2406, %v2850
    %v2852 = vpop.f32.mrb[0].mxu0
    %v2853 = vpop.f32.mrb[0].mxu0
    %v2854 = vadd.f32 %v2406, %v2853
    %v2855 = vpop.f32.mrb[0].mxu0
    %2856 = vmatprep.mubr.bf16.mxu0 0
    %2857 = vmatmul.mubr.bf16.gmra.mrb[0].mxu0 %v2367
    %v2858 = vpop.f32.mrb[0].mxu0
    %v2859 = vadd.f32 %v2406, %v2858
    %v2860 = vpop.f32.mrb[0].mxu0
    %v2861 = vpop.f32.mrb[0].mxu0
    %v2862 = vadd.f32 %v2406, %v2861
    %v2863 = vpop.f32.mrb[0].mxu0
    %2864 = vmatprep.mubr.bf16.mxu0 0
    %2865 = vmatmul.mubr.bf16.gmra.mrb[0].mxu0 %v2368
    %v2866 = vpop.f32.mrb[0].mxu0
    %v2867 = vadd.f32 %v2406, %v2866
    %v2868 = vpop.f32.mrb[0].mxu0
    %v2869 = vpop.f32.mrb[0].mxu0
    %v2870 = vadd.f32 %v2406, %v2869
    %v2871 = vpop.f32.mrb[0].mxu0
    %2872 = vmatprep.mubr.bf16.mxu0 0
    %2873 = vmatmul.mubr.bf16.gmra.mrb[0].mxu0 %v2369
    %v2874 = vpop.f32.mrb[0].mxu0
    %v2875 = vadd.f32 %v2406, %v2874
    %v2876 = vpop.f32.mrb[0].mxu0
    %v2877 = vpop.f32.mrb[0].mxu0
    %v2878 = vadd.f32 %v2406, %v2877
    %v2879 = vpop.f32.mrb[0].mxu0
    %2880 = vmatprep.mubr.bf16.mxu0 0
    %2881 = vmatmul.mubr.bf16.gmra.mrb[0].mxu0 %v2370
    %v2882 = vpop.f32.mrb[0].mxu0
    %v2883 = vadd.f32 %v2406, %v2882
    %v2884 = vpop.f32.mrb[0].mxu0
    %v2885 = vpop.f32.mrb[0].mxu0
    %v2886 = vadd.f32 %v2406, %v2885
    %v2887 = vpop.f32.mrb[0].mxu0
    %2888 = vmatprep.mubr.bf16.mxu0 0
    %2889 = vmatmul.mubr.bf16.gmra.mrb[0].mxu0 %v2371
    %v2890 = vpop.f32.mrb[0].mxu0
    %v2891 = vadd.f32 %v2406, %v2890
    %v2892 = vpop.f32.mrb[0].mxu0
    %v2893 = vpop.f32.mrb[0].mxu0
    %v2894 = vadd.f32 %v2406, %v2893
    %v2895 = vpop.f32.mrb[0].mxu0
    %2896 = vmatprep.mubr.bf16.mxu0 0
    %2897 = vmatmul.mubr.bf16.gmra.mrb[0].mxu0 %v2372
    %v2898 = vpop.f32.mrb[0].mxu0
    %v2899 = vadd.f32 %v2406, %v2898
    %v2900 = vpop.f32.mrb[0].mxu0
    %v2901 = vpop.f32.mrb[0].mxu0
    %v2902 = vadd.f32 %v2406, %v2901
    %v2903 = vpop.f32.mrb[0].mxu0
    %2904 = vmatprep.mubr.bf16.mxu0 0
    %2905 = vmatmul.mubr.bf16.gmra.mrb[0].mxu0 %v2373
    %v2906 = vpop.f32.mrb[0].mxu0
    %v2907 = vadd.f32 %v2406, %v2906
    %v2908 = vpop.f32.mrb[0].mxu0
    %v2909 = vpop.f32.mrb[0].mxu0
    %v2910 = vadd.f32 %v2406, %v2909
    %v2911 = vpop.f32.mrb[0].mxu0
    %2912 = vmatprep.mubr.bf16.mxu0 0
    %2913 = vmatmul.mubr.bf16.gmra.mrb[0].mxu0 %v2374
    %v2914 = vpop.f32.mrb[0].mxu0
    %v2915 = vadd.f32 %v2406, %v2914
    %v2916 = vpop.f32.mrb[0].mxu0
    %v2917 = vpop.f32.mrb[0].mxu0
    %v2918 = vadd.f32 %v2406, %v2917
    %v2919 = vpop.f32.mrb[0].mxu0
    %2920 = vmatprep.mubr.bf16.mxu0 0
    %2921 = vmatmul.mubr.bf16.gmra.mrb[0].mxu0 %v2375
    %v2922 = vpop.f32.mrb[0].mxu0
    %v2923 = vadd.f32 %v2406, %v2922
    %v2924 = vpop.f32.mrb[0].mxu0
    %v2925 = vpop.f32.mrb[0].mxu0
    %v2926 = vadd.f32 %v2406, %v2925
    %v2927 = vpop.f32.mrb[0].mxu0
    %2928 = vmatprep.mubr.bf16.mxu0 0
    %2929 = vmatmul.mubr.bf16.gmra.mrb[0].mxu0 %v2376
    %v2930 = vpop.f32.mrb[0].mxu0
    %v2931 = vadd.f32 %v2406, %v2930
    %v2932 = vpop.f32.mrb[0].mxu0
    %v2933 = vpop.f32.mrb[0].mxu0
    %v2934 = vadd.f32 %v2406, %v2933
    %v2935 = vpop.f32.mrb[0].mxu0
    %2936 = vmatprep.mubr.bf16.mxu0 0
    %2937 = vmatmul.mubr.bf16.gmra.mrb[0].mxu0 %v2377
    %v2938 = vpop.f32.mrb[0].mxu0
    %v2939 = vadd.f32 %v2406, %v2938
    %v2940 = vpop.f32.mrb[0].mxu0
    %v2941 = vpop.f32.mrb[0].mxu0
    %v2942 = vadd.f32 %v2406, %v2941
    %v2943 = vpop.f32.mrb[0].mxu0
    %2944 = vmatprep.mubr.bf16.mxu0 0
    %2945 = vmatmul.mubr.bf16.gmra.mrb[0].mxu0 %v2378
    %v2946 = vpop.f32.mrb[0].mxu0
    %v2947 = vadd.f32 %v2406, %v2946
    %v2948 = vpop.f32.mrb[0].mxu0
    %v2949 = vpop.f32.mrb[0].mxu0
    %v2950 = vadd.f32 %v2406, %v2949
    %v2951 = vpop.f32.mrb[0].mxu0
    %2952 = vmatprep.mubr.bf16.mxu0 0
    %2953 = vmatmul.mubr.bf16.gmra.mrb[0].mxu0 %v2379
    %v2954 = vpop.f32.mrb[0].mxu0
    %v2955 = vadd.f32 %v2406, %v2954
    %v2956 = vpop.f32.mrb[0].mxu0
    %v2957 = vpop.f32.mrb[0].mxu0
    %v2958 = vadd.f32 %v2406, %v2957
    %v2959 = vpop.f32.mrb[0].mxu0
    %2960 = vmatprep.mubr.bf16.mxu0 0
    %2961 = vmatmul.mubr.bf16.gmra.mrb[0].mxu0 %v2380
    %v2962 = vpop.f32.mrb[0].mxu0
    %v2963 = vadd.f32 %v2406, %v2962
    %v2964 = vpop.f32.mrb[0].mxu0
    %v2965 = vpop.f32.mrb[0].mxu0
    %v2966 = vadd.f32 %v2406, %v2965
    %v2967 = vpop.f32.mrb[0].mxu0
    %2968 = vmatprep.mubr.bf16.mxu0 0
    %2969 = vmatmul.mubr.bf16.gmra.mrb[0].mxu0 %v2381
    %v2970 = vpop.f32.mrb[0].mxu0
    %v2971 = vadd.f32 %v2406, %v2970
    %v2972 = vpop.f32.mrb[0].mxu0
    %v2973 = vpop.f32.mrb[0].mxu0
    %v2974 = vadd.f32 %v2406, %v2973
    %v2975 = vpop.f32.mrb[0].mxu0
    %2976 = vmatprep.mubr.bf16.mxu0 0
    %2977 = vmatmul.mubr.bf16.gmra.mrb[0].mxu0 %v2382
    %v2978 = vpop.f32.mrb[0].mxu0
    %v2979 = vadd.f32 %v2406, %v2978
    %v2980 = vpop.f32.mrb[0].mxu0
    %v2981 = vpop.f32.mrb[0].mxu0
    %v2982 = vadd.f32 %v2406, %v2981
    %v2983 = vpop.f32.mrb[0].mxu0
    %2984 = vmatprep.mubr.bf16.mxu0 0
    %2985 = vmatmul.mubr.bf16.gmra.mrb[0].mxu0 %v2383
    %v2986 = vpop.f32.mrb[0].mxu0
    %v2987 = vadd.f32 %v2406, %v2986
    %v2988 = vpop.f32.mrb[0].mxu0
    %v2989 = vpop.f32.mrb[0].mxu0
    %v2990 = vadd.f32 %v2406, %v2989
    %v2991 = vpop.f32.mrb[0].mxu0
    %2992 = vmatprep.mubr.bf16.mxu0 0
    %2993 = vmatmul.mubr.bf16.gmra.mrb[0].mxu0 %v2384
    %v2994 = vpop.f32.mrb[0].mxu0
    %v2995 = vadd.f32 %v2406, %v2994
    %v2996 = vpop.f32.mrb[0].mxu0
    %v2997 = vpop.f32.mrb[0].mxu0
    %v2998 = vadd.f32 %v2406, %v2997
    %v2999 = vpop.f32.mrb[0].mxu0
    %3000 = vdwg.mxu0
    %v3001 = vmax.f32 %v2491, 0.0
    %v3002 = vmax.f32 %v2494, 0.0
    %v3003 = vmax.f32 %v2499, 0.0
    %v3004 = vmax.f32 %v2502, 0.0
    %v3005 = vmax.f32 %v2507, 0.0
    %v3006 = vmax.f32 %v2510, 0.0
    %v3007 = vmax.f32 %v2515, 0.0
    %v3008 = vmax.f32 %v2518, 0.0
    %v3009 = vmax.f32 %v2523, 0.0
    %v3010 = vmax.f32 %v2526, 0.0
    %v3011 = vmax.f32 %v2531, 0.0
    %v3012 = vmax.f32 %v2534, 0.0
    %v3013 = vmax.f32 %v2539, 0.0
    %v3014 = vmax.f32 %v2542, 0.0
    %v3015 = vmax.f32 %v2547, 0.0
    %v3016 = vmax.f32 %v2550, 0.0
    %v3017 = vmax.f32 %v2555, 0.0
    %v3018 = vmax.f32 %v2558, 0.0
    %v3019 = vmax.f32 %v2563, 0.0
    %v3020 = vmax.f32 %v2566, 0.0
    %v3021 = vmax.f32 %v2571, 0.0
    %v3022 = vmax.f32 %v2574, 0.0
    %v3023 = vmax.f32 %v2579, 0.0
    %v3024 = vmax.f32 %v2582, 0.0
    %v3025 = vmax.f32 %v2587, 0.0
    %v3026 = vmax.f32 %v2590, 0.0
    %v3027 = vmax.f32 %v2595, 0.0
    %v3028 = vmax.f32 %v2598, 0.0
    %v3029 = vmax.f32 %v2603, 0.0
    %v3030 = vmax.f32 %v2606, 0.0
    %v3031 = vmax.f32 %v2611, 0.0
    %v3032 = vmax.f32 %v2614, 0.0
    %v3033 = vmax.f32 %v2619, 0.0
    %v3034 = vmax.f32 %v2622, 0.0
    %v3035 = vmax.f32 %v2627, 0.0
    %v3036 = vmax.f32 %v2630, 0.0
    %v3037 = vmax.f32 %v2635, 0.0
    %v3038 = vmax.f32 %v2638, 0.0
    %v3039 = vmax.f32 %v2643, 0.0
    %v3040 = vmax.f32 %v2646, 0.0
    %v3041 = vmax.f32 %v2651, 0.0
    %v3042 = vmax.f32 %v2654, 0.0
    %v3043 = vmax.f32 %v2659, 0.0
    %v3044 = vmax.f32 %v2662, 0.0
    %v3045 = vmax.f32 %v2667, 0.0
    %v3046 = vmax.f32 %v2670, 0.0
    %v3047 = vmax.f32 %v2675, 0.0
    %v3048 = vmax.f32 %v2678, 0.0
    %v3049 = vmax.f32 %v2683, 0.0
    %v3050 = vmax.f32 %v2686, 0.0
    %v3051 = vmax.f32 %v2691, 0.0
    %v3052 = vmax.f32 %v2694, 0.0
    %v3053 = vmax.f32 %v2699, 0.0
    %v3054 = vmax.f32 %v2702, 0.0
    %v3055 = vmax.f32 %v2707, 0.0
    %v3056 = vmax.f32 %v2710, 0.0
    %v3057 = vmax.f32 %v2715, 0.0
    %v3058 = vmax.f32 %v2718, 0.0
    %v3059 = vmax.f32 %v2723, 0.0
    %v3060 = vmax.f32 %v2726, 0.0
    %v3061 = vmax.f32 %v2731, 0.0
    %v3062 = vmax.f32 %v2734, 0.0
    %v3063 = vmax.f32 %v2739, 0.0
    %v3064 = vmax.f32 %v2742, 0.0
    %v3065 = vmax.f32 %v2747, 0.0
    %v3066 = vmax.f32 %v2750, 0.0
    %v3067 = vmax.f32 %v2755, 0.0
    %v3068 = vmax.f32 %v2758, 0.0
    %v3069 = vmax.f32 %v2763, 0.0
    %v3070 = vmax.f32 %v2766, 0.0
    %v3071 = vmax.f32 %v2771, 0.0
    %v3072 = vmax.f32 %v2774, 0.0
    %v3073 = vmax.f32 %v2779, 0.0
    %v3074 = vmax.f32 %v2782, 0.0
    %v3075 = vmax.f32 %v2787, 0.0
    %v3076 = vmax.f32 %v2790, 0.0
    %v3077 = vmax.f32 %v2795, 0.0
    %v3078 = vmax.f32 %v2798, 0.0
    %v3079 = vmax.f32 %v2803, 0.0
    %v3080 = vmax.f32 %v2806, 0.0
    %v3081 = vmax.f32 %v2811, 0.0
    %v3082 = vmax.f32 %v2814, 0.0
    %v3083 = vmax.f32 %v2819, 0.0
    %v3084 = vmax.f32 %v2822, 0.0
    %v3085 = vmax.f32 %v2827, 0.0
    %v3086 = vmax.f32 %v2830, 0.0
    %v3087 = vmax.f32 %v2835, 0.0
    %v3088 = vmax.f32 %v2838, 0.0
    %v3089 = vmax.f32 %v2843, 0.0
    %v3090 = vmax.f32 %v2846, 0.0
    %v3091 = vmax.f32 %v2851, 0.0
    %v3092 = vmax.f32 %v2854, 0.0
    %v3093 = vmax.f32 %v2859, 0.0
    %v3094 = vmax.f32 %v2862, 0.0
    %v3095 = vmax.f32 %v2867, 0.0
    %v3096 = vmax.f32 %v2870, 0.0
    %v3097 = vmax.f32 %v2875, 0.0
    %v3098 = vmax.f32 %v2878, 0.0
    %v3099 = vmax.f32 %v2883, 0.0
    %v3100 = vmax.f32 %v2886, 0.0
    %v3101 = vmax.f32 %v2891, 0.0
    %v3102 = vmax.f32 %v2894, 0.0
    %v3103 = vmax.f32 %v2899, 0.0
    %v3104 = vmax.f32 %v2902, 0.0
    %v3105 = vmax.f32 %v2907, 0.0
    %v3106 = vmax.f32 %v2910, 0.0
    %v3107 = vmax.f32 %v2915, 0.0
    %v3108 = vmax.f32 %v2918, 0.0
    %v3109 = vmax.f32 %v2923, 0.0
    %v3110 = vmax.f32 %v2926, 0.0
    %v3111 = vmax.f32 %v2931, 0.0
    %v3112 = vmax.f32 %v2934, 0.0
    %v3113 = vmax.f32 %v2939, 0.0
    %v3114 = vmax.f32 %v2942, 0.0
    %v3115 = vmax.f32 %v2947, 0.0
    %v3116 = vmax.f32 %v2950, 0.0
    %v3117 = vmax.f32 %v2955, 0.0
    %v3118 = vmax.f32 %v2958, 0.0
    %v3119 = vmax.f32 %v2963, 0.0
    %v3120 = vmax.f32 %v2966, 0.0
    %v3121 = vmax.f32 %v2971, 0.0
    %v3122 = vmax.f32 %v2974, 0.0
    %v3123 = vmax.f32 %v2979, 0.0
    %v3124 = vmax.f32 %v2982, 0.0
    %v3125 = vmax.f32 %v2987, 0.0
    %v3126 = vmax.f32 %v2990, 0.0
    %v3127 = vmax.f32 %v2995, 0.0
    %v3128 = vmax.f32 %v2998, 0.0
    %v3129 = vld [vmem:[%s7] sm:$0x1]
    %v3131 = vlaneseq
    %v3132 = vshrl.u32 %v3131, 7
    %v3133 = vsub.s32 0, %v3132
    %v3134 = vrot.slane %v3129, %v3133
    %v3136 = vmul.f32 %v3001, %v3134
    %v3137 = vmul.f32 %v3002, %v3134
    %v3138 = vmul.f32 %v3003, %v3134
    %v3139 = vmul.f32 %v3004, %v3134
    %v3140 = vmul.f32 %v3005, %v3134
    %v3141 = vmul.f32 %v3006, %v3134
    %v3142 = vmul.f32 %v3007, %v3134
    %v3143 = vmul.f32 %v3008, %v3134
    %v3144 = vmul.f32 %v3009, %v3134
    %v3145 = vmul.f32 %v3010, %v3134
    %v3146 = vmul.f32 %v3011, %v3134
    %v3147 = vmul.f32 %v3012, %v3134
    %v3148 = vmul.f32 %v3013, %v3134
    %v3149 = vmul.f32 %v3014, %v3134
    %v3150 = vmul.f32 %v3015, %v3134
    %v3151 = vmul.f32 %v3016, %v3134
    %v3152 = vmul.f32 %v3017, %v3134
    %v3153 = vmul.f32 %v3018, %v3134
    %v3154 = vmul.f32 %v3019, %v3134
    %v3155 = vmul.f32 %v3020, %v3134
    %v3156 = vmul.f32 %v3021, %v3134
    %v3157 = vmul.f32 %v3022, %v3134
    %v3158 = vmul.f32 %v3023, %v3134
    %v3159 = vmul.f32 %v3024, %v3134
    %v3160 = vmul.f32 %v3025, %v3134
    %v3161 = vmul.f32 %v3026, %v3134
    %v3162 = vmul.f32 %v3027, %v3134
    %v3163 = vmul.f32 %v3028, %v3134
    %v3164 = vmul.f32 %v3029, %v3134
    %v3165 = vmul.f32 %v3030, %v3134
    %v3166 = vmul.f32 %v3031, %v3134
    %v3167 = vmul.f32 %v3032, %v3134
    %v3168 = vmul.f32 %v3033, %v3134
    %v3169 = vmul.f32 %v3034, %v3134
    %v3170 = vmul.f32 %v3035, %v3134
    %v3171 = vmul.f32 %v3036, %v3134
    %v3172 = vmul.f32 %v3037, %v3134
    %v3173 = vmul.f32 %v3038, %v3134
    %v3174 = vmul.f32 %v3039, %v3134
    %v3175 = vmul.f32 %v3040, %v3134
    %v3176 = vmul.f32 %v3041, %v3134
    %v3177 = vmul.f32 %v3042, %v3134
    %v3178 = vmul.f32 %v3043, %v3134
    %v3179 = vmul.f32 %v3044, %v3134
    %v3180 = vmul.f32 %v3045, %v3134
    %v3181 = vmul.f32 %v3046, %v3134
    %v3182 = vmul.f32 %v3047, %v3134
    %v3183 = vmul.f32 %v3048, %v3134
    %v3184 = vmul.f32 %v3049, %v3134
    %v3185 = vmul.f32 %v3050, %v3134
    %v3186 = vmul.f32 %v3051, %v3134
    %v3187 = vmul.f32 %v3052, %v3134
    %v3188 = vmul.f32 %v3053, %v3134
    %v3189 = vmul.f32 %v3054, %v3134
    %v3190 = vmul.f32 %v3055, %v3134
    %v3191 = vmul.f32 %v3056, %v3134
    %v3192 = vmul.f32 %v3057, %v3134
    %v3193 = vmul.f32 %v3058, %v3134
    %v3194 = vmul.f32 %v3059, %v3134
    %v3195 = vmul.f32 %v3060, %v3134
    %v3196 = vmul.f32 %v3061, %v3134
    %v3197 = vmul.f32 %v3062, %v3134
    %v3198 = vmul.f32 %v3063, %v3134
    %v3199 = vmul.f32 %v3064, %v3134
    %v3200 = vmul.f32 %v3065, %v3134
    %v3201 = vmul.f32 %v3066, %v3134
    %v3202 = vmul.f32 %v3067, %v3134
    %v3203 = vmul.f32 %v3068, %v3134
    %v3204 = vmul.f32 %v3069, %v3134
    %v3205 = vmul.f32 %v3070, %v3134
    %v3206 = vmul.f32 %v3071, %v3134
    %v3207 = vmul.f32 %v3072, %v3134
    %v3208 = vmul.f32 %v3073, %v3134
    %v3209 = vmul.f32 %v3074, %v3134
    %v3210 = vmul.f32 %v3075, %v3134
    %v3211 = vmul.f32 %v3076, %v3134
    %v3212 = vmul.f32 %v3077, %v3134
    %v3213 = vmul.f32 %v3078, %v3134
    %v3214 = vmul.f32 %v3079, %v3134
    %v3215 = vmul.f32 %v3080, %v3134
    %v3216 = vmul.f32 %v3081, %v3134
    %v3217 = vmul.f32 %v3082, %v3134
    %v3218 = vmul.f32 %v3083, %v3134
    %v3219 = vmul.f32 %v3084, %v3134
    %v3220 = vmul.f32 %v3085, %v3134
    %v3221 = vmul.f32 %v3086, %v3134
    %v3222 = vmul.f32 %v3087, %v3134
    %v3223 = vmul.f32 %v3088, %v3134
    %v3224 = vmul.f32 %v3089, %v3134
    %v3225 = vmul.f32 %v3090, %v3134
    %v3226 = vmul.f32 %v3091, %v3134
    %v3227 = vmul.f32 %v3092, %v3134
    %v3228 = vmul.f32 %v3093, %v3134
    %v3229 = vmul.f32 %v3094, %v3134
    %v3230 = vmul.f32 %v3095, %v3134
    %v3231 = vmul.f32 %v3096, %v3134
    %v3232 = vmul.f32 %v3097, %v3134
    %v3233 = vmul.f32 %v3098, %v3134
    %v3234 = vmul.f32 %v3099, %v3134
    %v3235 = vmul.f32 %v3100, %v3134
    %v3236 = vmul.f32 %v3101, %v3134
    %v3237 = vmul.f32 %v3102, %v3134
    %v3238 = vmul.f32 %v3103, %v3134
    %v3239 = vmul.f32 %v3104, %v3134
    %v3240 = vmul.f32 %v3105, %v3134
    %v3241 = vmul.f32 %v3106, %v3134
    %v3242 = vmul.f32 %v3107, %v3134
    %v3243 = vmul.f32 %v3108, %v3134
    %v3244 = vmul.f32 %v3109, %v3134
    %v3245 = vmul.f32 %v3110, %v3134
    %v3246 = vmul.f32 %v3111, %v3134
    %v3247 = vmul.f32 %v3112, %v3134
    %v3248 = vmul.f32 %v3113, %v3134
    %v3249 = vmul.f32 %v3114, %v3134
    %v3250 = vmul.f32 %v3115, %v3134
    %v3251 = vmul.f32 %v3116, %v3134
    %v3252 = vmul.f32 %v3117, %v3134
    %v3253 = vmul.f32 %v3118, %v3134
    %v3254 = vmul.f32 %v3119, %v3134
    %v3255 = vmul.f32 %v3120, %v3134
    %v3256 = vmul.f32 %v3121, %v3134
    %v3257 = vmul.f32 %v3122, %v3134
    %v3258 = vmul.f32 %v3123, %v3134
    %v3259 = vmul.f32 %v3124, %v3134
    %v3260 = vmul.f32 %v3125, %v3134
    %v3261 = vmul.f32 %v3126, %v3134
    %v3262 = vmul.f32 %v3127, %v3134
    %v3263 = vmul.f32 %v3128, %v3134
    %vm3264 = vcmask 523264
    %v3265 = vsel %vm3264, %v3136, 0.0
    %3266 = vadd.xlane.f32.xlu0 %v3265
    %v3267 = vpop.xlane.xlu0 %3266
    %v3268 = vsel %vm3264, %v3137, 0.0
    %3269 = vadd.xlane.f32.xlu0 %v3268
    %v3270 = vpop.xlane.xlu0 %3269
    %v3271 = vsel %vm3264, %v3138, 0.0
    %3272 = vadd.xlane.f32.xlu0 %v3271
    %v3273 = vpop.xlane.xlu0 %3272
    %v3274 = vsel %vm3264, %v3139, 0.0
    %3275 = vadd.xlane.f32.xlu0 %v3274
    %v3276 = vpop.xlane.xlu0 %3275
    %v3277 = vsel %vm3264, %v3140, 0.0
    %3278 = vadd.xlane.f32.xlu0 %v3277
    %v3279 = vpop.xlane.xlu0 %3278
    %v3280 = vsel %vm3264, %v3141, 0.0
    %3281 = vadd.xlane.f32.xlu0 %v3280
    %v3282 = vpop.xlane.xlu0 %3281
    %v3283 = vsel %vm3264, %v3142, 0.0
    %3284 = vadd.xlane.f32.xlu0 %v3283
    %v3285 = vpop.xlane.xlu0 %3284
    %v3286 = vsel %vm3264, %v3143, 0.0
    %3287 = vadd.xlane.f32.xlu0 %v3286
    %v3288 = vpop.xlane.xlu0 %3287
    %v3289 = vsel %vm3264, %v3144, 0.0
    %3290 = vadd.xlane.f32.xlu0 %v3289
    %v3291 = vpop.xlane.xlu0 %3290
    %v3292 = vsel %vm3264, %v3145, 0.0
    %3293 = vadd.xlane.f32.xlu0 %v3292
    %v3294 = vpop.xlane.xlu0 %3293
    %v3295 = vsel %vm3264, %v3146, 0.0
    %3296 = vadd.xlane.f32.xlu0 %v3295
    %v3297 = vpop.xlane.xlu0 %3296
    %v3298 = vsel %vm3264, %v3147, 0.0
    %3299 = vadd.xlane.f32.xlu0 %v3298
    %v3300 = vpop.xlane.xlu0 %3299
    %v3301 = vsel %vm3264, %v3148, 0.0
    %3302 = vadd.xlane.f32.xlu0 %v3301
    %v3303 = vpop.xlane.xlu0 %3302
    %v3304 = vsel %vm3264, %v3149, 0.0
    %3305 = vadd.xlane.f32.xlu0 %v3304
    %v3306 = vpop.xlane.xlu0 %3305
    %v3307 = vsel %vm3264, %v3150, 0.0
    %3308 = vadd.xlane.f32.xlu0 %v3307
    %v3309 = vpop.xlane.xlu0 %3308
    %v3310 = vsel %vm3264, %v3151, 0.0
    %3311 = vadd.xlane.f32.xlu0 %v3310
    %v3312 = vpop.xlane.xlu0 %3311
    %v3313 = vsel %vm3264, %v3152, 0.0
    %3314 = vadd.xlane.f32.xlu0 %v3313
    %v3315 = vpop.xlane.xlu0 %3314
    %v3316 = vsel %vm3264, %v3153, 0.0
    %3317 = vadd.xlane.f32.xlu0 %v3316
    %v3318 = vpop.xlane.xlu0 %3317
    %v3319 = vsel %vm3264, %v3154, 0.0
    %3320 = vadd.xlane.f32.xlu0 %v3319
    %v3321 = vpop.xlane.xlu0 %3320
    %v3322 = vsel %vm3264, %v3155, 0.0
    %3323 = vadd.xlane.f32.xlu0 %v3322
    %v3324 = vpop.xlane.xlu0 %3323
    %v3325 = vsel %vm3264, %v3156, 0.0
    %3326 = vadd.xlane.f32.xlu0 %v3325
    %v3327 = vpop.xlane.xlu0 %3326
    %v3328 = vsel %vm3264, %v3157, 0.0
    %3329 = vadd.xlane.f32.xlu0 %v3328
    %v3330 = vpop.xlane.xlu0 %3329
    %v3331 = vsel %vm3264, %v3158, 0.0
    %3332 = vadd.xlane.f32.xlu0 %v3331
    %v3333 = vpop.xlane.xlu0 %3332
    %v3334 = vsel %vm3264, %v3159, 0.0
    %3335 = vadd.xlane.f32.xlu0 %v3334
    %v3336 = vpop.xlane.xlu0 %3335
    %v3337 = vsel %vm3264, %v3160, 0.0
    %3338 = vadd.xlane.f32.xlu0 %v3337
    %v3339 = vpop.xlane.xlu0 %3338
    %v3340 = vsel %vm3264, %v3161, 0.0
    %3341 = vadd.xlane.f32.xlu0 %v3340
    %v3342 = vpop.xlane.xlu0 %3341
    %v3343 = vsel %vm3264, %v3162, 0.0
    %3344 = vadd.xlane.f32.xlu0 %v3343
    %v3345 = vpop.xlane.xlu0 %3344
    %v3346 = vsel %vm3264, %v3163, 0.0
    %3347 = vadd.xlane.f32.xlu0 %v3346
    %v3348 = vpop.xlane.xlu0 %3347
    %v3349 = vsel %vm3264, %v3164, 0.0
    %3350 = vadd.xlane.f32.xlu0 %v3349
    %v3351 = vpop.xlane.xlu0 %3350
    %v3352 = vsel %vm3264, %v3165, 0.0
    %3353 = vadd.xlane.f32.xlu0 %v3352
    %v3354 = vpop.xlane.xlu0 %3353
    %v3355 = vsel %vm3264, %v3166, 0.0
    %3356 = vadd.xlane.f32.xlu0 %v3355
    %v3357 = vpop.xlane.xlu0 %3356
    %v3358 = vsel %vm3264, %v3167, 0.0
    %3359 = vadd.xlane.f32.xlu0 %v3358
    %v3360 = vpop.xlane.xlu0 %3359
    %v3361 = vsel %vm3264, %v3168, 0.0
    %3362 = vadd.xlane.f32.xlu0 %v3361
    %v3363 = vpop.xlane.xlu0 %3362
    %v3364 = vsel %vm3264, %v3169, 0.0
    %3365 = vadd.xlane.f32.xlu0 %v3364
    %v3366 = vpop.xlane.xlu0 %3365
    %v3367 = vsel %vm3264, %v3170, 0.0
    %3368 = vadd.xlane.f32.xlu0 %v3367
    %v3369 = vpop.xlane.xlu0 %3368
    %v3370 = vsel %vm3264, %v3171, 0.0
    %3371 = vadd.xlane.f32.xlu0 %v3370
    %v3372 = vpop.xlane.xlu0 %3371
    %v3373 = vsel %vm3264, %v3172, 0.0
    %3374 = vadd.xlane.f32.xlu0 %v3373
    %v3375 = vpop.xlane.xlu0 %3374
    %v3376 = vsel %vm3264, %v3173, 0.0
    %3377 = vadd.xlane.f32.xlu0 %v3376
    %v3378 = vpop.xlane.xlu0 %3377
    %v3379 = vsel %vm3264, %v3174, 0.0
    %3380 = vadd.xlane.f32.xlu0 %v3379
    %v3381 = vpop.xlane.xlu0 %3380
    %v3382 = vsel %vm3264, %v3175, 0.0
    %3383 = vadd.xlane.f32.xlu0 %v3382
    %v3384 = vpop.xlane.xlu0 %3383
    %v3385 = vsel %vm3264, %v3176, 0.0
    %3386 = vadd.xlane.f32.xlu0 %v3385
    %v3387 = vpop.xlane.xlu0 %3386
    %v3388 = vsel %vm3264, %v3177, 0.0
    %3389 = vadd.xlane.f32.xlu0 %v3388
    %v3390 = vpop.xlane.xlu0 %3389
    %v3391 = vsel %vm3264, %v3178, 0.0
    %3392 = vadd.xlane.f32.xlu0 %v3391
    %v3393 = vpop.xlane.xlu0 %3392
    %v3394 = vsel %vm3264, %v3179, 0.0
    %3395 = vadd.xlane.f32.xlu0 %v3394
    %v3396 = vpop.xlane.xlu0 %3395
    %v3397 = vsel %vm3264, %v3180, 0.0
    %3398 = vadd.xlane.f32.xlu0 %v3397
    %v3399 = vpop.xlane.xlu0 %3398
    %v3400 = vsel %vm3264, %v3181, 0.0
    %3401 = vadd.xlane.f32.xlu0 %v3400
    %v3402 = vpop.xlane.xlu0 %3401
    %v3403 = vsel %vm3264, %v3182, 0.0
    %3404 = vadd.xlane.f32.xlu0 %v3403
    %v3405 = vpop.xlane.xlu0 %3404
    %v3406 = vsel %vm3264, %v3183, 0.0
    %3407 = vadd.xlane.f32.xlu0 %v3406
    %v3408 = vpop.xlane.xlu0 %3407
    %v3409 = vsel %vm3264, %v3184, 0.0
    %3410 = vadd.xlane.f32.xlu0 %v3409
    %v3411 = vpop.xlane.xlu0 %3410
    %v3412 = vsel %vm3264, %v3185, 0.0
    %3413 = vadd.xlane.f32.xlu0 %v3412
    %v3414 = vpop.xlane.xlu0 %3413
    %v3415 = vsel %vm3264, %v3186, 0.0
    %3416 = vadd.xlane.f32.xlu0 %v3415
    %v3417 = vpop.xlane.xlu0 %3416
    %v3418 = vsel %vm3264, %v3187, 0.0
    %3419 = vadd.xlane.f32.xlu0 %v3418
    %v3420 = vpop.xlane.xlu0 %3419
    %v3421 = vsel %vm3264, %v3188, 0.0
    %3422 = vadd.xlane.f32.xlu0 %v3421
    %v3423 = vpop.xlane.xlu0 %3422
    %v3424 = vsel %vm3264, %v3189, 0.0
    %3425 = vadd.xlane.f32.xlu0 %v3424
    %v3426 = vpop.xlane.xlu0 %3425
    %v3427 = vsel %vm3264, %v3190, 0.0
    %3428 = vadd.xlane.f32.xlu0 %v3427
    %v3429 = vpop.xlane.xlu0 %3428
    %v3430 = vsel %vm3264, %v3191, 0.0
    %3431 = vadd.xlane.f32.xlu0 %v3430
    %v3432 = vpop.xlane.xlu0 %3431
    %v3433 = vsel %vm3264, %v3192, 0.0
    %3434 = vadd.xlane.f32.xlu0 %v3433
    %v3435 = vpop.xlane.xlu0 %3434
    %v3436 = vsel %vm3264, %v3193, 0.0
    %3437 = vadd.xlane.f32.xlu0 %v3436
    %v3438 = vpop.xlane.xlu0 %3437
    %v3439 = vsel %vm3264, %v3194, 0.0
    %3440 = vadd.xlane.f32.xlu0 %v3439
    %v3441 = vpop.xlane.xlu0 %3440
    %v3442 = vsel %vm3264, %v3195, 0.0
    %3443 = vadd.xlane.f32.xlu0 %v3442
    %v3444 = vpop.xlane.xlu0 %3443
    %v3445 = vsel %vm3264, %v3196, 0.0
    %3446 = vadd.xlane.f32.xlu0 %v3445
    %v3447 = vpop.xlane.xlu0 %3446
    %v3448 = vsel %vm3264, %v3197, 0.0
    %3449 = vadd.xlane.f32.xlu0 %v3448
    %v3450 = vpop.xlane.xlu0 %3449
    %v3451 = vsel %vm3264, %v3198, 0.0
    %3452 = vadd.xlane.f32.xlu0 %v3451
    %v3453 = vpop.xlane.xlu0 %3452
    %v3454 = vsel %vm3264, %v3199, 0.0
    %3455 = vadd.xlane.f32.xlu0 %v3454
    %v3456 = vpop.xlane.xlu0 %3455
    %v3457 = vsel %vm3264, %v3200, 0.0
    %3458 = vadd.xlane.f32.xlu0 %v3457
    %v3459 = vpop.xlane.xlu0 %3458
    %v3460 = vsel %vm3264, %v3201, 0.0
    %3461 = vadd.xlane.f32.xlu0 %v3460
    %v3462 = vpop.xlane.xlu0 %3461
    %v3463 = vsel %vm3264, %v3202, 0.0
    %3464 = vadd.xlane.f32.xlu0 %v3463
    %v3465 = vpop.xlane.xlu0 %3464
    %v3466 = vsel %vm3264, %v3203, 0.0
    %3467 = vadd.xlane.f32.xlu0 %v3466
    %v3468 = vpop.xlane.xlu0 %3467
    %v3469 = vsel %vm3264, %v3204, 0.0
    %3470 = vadd.xlane.f32.xlu0 %v3469
    %v3471 = vpop.xlane.xlu0 %3470
    %v3472 = vsel %vm3264, %v3205, 0.0
    %3473 = vadd.xlane.f32.xlu0 %v3472
    %v3474 = vpop.xlane.xlu0 %3473
    %v3475 = vsel %vm3264, %v3206, 0.0
    %3476 = vadd.xlane.f32.xlu0 %v3475
    %v3477 = vpop.xlane.xlu0 %3476
    %v3478 = vsel %vm3264, %v3207, 0.0
    %3479 = vadd.xlane.f32.xlu0 %v3478
    %v3480 = vpop.xlane.xlu0 %3479
    %v3481 = vsel %vm3264, %v3208, 0.0
    %3482 = vadd.xlane.f32.xlu0 %v3481
    %v3483 = vpop.xlane.xlu0 %3482
    %v3484 = vsel %vm3264, %v3209, 0.0
    %3485 = vadd.xlane.f32.xlu0 %v3484
    %v3486 = vpop.xlane.xlu0 %3485
    %v3487 = vsel %vm3264, %v3210, 0.0
    %3488 = vadd.xlane.f32.xlu0 %v3487
    %v3489 = vpop.xlane.xlu0 %3488
    %v3490 = vsel %vm3264, %v3211, 0.0
    %3491 = vadd.xlane.f32.xlu0 %v3490
    %v3492 = vpop.xlane.xlu0 %3491
    %v3493 = vsel %vm3264, %v3212, 0.0
    %3494 = vadd.xlane.f32.xlu0 %v3493
    %v3495 = vpop.xlane.xlu0 %3494
    %v3496 = vsel %vm3264, %v3213, 0.0
    %3497 = vadd.xlane.f32.xlu0 %v3496
    %v3498 = vpop.xlane.xlu0 %3497
    %v3499 = vsel %vm3264, %v3214, 0.0
    %3500 = vadd.xlane.f32.xlu0 %v3499
    %v3501 = vpop.xlane.xlu0 %3500
    %v3502 = vsel %vm3264, %v3215, 0.0
    %3503 = vadd.xlane.f32.xlu0 %v3502
    %v3504 = vpop.xlane.xlu0 %3503
    %v3505 = vsel %vm3264, %v3216, 0.0
    %3506 = vadd.xlane.f32.xlu0 %v3505
    %v3507 = vpop.xlane.xlu0 %3506
    %v3508 = vsel %vm3264, %v3217, 0.0
    %3509 = vadd.xlane.f32.xlu0 %v3508
    %v3510 = vpop.xlane.xlu0 %3509
    %v3511 = vsel %vm3264, %v3218, 0.0
    %3512 = vadd.xlane.f32.xlu0 %v3511
    %v3513 = vpop.xlane.xlu0 %3512
    %v3514 = vsel %vm3264, %v3219, 0.0
    %3515 = vadd.xlane.f32.xlu0 %v3514
    %v3516 = vpop.xlane.xlu0 %3515
    %v3517 = vsel %vm3264, %v3220, 0.0
    %3518 = vadd.xlane.f32.xlu0 %v3517
    %v3519 = vpop.xlane.xlu0 %3518
    %v3520 = vsel %vm3264, %v3221, 0.0
    %3521 = vadd.xlane.f32.xlu0 %v3520
    %v3522 = vpop.xlane.xlu0 %3521
    %v3523 = vsel %vm3264, %v3222, 0.0
    %3524 = vadd.xlane.f32.xlu0 %v3523
    %v3525 = vpop.xlane.xlu0 %3524
    %v3526 = vsel %vm3264, %v3223, 0.0
    %3527 = vadd.xlane.f32.xlu0 %v3526
    %v3528 = vpop.xlane.xlu0 %3527
    %v3529 = vsel %vm3264, %v3224, 0.0
    %3530 = vadd.xlane.f32.xlu0 %v3529
    %v3531 = vpop.xlane.xlu0 %3530
    %v3532 = vsel %vm3264, %v3225, 0.0
    %3533 = vadd.xlane.f32.xlu0 %v3532
    %v3534 = vpop.xlane.xlu0 %3533
    %v3535 = vsel %vm3264, %v3226, 0.0
    %3536 = vadd.xlane.f32.xlu0 %v3535
    %v3537 = vpop.xlane.xlu0 %3536
    %v3538 = vsel %vm3264, %v3227, 0.0
    %3539 = vadd.xlane.f32.xlu0 %v3538
    %v3540 = vpop.xlane.xlu0 %3539
    %v3541 = vsel %vm3264, %v3228, 0.0
    %3542 = vadd.xlane.f32.xlu0 %v3541
    %v3543 = vpop.xlane.xlu0 %3542
    %v3544 = vsel %vm3264, %v3229, 0.0
    %3545 = vadd.xlane.f32.xlu0 %v3544
    %v3546 = vpop.xlane.xlu0 %3545
    %v3547 = vsel %vm3264, %v3230, 0.0
    %3548 = vadd.xlane.f32.xlu0 %v3547
    %v3549 = vpop.xlane.xlu0 %3548
    %v3550 = vsel %vm3264, %v3231, 0.0
    %3551 = vadd.xlane.f32.xlu0 %v3550
    %v3552 = vpop.xlane.xlu0 %3551
    %v3553 = vsel %vm3264, %v3232, 0.0
    %3554 = vadd.xlane.f32.xlu0 %v3553
    %v3555 = vpop.xlane.xlu0 %3554
    %v3556 = vsel %vm3264, %v3233, 0.0
    %3557 = vadd.xlane.f32.xlu0 %v3556
    %v3558 = vpop.xlane.xlu0 %3557
    %v3559 = vsel %vm3264, %v3234, 0.0
    %3560 = vadd.xlane.f32.xlu0 %v3559
    %v3561 = vpop.xlane.xlu0 %3560
    %v3562 = vsel %vm3264, %v3235, 0.0
    %3563 = vadd.xlane.f32.xlu0 %v3562
    %v3564 = vpop.xlane.xlu0 %3563
    %v3565 = vsel %vm3264, %v3236, 0.0
    %3566 = vadd.xlane.f32.xlu0 %v3565
    %v3567 = vpop.xlane.xlu0 %3566
    %v3568 = vsel %vm3264, %v3237, 0.0
    %3569 = vadd.xlane.f32.xlu0 %v3568
    %v3570 = vpop.xlane.xlu0 %3569
    %v3571 = vsel %vm3264, %v3238, 0.0
    %3572 = vadd.xlane.f32.xlu0 %v3571
    %v3573 = vpop.xlane.xlu0 %3572
    %v3574 = vsel %vm3264, %v3239, 0.0
    %3575 = vadd.xlane.f32.xlu0 %v3574
    %v3576 = vpop.xlane.xlu0 %3575
    %v3577 = vsel %vm3264, %v3240, 0.0
    %3578 = vadd.xlane.f32.xlu0 %v3577
    %v3579 = vpop.xlane.xlu0 %3578
    %v3580 = vsel %vm3264, %v3241, 0.0
    %3581 = vadd.xlane.f32.xlu0 %v3580
    %v3582 = vpop.xlane.xlu0 %3581
    %v3583 = vsel %vm3264, %v3242, 0.0
    %3584 = vadd.xlane.f32.xlu0 %v3583
    %v3585 = vpop.xlane.xlu0 %3584
    %v3586 = vsel %vm3264, %v3243, 0.0
    %3587 = vadd.xlane.f32.xlu0 %v3586
    %v3588 = vpop.xlane.xlu0 %3587
    %v3589 = vsel %vm3264, %v3244, 0.0
    %3590 = vadd.xlane.f32.xlu0 %v3589
    %v3591 = vpop.xlane.xlu0 %3590
    %v3592 = vsel %vm3264, %v3245, 0.0
    %3593 = vadd.xlane.f32.xlu0 %v3592
    %v3594 = vpop.xlane.xlu0 %3593
    %v3595 = vsel %vm3264, %v3246, 0.0
    %3596 = vadd.xlane.f32.xlu0 %v3595
    %v3597 = vpop.xlane.xlu0 %3596
    %v3598 = vsel %vm3264, %v3247, 0.0
    %3599 = vadd.xlane.f32.xlu0 %v3598
    %v3600 = vpop.xlane.xlu0 %3599
    %v3601 = vsel %vm3264, %v3248, 0.0
    %3602 = vadd.xlane.f32.xlu0 %v3601
    %v3603 = vpop.xlane.xlu0 %3602
    %v3604 = vsel %vm3264, %v3249, 0.0
    %3605 = vadd.xlane.f32.xlu0 %v3604
    %v3606 = vpop.xlane.xlu0 %3605
    %v3607 = vsel %vm3264, %v3250, 0.0
    %3608 = vadd.xlane.f32.xlu0 %v3607
    %v3609 = vpop.xlane.xlu0 %3608
    %v3610 = vsel %vm3264, %v3251, 0.0
    %3611 = vadd.xlane.f32.xlu0 %v3610
    %v3612 = vpop.xlane.xlu0 %3611
    %v3613 = vsel %vm3264, %v3252, 0.0
    %3614 = vadd.xlane.f32.xlu0 %v3613
    %v3615 = vpop.xlane.xlu0 %3614
    %v3616 = vsel %vm3264, %v3253, 0.0
    %3617 = vadd.xlane.f32.xlu0 %v3616
    %v3618 = vpop.xlane.xlu0 %3617
    %v3619 = vsel %vm3264, %v3254, 0.0
    %3620 = vadd.xlane.f32.xlu0 %v3619
    %v3621 = vpop.xlane.xlu0 %3620
    %v3622 = vsel %vm3264, %v3255, 0.0
    %3623 = vadd.xlane.f32.xlu0 %v3622
    %v3624 = vpop.xlane.xlu0 %3623
    %v3625 = vsel %vm3264, %v3256, 0.0
    %3626 = vadd.xlane.f32.xlu0 %v3625
    %v3627 = vpop.xlane.xlu0 %3626
    %v3628 = vsel %vm3264, %v3257, 0.0
    %3629 = vadd.xlane.f32.xlu0 %v3628
    %v3630 = vpop.xlane.xlu0 %3629
    %v3631 = vsel %vm3264, %v3258, 0.0
    %3632 = vadd.xlane.f32.xlu0 %v3631
    %v3633 = vpop.xlane.xlu0 %3632
    %v3634 = vsel %vm3264, %v3259, 0.0
    %3635 = vadd.xlane.f32.xlu0 %v3634
    %v3636 = vpop.xlane.xlu0 %3635
    %v3637 = vsel %vm3264, %v3260, 0.0
    %3638 = vadd.xlane.f32.xlu0 %v3637
    %v3639 = vpop.xlane.xlu0 %3638
    %v3640 = vsel %vm3264, %v3261, 0.0
    %3641 = vadd.xlane.f32.xlu0 %v3640
    %v3642 = vpop.xlane.xlu0 %3641
    %v3643 = vsel %vm3264, %v3262, 0.0
    %3644 = vadd.xlane.f32.xlu0 %v3643
    %v3645 = vpop.xlane.xlu0 %3644
    %v3646 = vsel %vm3264, %v3263, 0.0
    %3647 = vadd.xlane.f32.xlu0 %v3646
    %v3648 = vpop.xlane.xlu0 %3647
    %v3649 = vld [vmem:[#allocation2] sm:$0x1]
    %v3651 = vlaneseq
    %v3652 = vshrl.u32 %v3651, 7
    %v3653 = vsub.s32 0, %v3652
    %v3654 = vrot.slane %v3649, %v3653
    %3655 = vset.pattern.permute.xlu0 0
    %3656 = vperm.xlu0 %3655, %v3654
    %v3657 = vpop.permute.xlu0 %3656
    %v3659 = vadd.f32 %v3267, %v3657
    %v3660 = vadd.f32 %v3270, %v3657
    %v3661 = vadd.f32 %v3273, %v3657
    %v3662 = vadd.f32 %v3276, %v3657
    %v3663 = vadd.f32 %v3279, %v3657
    %v3664 = vadd.f32 %v3282, %v3657
    %v3665 = vadd.f32 %v3285, %v3657
    %v3666 = vadd.f32 %v3288, %v3657
    %v3667 = vadd.f32 %v3291, %v3657
    %v3668 = vadd.f32 %v3294, %v3657
    %v3669 = vadd.f32 %v3297, %v3657
    %v3670 = vadd.f32 %v3300, %v3657
    %v3671 = vadd.f32 %v3303, %v3657
    %v3672 = vadd.f32 %v3306, %v3657
    %v3673 = vadd.f32 %v3309, %v3657
    %v3674 = vadd.f32 %v3312, %v3657
    %v3675 = vadd.f32 %v3315, %v3657
    %v3676 = vadd.f32 %v3318, %v3657
    %v3677 = vadd.f32 %v3321, %v3657
    %v3678 = vadd.f32 %v3324, %v3657
    %v3679 = vadd.f32 %v3327, %v3657
    %v3680 = vadd.f32 %v3330, %v3657
    %v3681 = vadd.f32 %v3333, %v3657
    %v3682 = vadd.f32 %v3336, %v3657
    %v3683 = vadd.f32 %v3339, %v3657
    %v3684 = vadd.f32 %v3342, %v3657
    %v3685 = vadd.f32 %v3345, %v3657
    %v3686 = vadd.f32 %v3348, %v3657
    %v3687 = vadd.f32 %v3351, %v3657
    %v3688 = vadd.f32 %v3354, %v3657
    %v3689 = vadd.f32 %v3357, %v3657
    %v3690 = vadd.f32 %v3360, %v3657
    %v3691 = vadd.f32 %v3363, %v3657
    %v3692 = vadd.f32 %v3366, %v3657
    %v3693 = vadd.f32 %v3369, %v3657
    %v3694 = vadd.f32 %v3372, %v3657
    %v3695 = vadd.f32 %v3375, %v3657
    %v3696 = vadd.f32 %v3378, %v3657
    %v3697 = vadd.f32 %v3381, %v3657
    %v3698 = vadd.f32 %v3384, %v3657
    %v3699 = vadd.f32 %v3387, %v3657
    %v3700 = vadd.f32 %v3390, %v3657
    %v3701 = vadd.f32 %v3393, %v3657
    %v3702 = vadd.f32 %v3396, %v3657
    %v3703 = vadd.f32 %v3399, %v3657
    %v3704 = vadd.f32 %v3402, %v3657
    %v3705 = vadd.f32 %v3405, %v3657
    %v3706 = vadd.f32 %v3408, %v3657
    %v3707 = vadd.f32 %v3411, %v3657
    %v3708 = vadd.f32 %v3414, %v3657
    %v3709 = vadd.f32 %v3417, %v3657
    %v3710 = vadd.f32 %v3420, %v3657
    %v3711 = vadd.f32 %v3423, %v3657
    %v3712 = vadd.f32 %v3426, %v3657
    %v3713 = vadd.f32 %v3429, %v3657
    %v3714 = vadd.f32 %v3432, %v3657
    %v3715 = vadd.f32 %v3435, %v3657
    %v3716 = vadd.f32 %v3438, %v3657
    %v3717 = vadd.f32 %v3441, %v3657
    %v3718 = vadd.f32 %v3444, %v3657
    %v3719 = vadd.f32 %v3447, %v3657
    %v3720 = vadd.f32 %v3450, %v3657
    %v3721 = vadd.f32 %v3453, %v3657
    %v3722 = vadd.f32 %v3456, %v3657
    %v3723 = vadd.f32 %v3459, %v3657
    %v3724 = vadd.f32 %v3462, %v3657
    %v3725 = vadd.f32 %v3465, %v3657
    %v3726 = vadd.f32 %v3468, %v3657
    %v3727 = vadd.f32 %v3471, %v3657
    %v3728 = vadd.f32 %v3474, %v3657
    %v3729 = vadd.f32 %v3477, %v3657
    %v3730 = vadd.f32 %v3480, %v3657
    %v3731 = vadd.f32 %v3483, %v3657
    %v3732 = vadd.f32 %v3486, %v3657
    %v3733 = vadd.f32 %v3489, %v3657
    %v3734 = vadd.f32 %v3492, %v3657
    %v3735 = vadd.f32 %v3495, %v3657
    %v3736 = vadd.f32 %v3498, %v3657
    %v3737 = vadd.f32 %v3501, %v3657
    %v3738 = vadd.f32 %v3504, %v3657
    %v3739 = vadd.f32 %v3507, %v3657
    %v3740 = vadd.f32 %v3510, %v3657
    %v3741 = vadd.f32 %v3513, %v3657
    %v3742 = vadd.f32 %v3516, %v3657
    %v3743 = vadd.f32 %v3519, %v3657
    %v3744 = vadd.f32 %v3522, %v3657
    %v3745 = vadd.f32 %v3525, %v3657
    %v3746 = vadd.f32 %v3528, %v3657
    %v3747 = vadd.f32 %v3531, %v3657
    %v3748 = vadd.f32 %v3534, %v3657
    %v3749 = vadd.f32 %v3537, %v3657
    %v3750 = vadd.f32 %v3540, %v3657
    %v3751 = vadd.f32 %v3543, %v3657
    %v3752 = vadd.f32 %v3546, %v3657
    %v3753 = vadd.f32 %v3549, %v3657
    %v3754 = vadd.f32 %v3552, %v3657
    %v3755 = vadd.f32 %v3555, %v3657
    %v3756 = vadd.f32 %v3558, %v3657
    %v3757 = vadd.f32 %v3561, %v3657
    %v3758 = vadd.f32 %v3564, %v3657
    %v3759 = vadd.f32 %v3567, %v3657
    %v3760 = vadd.f32 %v3570, %v3657
    %v3761 = vadd.f32 %v3573, %v3657
    %v3762 = vadd.f32 %v3576, %v3657
    %v3763 = vadd.f32 %v3579, %v3657
    %v3764 = vadd.f32 %v3582, %v3657
    %v3765 = vadd.f32 %v3585, %v3657
    %v3766 = vadd.f32 %v3588, %v3657
    %v3767 = vadd.f32 %v3591, %v3657
    %v3768 = vadd.f32 %v3594, %v3657
    %v3769 = vadd.f32 %v3597, %v3657
    %v3770 = vadd.f32 %v3600, %v3657
    %v3771 = vadd.f32 %v3603, %v3657
    %v3772 = vadd.f32 %v3606, %v3657
    %v3773 = vadd.f32 %v3609, %v3657
    %v3774 = vadd.f32 %v3612, %v3657
    %v3775 = vadd.f32 %v3615, %v3657
    %v3776 = vadd.f32 %v3618, %v3657
    %v3777 = vadd.f32 %v3621, %v3657
    %v3778 = vadd.f32 %v3624, %v3657
    %v3779 = vadd.f32 %v3627, %v3657
    %v3780 = vadd.f32 %v3630, %v3657
    %v3781 = vadd.f32 %v3633, %v3657
    %v3782 = vadd.f32 %v3636, %v3657
    %v3783 = vadd.f32 %v3639, %v3657
    %v3784 = vadd.f32 %v3642, %v3657
    %v3785 = vadd.f32 %v3645, %v3657
    %v3786 = vadd.f32 %v3648, %v3657
    %v3787 = vxor.u32 %v3659, 2147483648
    %v3788 = vxor.u32 %v3660, 2147483648
    %v3789 = vxor.u32 %v3661, 2147483648
    %v3790 = vxor.u32 %v3662, 2147483648
    %v3791 = vxor.u32 %v3663, 2147483648
    %v3792 = vxor.u32 %v3664, 2147483648
    %v3793 = vxor.u32 %v3665, 2147483648
    %v3794 = vxor.u32 %v3666, 2147483648
    %v3795 = vxor.u32 %v3667, 2147483648
    %v3796 = vxor.u32 %v3668, 2147483648
    %v3797 = vxor.u32 %v3669, 2147483648
    %v3798 = vxor.u32 %v3670, 2147483648
    %v3799 = vxor.u32 %v3671, 2147483648
    %v3800 = vxor.u32 %v3672, 2147483648
    %v3801 = vxor.u32 %v3673, 2147483648
    %v3802 = vxor.u32 %v3674, 2147483648
    %v3803 = vxor.u32 %v3675, 2147483648
    %v3804 = vxor.u32 %v3676, 2147483648
    %v3805 = vxor.u32 %v3677, 2147483648
    %v3806 = vxor.u32 %v3678, 2147483648
    %v3807 = vxor.u32 %v3679, 2147483648
    %v3808 = vxor.u32 %v3680, 2147483648
    %v3809 = vxor.u32 %v3681, 2147483648
    %v3810 = vxor.u32 %v3682, 2147483648
    %v3811 = vxor.u32 %v3683, 2147483648
    %v3812 = vxor.u32 %v3684, 2147483648
    %v3813 = vxor.u32 %v3685, 2147483648
    %v3814 = vxor.u32 %v3686, 2147483648
    %v3815 = vxor.u32 %v3687, 2147483648
    %v3816 = vxor.u32 %v3688, 2147483648
    %v3817 = vxor.u32 %v3689, 2147483648
    %v3818 = vxor.u32 %v3690, 2147483648
    %v3819 = vxor.u32 %v3691, 2147483648
    %v3820 = vxor.u32 %v3692, 2147483648
    %v3821 = vxor.u32 %v3693, 2147483648
    %v3822 = vxor.u32 %v3694, 2147483648
    %v3823 = vxor.u32 %v3695, 2147483648
    %v3824 = vxor.u32 %v3696, 2147483648
    %v3825 = vxor.u32 %v3697, 2147483648
    %v3826 = vxor.u32 %v3698, 2147483648
    %v3827 = vxor.u32 %v3699, 2147483648
    %v3828 = vxor.u32 %v3700, 2147483648
    %v3829 = vxor.u32 %v3701, 2147483648
    %v3830 = vxor.u32 %v3702, 2147483648
    %v3831 = vxor.u32 %v3703, 2147483648
    %v3832 = vxor.u32 %v3704, 2147483648
    %v3833 = vxor.u32 %v3705, 2147483648
    %v3834 = vxor.u32 %v3706, 2147483648
    %v3835 = vxor.u32 %v3707, 2147483648
    %v3836 = vxor.u32 %v3708, 2147483648
    %v3837 = vxor.u32 %v3709, 2147483648
    %v3838 = vxor.u32 %v3710, 2147483648
    %v3839 = vxor.u32 %v3711, 2147483648
    %v3840 = vxor.u32 %v3712, 2147483648
    %v3841 = vxor.u32 %v3713, 2147483648
    %v3842 = vxor.u32 %v3714, 2147483648
    %v3843 = vxor.u32 %v3715, 2147483648
    %v3844 = vxor.u32 %v3716, 2147483648
    %v3845 = vxor.u32 %v3717, 2147483648
    %v3846 = vxor.u32 %v3718, 2147483648
    %v3847 = vxor.u32 %v3719, 2147483648
    %v3848 = vxor.u32 %v3720, 2147483648
    %v3849 = vxor.u32 %v3721, 2147483648
    %v3850 = vxor.u32 %v3722, 2147483648
    %v3851 = vxor.u32 %v3723, 2147483648
    %v3852 = vxor.u32 %v3724, 2147483648
    %v3853 = vxor.u32 %v3725, 2147483648
    %v3854 = vxor.u32 %v3726, 2147483648
    %v3855 = vxor.u32 %v3727, 2147483648
    %v3856 = vxor.u32 %v3728, 2147483648
    %v3857 = vxor.u32 %v3729, 2147483648
    %v3858 = vxor.u32 %v3730, 2147483648
    %v3859 = vxor.u32 %v3731, 2147483648
    %v3860 = vxor.u32 %v3732, 2147483648
    %v3861 = vxor.u32 %v3733, 2147483648
    %v3862 = vxor.u32 %v3734, 2147483648
    %v3863 = vxor.u32 %v3735, 2147483648
    %v3864 = vxor.u32 %v3736, 2147483648
    %v3865 = vxor.u32 %v3737, 2147483648
    %v3866 = vxor.u32 %v3738, 2147483648
    %v3867 = vxor.u32 %v3739, 2147483648
    %v3868 = vxor.u32 %v3740, 2147483648
    %v3869 = vxor.u32 %v3741, 2147483648
    %v3870 = vxor.u32 %v3742, 2147483648
    %v3871 = vxor.u32 %v3743, 2147483648
    %v3872 = vxor.u32 %v3744, 2147483648
    %v3873 = vxor.u32 %v3745, 2147483648
    %v3874 = vxor.u32 %v3746, 2147483648
    %v3875 = vxor.u32 %v3747, 2147483648
    %v3876 = vxor.u32 %v3748, 2147483648
    %v3877 = vxor.u32 %v3749, 2147483648
    %v3878 = vxor.u32 %v3750, 2147483648
    %v3879 = vxor.u32 %v3751, 2147483648
    %v3880 = vxor.u32 %v3752, 2147483648
    %v3881 = vxor.u32 %v3753, 2147483648
    %v3882 = vxor.u32 %v3754, 2147483648
    %v3883 = vxor.u32 %v3755, 2147483648
    %v3884 = vxor.u32 %v3756, 2147483648
    %v3885 = vxor.u32 %v3757, 2147483648
    %v3886 = vxor.u32 %v3758, 2147483648
    %v3887 = vxor.u32 %v3759, 2147483648
    %v3888 = vxor.u32 %v3760, 2147483648
    %v3889 = vxor.u32 %v3761, 2147483648
    %v3890 = vxor.u32 %v3762, 2147483648
    %v3891 = vxor.u32 %v3763, 2147483648
    %v3892 = vxor.u32 %v3764, 2147483648
    %v3893 = vxor.u32 %v3765, 2147483648
    %v3894 = vxor.u32 %v3766, 2147483648
    %v3895 = vxor.u32 %v3767, 2147483648
    %v3896 = vxor.u32 %v3768, 2147483648
    %v3897 = vxor.u32 %v3769, 2147483648
    %v3898 = vxor.u32 %v3770, 2147483648
    %v3899 = vxor.u32 %v3771, 2147483648
    %v3900 = vxor.u32 %v3772, 2147483648
    %v3901 = vxor.u32 %v3773, 2147483648
    %v3902 = vxor.u32 %v3774, 2147483648
    %v3903 = vxor.u32 %v3775, 2147483648
    %v3904 = vxor.u32 %v3776, 2147483648
    %v3905 = vxor.u32 %v3777, 2147483648
    %v3906 = vxor.u32 %v3778, 2147483648
    %v3907 = vxor.u32 %v3779, 2147483648
    %v3908 = vxor.u32 %v3780, 2147483648
    %v3909 = vxor.u32 %v3781, 2147483648
    %v3910 = vxor.u32 %v3782, 2147483648
    %v3911 = vxor.u32 %v3783, 2147483648
    %v3912 = vxor.u32 %v3784, 2147483648
    %v3913 = vxor.u32 %v3785, 2147483648
    %v3914 = vxor.u32 %v3786, 2147483648
    %v3915 = vmul.f32 %v3787, 1.442695
    %v3916 = vpow.pop %v3915
    %v3917 = vmul.f32 %v3788, 1.442695
    %v3918 = vpow.pop %v3917
    %v3919 = vmul.f32 %v3789, 1.442695
    %v3920 = vpow.pop %v3919
    %v3921 = vmul.f32 %v3790, 1.442695
    %v3922 = vpow.pop %v3921
    %v3923 = vmul.f32 %v3791, 1.442695
    %v3924 = vpow.pop %v3923
    %v3925 = vmul.f32 %v3792, 1.442695
    %v3926 = vpow.pop %v3925
    %v3927 = vmul.f32 %v3793, 1.442695
    %v3928 = vpow.pop %v3927
    %v3929 = vmul.f32 %v3794, 1.442695
    %v3930 = vpow.pop %v3929
    %v3931 = vmul.f32 %v3795, 1.442695
    %v3932 = vpow.pop %v3931
    %v3933 = vmul.f32 %v3796, 1.442695
    %v3934 = vpow.pop %v3933
    %v3935 = vmul.f32 %v3797, 1.442695
    %v3936 = vpow.pop %v3935
    %v3937 = vmul.f32 %v3798, 1.442695
    %v3938 = vpow.pop %v3937
    %v3939 = vmul.f32 %v3799, 1.442695
    %v3940 = vpow.pop %v3939
    %v3941 = vmul.f32 %v3800, 1.442695
    %v3942 = vpow.pop %v3941
    %v3943 = vmul.f32 %v3801, 1.442695
    %v3944 = vpow.pop %v3943
    %v3945 = vmul.f32 %v3802, 1.442695
    %v3946 = vpow.pop %v3945
    %v3947 = vmul.f32 %v3803, 1.442695
    %v3948 = vpow.pop %v3947
    %v3949 = vmul.f32 %v3804, 1.442695
    %v3950 = vpow.pop %v3949
    %v3951 = vmul.f32 %v3805, 1.442695
    %v3952 = vpow.pop %v3951
    %v3953 = vmul.f32 %v3806, 1.442695
    %v3954 = vpow.pop %v3953
    %v3955 = vmul.f32 %v3807, 1.442695
    %v3956 = vpow.pop %v3955
    %v3957 = vmul.f32 %v3808, 1.442695
    %v3958 = vpow.pop %v3957
    %v3959 = vmul.f32 %v3809, 1.442695
    %v3960 = vpow.pop %v3959
    %v3961 = vmul.f32 %v3810, 1.442695
    %v3962 = vpow.pop %v3961
    %v3963 = vmul.f32 %v3811, 1.442695
    %v3964 = vpow.pop %v3963
    %v3965 = vmul.f32 %v3812, 1.442695
    %v3966 = vpow.pop %v3965
    %v3967 = vmul.f32 %v3813, 1.442695
    %v3968 = vpow.pop %v3967
    %v3969 = vmul.f32 %v3814, 1.442695
    %v3970 = vpow.pop %v3969
    %v3971 = vmul.f32 %v3815, 1.442695
    %v3972 = vpow.pop %v3971
    %v3973 = vmul.f32 %v3816, 1.442695
    %v3974 = vpow.pop %v3973
    %v3975 = vmul.f32 %v3817, 1.442695
    %v3976 = vpow.pop %v3975
    %v3977 = vmul.f32 %v3818, 1.442695
    %v3978 = vpow.pop %v3977
    %v3979 = vmul.f32 %v3819, 1.442695
    %v3980 = vpow.pop %v3979
    %v3981 = vmul.f32 %v3820, 1.442695
    %v3982 = vpow.pop %v3981
    %v3983 = vmul.f32 %v3821, 1.442695
    %v3984 = vpow.pop %v3983
    %v3985 = vmul.f32 %v3822, 1.442695
    %v3986 = vpow.pop %v3985
    %v3987 = vmul.f32 %v3823, 1.442695
    %v3988 = vpow.pop %v3987
    %v3989 = vmul.f32 %v3824, 1.442695
    %v3990 = vpow.pop %v3989
    %v3991 = vmul.f32 %v3825, 1.442695
    %v3992 = vpow.pop %v3991
    %v3993 = vmul.f32 %v3826, 1.442695
    %v3994 = vpow.pop %v3993
    %v3995 = vmul.f32 %v3827, 1.442695
    %v3996 = vpow.pop %v3995
    %v3997 = vmul.f32 %v3828, 1.442695
    %v3998 = vpow.pop %v3997
    %v3999 = vmul.f32 %v3829, 1.442695
    %v4000 = vpow.pop %v3999
    %v4001 = vmul.f32 %v3830, 1.442695
    %v4002 = vpow.pop %v4001
    %v4003 = vmul.f32 %v3831, 1.442695
    %v4004 = vpow.pop %v4003
    %v4005 = vmul.f32 %v3832, 1.442695
    %v4006 = vpow.pop %v4005
    %v4007 = vmul.f32 %v3833, 1.442695
    %v4008 = vpow.pop %v4007
    %v4009 = vmul.f32 %v3834, 1.442695
    %v4010 = vpow.pop %v4009
    %v4011 = vmul.f32 %v3835, 1.442695
    %v4012 = vpow.pop %v4011
    %v4013 = vmul.f32 %v3836, 1.442695
    %v4014 = vpow.pop %v4013
    %v4015 = vmul.f32 %v3837, 1.442695
    %v4016 = vpow.pop %v4015
    %v4017 = vmul.f32 %v3838, 1.442695
    %v4018 = vpow.pop %v4017
    %v4019 = vmul.f32 %v3839, 1.442695
    %v4020 = vpow.pop %v4019
    %v4021 = vmul.f32 %v3840, 1.442695
    %v4022 = vpow.pop %v4021
    %v4023 = vmul.f32 %v3841, 1.442695
    %v4024 = vpow.pop %v4023
    %v4025 = vmul.f32 %v3842, 1.442695
    %v4026 = vpow.pop %v4025
    %v4027 = vmul.f32 %v3843, 1.442695
    %v4028 = vpow.pop %v4027
    %v4029 = vmul.f32 %v3844, 1.442695
    %v4030 = vpow.pop %v4029
    %v4031 = vmul.f32 %v3845, 1.442695
    %v4032 = vpow.pop %v4031
    %v4033 = vmul.f32 %v3846, 1.442695
    %v4034 = vpow.pop %v4033
    %v4035 = vmul.f32 %v3847, 1.442695
    %v4036 = vpow.pop %v4035
    %v4037 = vmul.f32 %v3848, 1.442695
    %v4038 = vpow.pop %v4037
    %v4039 = vmul.f32 %v3849, 1.442695
    %v4040 = vpow.pop %v4039
    %v4041 = vmul.f32 %v3850, 1.442695
    %v4042 = vpow.pop %v4041
    %v4043 = vmul.f32 %v3851, 1.442695
    %v4044 = vpow.pop %v4043
    %v4045 = vmul.f32 %v3852, 1.442695
    %v4046 = vpow.pop %v4045
    %v4047 = vmul.f32 %v3853, 1.442695
    %v4048 = vpow.pop %v4047
    %v4049 = vmul.f32 %v3854, 1.442695
    %v4050 = vpow.pop %v4049
    %v4051 = vmul.f32 %v3855, 1.442695
    %v4052 = vpow.pop %v4051
    %v4053 = vmul.f32 %v3856, 1.442695
    %v4054 = vpow.pop %v4053
    %v4055 = vmul.f32 %v3857, 1.442695
    %v4056 = vpow.pop %v4055
    %v4057 = vmul.f32 %v3858, 1.442695
    %v4058 = vpow.pop %v4057
    %v4059 = vmul.f32 %v3859, 1.442695
    %v4060 = vpow.pop %v4059
    %v4061 = vmul.f32 %v3860, 1.442695
    %v4062 = vpow.pop %v4061
    %v4063 = vmul.f32 %v3861, 1.442695
    %v4064 = vpow.pop %v4063
    %v4065 = vmul.f32 %v3862, 1.442695
    %v4066 = vpow.pop %v4065
    %v4067 = vmul.f32 %v3863, 1.442695
    %v4068 = vpow.pop %v4067
    %v4069 = vmul.f32 %v3864, 1.442695
    %v4070 = vpow.pop %v4069
    %v4071 = vmul.f32 %v3865, 1.442695
    %v4072 = vpow.pop %v4071
    %v4073 = vmul.f32 %v3866, 1.442695
    %v4074 = vpow.pop %v4073
    %v4075 = vmul.f32 %v3867, 1.442695
    %v4076 = vpow.pop %v4075
    %v4077 = vmul.f32 %v3868, 1.442695
    %v4078 = vpow.pop %v4077
    %v4079 = vmul.f32 %v3869, 1.442695
    %v4080 = vpow.pop %v4079
    %v4081 = vmul.f32 %v3870, 1.442695
    %v4082 = vpow.pop %v4081
    %v4083 = vmul.f32 %v3871, 1.442695
    %v4084 = vpow.pop %v4083
    %v4085 = vmul.f32 %v3872, 1.442695
    %v4086 = vpow.pop %v4085
    %v4087 = vmul.f32 %v3873, 1.442695
    %v4088 = vpow.pop %v4087
    %v4089 = vmul.f32 %v3874, 1.442695
    %v4090 = vpow.pop %v4089
    %v4091 = vmul.f32 %v3875, 1.442695
    %v4092 = vpow.pop %v4091
    %v4093 = vmul.f32 %v3876, 1.442695
    %v4094 = vpow.pop %v4093
    %v4095 = vmul.f32 %v3877, 1.442695
    %v4096 = vpow.pop %v4095
    %v4097 = vmul.f32 %v3878, 1.442695
    %v4098 = vpow.pop %v4097
    %v4099 = vmul.f32 %v3879, 1.442695
    %v4100 = vpow.pop %v4099
    %v4101 = vmul.f32 %v3880, 1.442695
    %v4102 = vpow.pop %v4101
    %v4103 = vmul.f32 %v3881, 1.442695
    %v4104 = vpow.pop %v4103
    %v4105 = vmul.f32 %v3882, 1.442695
    %v4106 = vpow.pop %v4105
    %v4107 = vmul.f32 %v3883, 1.442695
    %v4108 = vpow.pop %v4107
    %v4109 = vmul.f32 %v3884, 1.442695
    %v4110 = vpow.pop %v4109
    %v4111 = vmul.f32 %v3885, 1.442695
    %v4112 = vpow.pop %v4111
    %v4113 = vmul.f32 %v3886, 1.442695
    %v4114 = vpow.pop %v4113
    %v4115 = vmul.f32 %v3887, 1.442695
    %v4116 = vpow.pop %v4115
    %v4117 = vmul.f32 %v3888, 1.442695
    %v4118 = vpow.pop %v4117
    %v4119 = vmul.f32 %v3889, 1.442695
    %v4120 = vpow.pop %v4119
    %v4121 = vmul.f32 %v3890, 1.442695
    %v4122 = vpow.pop %v4121
    %v4123 = vmul.f32 %v3891, 1.442695
    %v4124 = vpow.pop %v4123
    %v4125 = vmul.f32 %v3892, 1.442695
    %v4126 = vpow.pop %v4125
    %v4127 = vmul.f32 %v3893, 1.442695
    %v4128 = vpow.pop %v4127
    %v4129 = vmul.f32 %v3894, 1.442695
    %v4130 = vpow.pop %v4129
    %v4131 = vmul.f32 %v3895, 1.442695
    %v4132 = vpow.pop %v4131
    %v4133 = vmul.f32 %v3896, 1.442695
    %v4134 = vpow.pop %v4133
    %v4135 = vmul.f32 %v3897, 1.442695
    %v4136 = vpow.pop %v4135
    %v4137 = vmul.f32 %v3898, 1.442695
    %v4138 = vpow.pop %v4137
    %v4139 = vmul.f32 %v3899, 1.442695
    %v4140 = vpow.pop %v4139
    %v4141 = vmul.f32 %v3900, 1.442695
    %v4142 = vpow.pop %v4141
    %v4143 = vmul.f32 %v3901, 1.442695
    %v4144 = vpow.pop %v4143
    %v4145 = vmul.f32 %v3902, 1.442695
    %v4146 = vpow.pop %v4145
    %v4147 = vmul.f32 %v3903, 1.442695
    %v4148 = vpow.pop %v4147
    %v4149 = vmul.f32 %v3904, 1.442695
    %v4150 = vpow.pop %v4149
    %v4151 = vmul.f32 %v3905, 1.442695
    %v4152 = vpow.pop %v4151
    %v4153 = vmul.f32 %v3906, 1.442695
    %v4154 = vpow.pop %v4153
    %v4155 = vmul.f32 %v3907, 1.442695
    %v4156 = vpow.pop %v4155
    %v4157 = vmul.f32 %v3908, 1.442695
    %v4158 = vpow.pop %v4157
    %v4159 = vmul.f32 %v3909, 1.442695
    %v4160 = vpow.pop %v4159
    %v4161 = vmul.f32 %v3910, 1.442695
    %v4162 = vpow.pop %v4161
    %v4163 = vmul.f32 %v3911, 1.442695
    %v4164 = vpow.pop %v4163
    %v4165 = vmul.f32 %v3912, 1.442695
    %v4166 = vpow.pop %v4165
    %v4167 = vmul.f32 %v3913, 1.442695
    %v4168 = vpow.pop %v4167
    %v4169 = vmul.f32 %v3914, 1.442695
    %v4170 = vpow.pop %v4169
    %v4171 = vadd.f32 %v3916, 1.0
    %v4172 = vadd.f32 %v3918, 1.0
    %v4173 = vadd.f32 %v3920, 1.0
    %v4174 = vadd.f32 %v3922, 1.0
    %v4175 = vadd.f32 %v3924, 1.0
    %v4176 = vadd.f32 %v3926, 1.0
    %v4177 = vadd.f32 %v3928, 1.0
    %v4178 = vadd.f32 %v3930, 1.0
    %v4179 = vadd.f32 %v3932, 1.0
    %v4180 = vadd.f32 %v3934, 1.0
    %v4181 = vadd.f32 %v3936, 1.0
    %v4182 = vadd.f32 %v3938, 1.0
    %v4183 = vadd.f32 %v3940, 1.0
    %v4184 = vadd.f32 %v3942, 1.0
    %v4185 = vadd.f32 %v3944, 1.0
    %v4186 = vadd.f32 %v3946, 1.0
    %v4187 = vadd.f32 %v3948, 1.0
    %v4188 = vadd.f32 %v3950, 1.0
    %v4189 = vadd.f32 %v3952, 1.0
    %v4190 = vadd.f32 %v3954, 1.0
    %v4191 = vadd.f32 %v3956, 1.0
    %v4192 = vadd.f32 %v3958, 1.0
    %v4193 = vadd.f32 %v3960, 1.0
    %v4194 = vadd.f32 %v3962, 1.0
    %v4195 = vadd.f32 %v3964, 1.0
    %v4196 = vadd.f32 %v3966, 1.0
    %v4197 = vadd.f32 %v3968, 1.0
    %v4198 = vadd.f32 %v3970, 1.0
    %v4199 = vadd.f32 %v3972, 1.0
    %v4200 = vadd.f32 %v3974, 1.0
    %v4201 = vadd.f32 %v3976, 1.0
    %v4202 = vadd.f32 %v3978, 1.0
    %v4203 = vadd.f32 %v3980, 1.0
    %v4204 = vadd.f32 %v3982, 1.0
    %v4205 = vadd.f32 %v3984, 1.0
    %v4206 = vadd.f32 %v3986, 1.0
    %v4207 = vadd.f32 %v3988, 1.0
    %v4208 = vadd.f32 %v3990, 1.0
    %v4209 = vadd.f32 %v3992, 1.0
    %v4210 = vadd.f32 %v3994, 1.0
    %v4211 = vadd.f32 %v3996, 1.0
    %v4212 = vadd.f32 %v3998, 1.0
    %v4213 = vadd.f32 %v4000, 1.0
    %v4214 = vadd.f32 %v4002, 1.0
    %v4215 = vadd.f32 %v4004, 1.0
    %v4216 = vadd.f32 %v4006, 1.0
    %v4217 = vadd.f32 %v4008, 1.0
    %v4218 = vadd.f32 %v4010, 1.0
    %v4219 = vadd.f32 %v4012, 1.0
    %v4220 = vadd.f32 %v4014, 1.0
    %v4221 = vadd.f32 %v4016, 1.0
    %v4222 = vadd.f32 %v4018, 1.0
    %v4223 = vadd.f32 %v4020, 1.0
    %v4224 = vadd.f32 %v4022, 1.0
    %v4225 = vadd.f32 %v4024, 1.0
    %v4226 = vadd.f32 %v4026, 1.0
    %v4227 = vadd.f32 %v4028, 1.0
    %v4228 = vadd.f32 %v4030, 1.0
    %v4229 = vadd.f32 %v4032, 1.0
    %v4230 = vadd.f32 %v4034, 1.0
    %v4231 = vadd.f32 %v4036, 1.0
    %v4232 = vadd.f32 %v4038, 1.0
    %v4233 = vadd.f32 %v4040, 1.0
    %v4234 = vadd.f32 %v4042, 1.0
    %v4235 = vadd.f32 %v4044, 1.0
    %v4236 = vadd.f32 %v4046, 1.0
    %v4237 = vadd.f32 %v4048, 1.0
    %v4238 = vadd.f32 %v4050, 1.0
    %v4239 = vadd.f32 %v4052, 1.0
    %v4240 = vadd.f32 %v4054, 1.0
    %v4241 = vadd.f32 %v4056, 1.0
    %v4242 = vadd.f32 %v4058, 1.0
    %v4243 = vadd.f32 %v4060, 1.0
    %v4244 = vadd.f32 %v4062, 1.0
    %v4245 = vadd.f32 %v4064, 1.0
    %v4246 = vadd.f32 %v4066, 1.0
    %v4247 = vadd.f32 %v4068, 1.0
    %v4248 = vadd.f32 %v4070, 1.0
    %v4249 = vadd.f32 %v4072, 1.0
    %v4250 = vadd.f32 %v4074, 1.0
    %v4251 = vadd.f32 %v4076, 1.0
    %v4252 = vadd.f32 %v4078, 1.0
    %v4253 = vadd.f32 %v4080, 1.0
    %v4254 = vadd.f32 %v4082, 1.0
    %v4255 = vadd.f32 %v4084, 1.0
    %v4256 = vadd.f32 %v4086, 1.0
    %v4257 = vadd.f32 %v4088, 1.0
    %v4258 = vadd.f32 %v4090, 1.0
    %v4259 = vadd.f32 %v4092, 1.0
    %v4260 = vadd.f32 %v4094, 1.0
    %v4261 = vadd.f32 %v4096, 1.0
    %v4262 = vadd.f32 %v4098, 1.0
    %v4263 = vadd.f32 %v4100, 1.0
    %v4264 = vadd.f32 %v4102, 1.0
    %v4265 = vadd.f32 %v4104, 1.0
    %v4266 = vadd.f32 %v4106, 1.0
    %v4267 = vadd.f32 %v4108, 1.0
    %v4268 = vadd.f32 %v4110, 1.0
    %v4269 = vadd.f32 %v4112, 1.0
    %v4270 = vadd.f32 %v4114, 1.0
    %v4271 = vadd.f32 %v4116, 1.0
    %v4272 = vadd.f32 %v4118, 1.0
    %v4273 = vadd.f32 %v4120, 1.0
    %v4274 = vadd.f32 %v4122, 1.0
    %v4275 = vadd.f32 %v4124, 1.0
    %v4276 = vadd.f32 %v4126, 1.0
    %v4277 = vadd.f32 %v4128, 1.0
    %v4278 = vadd.f32 %v4130, 1.0
    %v4279 = vadd.f32 %v4132, 1.0
    %v4280 = vadd.f32 %v4134, 1.0
    %v4281 = vadd.f32 %v4136, 1.0
    %v4282 = vadd.f32 %v4138, 1.0
    %v4283 = vadd.f32 %v4140, 1.0
    %v4284 = vadd.f32 %v4142, 1.0
    %v4285 = vadd.f32 %v4144, 1.0
    %v4286 = vadd.f32 %v4146, 1.0
    %v4287 = vadd.f32 %v4148, 1.0
    %v4288 = vadd.f32 %v4150, 1.0
    %v4289 = vadd.f32 %v4152, 1.0
    %v4290 = vadd.f32 %v4154, 1.0
    %v4291 = vadd.f32 %v4156, 1.0
    %v4292 = vadd.f32 %v4158, 1.0
    %v4293 = vadd.f32 %v4160, 1.0
    %v4294 = vadd.f32 %v4162, 1.0
    %v4295 = vadd.f32 %v4164, 1.0
    %v4296 = vadd.f32 %v4166, 1.0
    %v4297 = vadd.f32 %v4168, 1.0
    %v4298 = vadd.f32 %v4170, 1.0
    %v4299 = vrcp.pop %v4171
    %v4300 = vmul.f32 1.0, %v4299
    %v4301 = vrcp.pop %v4172
    %v4302 = vmul.f32 1.0, %v4301
    %v4303 = vrcp.pop %v4173
    %v4304 = vmul.f32 1.0, %v4303
    %v4305 = vrcp.pop %v4174
    %v4306 = vmul.f32 1.0, %v4305
    %v4307 = vrcp.pop %v4175
    %v4308 = vmul.f32 1.0, %v4307
    %v4309 = vrcp.pop %v4176
    %v4310 = vmul.f32 1.0, %v4309
    %v4311 = vrcp.pop %v4177
    %v4312 = vmul.f32 1.0, %v4311
    %v4313 = vrcp.pop %v4178
    %v4314 = vmul.f32 1.0, %v4313
    %v4315 = vrcp.pop %v4179
    %v4316 = vmul.f32 1.0, %v4315
    %v4317 = vrcp.pop %v4180
    %v4318 = vmul.f32 1.0, %v4317
    %v4319 = vrcp.pop %v4181
    %v4320 = vmul.f32 1.0, %v4319
    %v4321 = vrcp.pop %v4182
    %v4322 = vmul.f32 1.0, %v4321
    %v4323 = vrcp.pop %v4183
    %v4324 = vmul.f32 1.0, %v4323
    %v4325 = vrcp.pop %v4184
    %v4326 = vmul.f32 1.0, %v4325
    %v4327 = vrcp.pop %v4185
    %v4328 = vmul.f32 1.0, %v4327
    %v4329 = vrcp.pop %v4186
    %v4330 = vmul.f32 1.0, %v4329
    %v4331 = vrcp.pop %v4187
    %v4332 = vmul.f32 1.0, %v4331
    %v4333 = vrcp.pop %v4188
    %v4334 = vmul.f32 1.0, %v4333
    %v4335 = vrcp.pop %v4189
    %v4336 = vmul.f32 1.0, %v4335
    %v4337 = vrcp.pop %v4190
    %v4338 = vmul.f32 1.0, %v4337
    %v4339 = vrcp.pop %v4191
    %v4340 = vmul.f32 1.0, %v4339
    %v4341 = vrcp.pop %v4192
    %v4342 = vmul.f32 1.0, %v4341
    %v4343 = vrcp.pop %v4193
    %v4344 = vmul.f32 1.0, %v4343
    %v4345 = vrcp.pop %v4194
    %v4346 = vmul.f32 1.0, %v4345
    %v4347 = vrcp.pop %v4195
    %v4348 = vmul.f32 1.0, %v4347
    %v4349 = vrcp.pop %v4196
    %v4350 = vmul.f32 1.0, %v4349
    %v4351 = vrcp.pop %v4197
    %v4352 = vmul.f32 1.0, %v4351
    %v4353 = vrcp.pop %v4198
    %v4354 = vmul.f32 1.0, %v4353
    %v4355 = vrcp.pop %v4199
    %v4356 = vmul.f32 1.0, %v4355
    %v4357 = vrcp.pop %v4200
    %v4358 = vmul.f32 1.0, %v4357
    %v4359 = vrcp.pop %v4201
    %v4360 = vmul.f32 1.0, %v4359
    %v4361 = vrcp.pop %v4202
    %v4362 = vmul.f32 1.0, %v4361
    %v4363 = vrcp.pop %v4203
    %v4364 = vmul.f32 1.0, %v4363
    %v4365 = vrcp.pop %v4204
    %v4366 = vmul.f32 1.0, %v4365
    %v4367 = vrcp.pop %v4205
    %v4368 = vmul.f32 1.0, %v4367
    %v4369 = vrcp.pop %v4206
    %v4370 = vmul.f32 1.0, %v4369
    %v4371 = vrcp.pop %v4207
    %v4372 = vmul.f32 1.0, %v4371
    %v4373 = vrcp.pop %v4208
    %v4374 = vmul.f32 1.0, %v4373
    %v4375 = vrcp.pop %v4209
    %v4376 = vmul.f32 1.0, %v4375
    %v4377 = vrcp.pop %v4210
    %v4378 = vmul.f32 1.0, %v4377
    %v4379 = vrcp.pop %v4211
    %v4380 = vmul.f32 1.0, %v4379
    %v4381 = vrcp.pop %v4212
    %v4382 = vmul.f32 1.0, %v4381
    %v4383 = vrcp.pop %v4213
    %v4384 = vmul.f32 1.0, %v4383
    %v4385 = vrcp.pop %v4214
    %v4386 = vmul.f32 1.0, %v4385
    %v4387 = vrcp.pop %v4215
    %v4388 = vmul.f32 1.0, %v4387
    %v4389 = vrcp.pop %v4216
    %v4390 = vmul.f32 1.0, %v4389
    %v4391 = vrcp.pop %v4217
    %v4392 = vmul.f32 1.0, %v4391
    %v4393 = vrcp.pop %v4218
    %v4394 = vmul.f32 1.0, %v4393
    %v4395 = vrcp.pop %v4219
    %v4396 = vmul.f32 1.0, %v4395
    %v4397 = vrcp.pop %v4220
    %v4398 = vmul.f32 1.0, %v4397
    %v4399 = vrcp.pop %v4221
    %v4400 = vmul.f32 1.0, %v4399
    %v4401 = vrcp.pop %v4222
    %v4402 = vmul.f32 1.0, %v4401
    %v4403 = vrcp.pop %v4223
    %v4404 = vmul.f32 1.0, %v4403
    %v4405 = vrcp.pop %v4224
    %v4406 = vmul.f32 1.0, %v4405
    %v4407 = vrcp.pop %v4225
    %v4408 = vmul.f32 1.0, %v4407
    %v4409 = vrcp.pop %v4226
    %v4410 = vmul.f32 1.0, %v4409
    %v4411 = vrcp.pop %v4227
    %v4412 = vmul.f32 1.0, %v4411
    %v4413 = vrcp.pop %v4228
    %v4414 = vmul.f32 1.0, %v4413
    %v4415 = vrcp.pop %v4229
    %v4416 = vmul.f32 1.0, %v4415
    %v4417 = vrcp.pop %v4230
    %v4418 = vmul.f32 1.0, %v4417
    %v4419 = vrcp.pop %v4231
    %v4420 = vmul.f32 1.0, %v4419
    %v4421 = vrcp.pop %v4232
    %v4422 = vmul.f32 1.0, %v4421
    %v4423 = vrcp.pop %v4233
    %v4424 = vmul.f32 1.0, %v4423
    %v4425 = vrcp.pop %v4234
    %v4426 = vmul.f32 1.0, %v4425
    %v4427 = vrcp.pop %v4235
    %v4428 = vmul.f32 1.0, %v4427
    %v4429 = vrcp.pop %v4236
    %v4430 = vmul.f32 1.0, %v4429
    %v4431 = vrcp.pop %v4237
    %v4432 = vmul.f32 1.0, %v4431
    %v4433 = vrcp.pop %v4238
    %v4434 = vmul.f32 1.0, %v4433
    %v4435 = vrcp.pop %v4239
    %v4436 = vmul.f32 1.0, %v4435
    %v4437 = vrcp.pop %v4240
    %v4438 = vmul.f32 1.0, %v4437
    %v4439 = vrcp.pop %v4241
    %v4440 = vmul.f32 1.0, %v4439
    %v4441 = vrcp.pop %v4242
    %v4442 = vmul.f32 1.0, %v4441
    %v4443 = vrcp.pop %v4243
    %v4444 = vmul.f32 1.0, %v4443
    %v4445 = vrcp.pop %v4244
    %v4446 = vmul.f32 1.0, %v4445
    %v4447 = vrcp.pop %v4245
    %v4448 = vmul.f32 1.0, %v4447
    %v4449 = vrcp.pop %v4246
    %v4450 = vmul.f32 1.0, %v4449
    %v4451 = vrcp.pop %v4247
    %v4452 = vmul.f32 1.0, %v4451
    %v4453 = vrcp.pop %v4248
    %v4454 = vmul.f32 1.0, %v4453
    %v4455 = vrcp.pop %v4249
    %v4456 = vmul.f32 1.0, %v4455
    %v4457 = vrcp.pop %v4250
    %v4458 = vmul.f32 1.0, %v4457
    %v4459 = vrcp.pop %v4251
    %v4460 = vmul.f32 1.0, %v4459
    %v4461 = vrcp.pop %v4252
    %v4462 = vmul.f32 1.0, %v4461
    %v4463 = vrcp.pop %v4253
    %v4464 = vmul.f32 1.0, %v4463
    %v4465 = vrcp.pop %v4254
    %v4466 = vmul.f32 1.0, %v4465
    %v4467 = vrcp.pop %v4255
    %v4468 = vmul.f32 1.0, %v4467
    %v4469 = vrcp.pop %v4256
    %v4470 = vmul.f32 1.0, %v4469
    %v4471 = vrcp.pop %v4257
    %v4472 = vmul.f32 1.0, %v4471
    %v4473 = vrcp.pop %v4258
    %v4474 = vmul.f32 1.0, %v4473
    %v4475 = vrcp.pop %v4259
    %v4476 = vmul.f32 1.0, %v4475
    %v4477 = vrcp.pop %v4260
    %v4478 = vmul.f32 1.0, %v4477
    %v4479 = vrcp.pop %v4261
    %v4480 = vmul.f32 1.0, %v4479
    %v4481 = vrcp.pop %v4262
    %v4482 = vmul.f32 1.0, %v4481
    %v4483 = vrcp.pop %v4263
    %v4484 = vmul.f32 1.0, %v4483
    %v4485 = vrcp.pop %v4264
    %v4486 = vmul.f32 1.0, %v4485
    %v4487 = vrcp.pop %v4265
    %v4488 = vmul.f32 1.0, %v4487
    %v4489 = vrcp.pop %v4266
    %v4490 = vmul.f32 1.0, %v4489
    %v4491 = vrcp.pop %v4267
    %v4492 = vmul.f32 1.0, %v4491
    %v4493 = vrcp.pop %v4268
    %v4494 = vmul.f32 1.0, %v4493
    %v4495 = vrcp.pop %v4269
    %v4496 = vmul.f32 1.0, %v4495
    %v4497 = vrcp.pop %v4270
    %v4498 = vmul.f32 1.0, %v4497
    %v4499 = vrcp.pop %v4271
    %v4500 = vmul.f32 1.0, %v4499
    %v4501 = vrcp.pop %v4272
    %v4502 = vmul.f32 1.0, %v4501
    %v4503 = vrcp.pop %v4273
    %v4504 = vmul.f32 1.0, %v4503
    %v4505 = vrcp.pop %v4274
    %v4506 = vmul.f32 1.0, %v4505
    %v4507 = vrcp.pop %v4275
    %v4508 = vmul.f32 1.0, %v4507
    %v4509 = vrcp.pop %v4276
    %v4510 = vmul.f32 1.0, %v4509
    %v4511 = vrcp.pop %v4277
    %v4512 = vmul.f32 1.0, %v4511
    %v4513 = vrcp.pop %v4278
    %v4514 = vmul.f32 1.0, %v4513
    %v4515 = vrcp.pop %v4279
    %v4516 = vmul.f32 1.0, %v4515
    %v4517 = vrcp.pop %v4280
    %v4518 = vmul.f32 1.0, %v4517
    %v4519 = vrcp.pop %v4281
    %v4520 = vmul.f32 1.0, %v4519
    %v4521 = vrcp.pop %v4282
    %v4522 = vmul.f32 1.0, %v4521
    %v4523 = vrcp.pop %v4283
    %v4524 = vmul.f32 1.0, %v4523
    %v4525 = vrcp.pop %v4284
    %v4526 = vmul.f32 1.0, %v4525
    %v4527 = vrcp.pop %v4285
    %v4528 = vmul.f32 1.0, %v4527
    %v4529 = vrcp.pop %v4286
    %v4530 = vmul.f32 1.0, %v4529
    %v4531 = vrcp.pop %v4287
    %v4532 = vmul.f32 1.0, %v4531
    %v4533 = vrcp.pop %v4288
    %v4534 = vmul.f32 1.0, %v4533
    %v4535 = vrcp.pop %v4289
    %v4536 = vmul.f32 1.0, %v4535
    %v4537 = vrcp.pop %v4290
    %v4538 = vmul.f32 1.0, %v4537
    %v4539 = vrcp.pop %v4291
    %v4540 = vmul.f32 1.0, %v4539
    %v4541 = vrcp.pop %v4292
    %v4542 = vmul.f32 1.0, %v4541
    %v4543 = vrcp.pop %v4293
    %v4544 = vmul.f32 1.0, %v4543
    %v4545 = vrcp.pop %v4294
    %v4546 = vmul.f32 1.0, %v4545
    %v4547 = vrcp.pop %v4295
    %v4548 = vmul.f32 1.0, %v4547
    %v4549 = vrcp.pop %v4296
    %v4550 = vmul.f32 1.0, %v4549
    %v4551 = vrcp.pop %v4297
    %v4552 = vmul.f32 1.0, %v4551
    %v4553 = vrcp.pop %v4298
    %v4554 = vmul.f32 1.0, %v4553
    %v4683 = vlaneseq
    %v4684 = vand.u32 %v4683, 127
    %v4685 = vlaneseq
    %v4686 = vshrl.u32 %v4685, 7
    %v4687 = vsub.s32 %v4684, %v4686
    %v4688 = vrot.slane %v4300, %v4687
    %v4689 = vadd.s32 %v4684, 4294967288
    %v4690 = vlaneseq
    %v4691 = vshrl.u32 %v4690, 7
    %v4692 = vsub.s32 %v4689, %v4691
    %v4693 = vrot.slane %v4302, %v4692
    %vm4694 = vcmask 130112
    %v4695 = vsel %vm4694, %v4693, %v4688
    %v4696 = vadd.s32 %v4684, 4294967280
    %v4697 = vlaneseq
    %v4698 = vshrl.u32 %v4697, 7
    %v4699 = vsub.s32 %v4696, %v4698
    %v4700 = vrot.slane %v4304, %v4699
    %vm4701 = vcmask 195712
    %v4702 = vsel %vm4701, %v4700, %v4695
    %v4703 = vadd.s32 %v4684, 4294967272
    %v4704 = vlaneseq
    %v4705 = vshrl.u32 %v4704, 7
    %v4706 = vsub.s32 %v4703, %v4705
    %v4707 = vrot.slane %v4306, %v4706
    %vm4708 = vcmask 261312
    %v4709 = vsel %vm4708, %v4707, %v4702
    %v4710 = vadd.s32 %v4684, 4294967264
    %v4711 = vlaneseq
    %v4712 = vshrl.u32 %v4711, 7
    %v4713 = vsub.s32 %v4710, %v4712
    %v4714 = vrot.slane %v4308, %v4713
    %vm4715 = vcmask 326912
    %v4716 = vsel %vm4715, %v4714, %v4709
    %v4717 = vadd.s32 %v4684, 4294967256
    %v4718 = vlaneseq
    %v4719 = vshrl.u32 %v4718, 7
    %v4720 = vsub.s32 %v4717, %v4719
    %v4721 = vrot.slane %v4310, %v4720
    %vm4722 = vcmask 392512
    %v4723 = vsel %vm4722, %v4721, %v4716
    %v4724 = vadd.s32 %v4684, 4294967248
    %v4725 = vlaneseq
    %v4726 = vshrl.u32 %v4725, 7
    %v4727 = vsub.s32 %v4724, %v4726
    %v4728 = vrot.slane %v4312, %v4727
    %vm4729 = vcmask 458112
    %v4730 = vsel %vm4729, %v4728, %v4723
    %v4731 = vadd.s32 %v4684, 4294967240
    %v4732 = vlaneseq
    %v4733 = vshrl.u32 %v4732, 7
    %v4734 = vsub.s32 %v4731, %v4733
    %v4735 = vrot.slane %v4314, %v4734
    %vm4736 = vcmask 523712
    %v4737 = vsel %vm4736, %v4735, %v4730
    %v4738 = vadd.s32 %v4684, 4294967232
    %v4739 = vlaneseq
    %v4740 = vshrl.u32 %v4739, 7
    %v4741 = vsub.s32 %v4738, %v4740
    %v4742 = vrot.slane %v4316, %v4741
    %vm4743 = vcmask 589312
    %v4744 = vsel %vm4743, %v4742, %v4737
    %v4745 = vadd.s32 %v4684, 4294967224
    %v4746 = vlaneseq
    %v4747 = vshrl.u32 %v4746, 7
    %v4748 = vsub.s32 %v4745, %v4747
    %v4749 = vrot.slane %v4318, %v4748
    %vm4750 = vcmask 654912
    %v4751 = vsel %vm4750, %v4749, %v4744
    %v4752 = vadd.s32 %v4684, 4294967216
    %v4753 = vlaneseq
    %v4754 = vshrl.u32 %v4753, 7
    %v4755 = vsub.s32 %v4752, %v4754
    %v4756 = vrot.slane %v4320, %v4755
    %vm4757 = vcmask 720512
    %v4758 = vsel %vm4757, %v4756, %v4751
    %v4759 = vadd.s32 %v4684, 4294967208
    %v4760 = vlaneseq
    %v4761 = vshrl.u32 %v4760, 7
    %v4762 = vsub.s32 %v4759, %v4761
    %v4763 = vrot.slane %v4322, %v4762
    %vm4764 = vcmask 786112
    %v4765 = vsel %vm4764, %v4763, %v4758
    %v4766 = vadd.s32 %v4684, 4294967200
    %v4767 = vlaneseq
    %v4768 = vshrl.u32 %v4767, 7
    %v4769 = vsub.s32 %v4766, %v4768
    %v4770 = vrot.slane %v4324, %v4769
    %vm4771 = vcmask 851712
    %v4772 = vsel %vm4771, %v4770, %v4765
    %v4773 = vadd.s32 %v4684, 4294967192
    %v4774 = vlaneseq
    %v4775 = vshrl.u32 %v4774, 7
    %v4776 = vsub.s32 %v4773, %v4775
    %v4777 = vrot.slane %v4326, %v4776
    %vm4778 = vcmask 917312
    %v4779 = vsel %vm4778, %v4777, %v4772
    %v4780 = vadd.s32 %v4684, 4294967184
    %v4781 = vlaneseq
    %v4782 = vshrl.u32 %v4781, 7
    %v4783 = vsub.s32 %v4780, %v4782
    %v4784 = vrot.slane %v4328, %v4783
    %vm4785 = vcmask 982912
    %v4786 = vsel %vm4785, %v4784, %v4779
    %v4787 = vadd.s32 %v4684, 4294967176
    %v4788 = vlaneseq
    %v4789 = vshrl.u32 %v4788, 7
    %v4790 = vsub.s32 %v4787, %v4789
    %v4791 = vrot.slane %v4330, %v4790
    %vm4792 = vcmask 1048512
    %v4793 = vsel %vm4792, %v4791, %v4786
    %v4794 = vlaneseq
    %v4795 = vshrl.u32 %v4794, 7
    %v4796 = vsub.s32 %v4684, %v4795
    %v4797 = vrot.slane %v4332, %v4796
    %v4798 = vlaneseq
    %v4799 = vshrl.u32 %v4798, 7
    %v4800 = vsub.s32 %v4689, %v4799
    %v4801 = vrot.slane %v4334, %v4800
    %v4802 = vsel %vm4694, %v4801, %v4797
    %v4803 = vlaneseq
    %v4804 = vshrl.u32 %v4803, 7
    %v4805 = vsub.s32 %v4696, %v4804
    %v4806 = vrot.slane %v4336, %v4805
    %v4807 = vsel %vm4701, %v4806, %v4802
    %v4808 = vlaneseq
    %v4809 = vshrl.u32 %v4808, 7
    %v4810 = vsub.s32 %v4703, %v4809
    %v4811 = vrot.slane %v4338, %v4810
    %v4812 = vsel %vm4708, %v4811, %v4807
    %v4813 = vlaneseq
    %v4814 = vshrl.u32 %v4813, 7
    %v4815 = vsub.s32 %v4710, %v4814
    %v4816 = vrot.slane %v4340, %v4815
    %v4817 = vsel %vm4715, %v4816, %v4812
    %v4818 = vlaneseq
    %v4819 = vshrl.u32 %v4818, 7
    %v4820 = vsub.s32 %v4717, %v4819
    %v4821 = vrot.slane %v4342, %v4820
    %v4822 = vsel %vm4722, %v4821, %v4817
    %v4823 = vlaneseq
    %v4824 = vshrl.u32 %v4823, 7
    %v4825 = vsub.s32 %v4724, %v4824
    %v4826 = vrot.slane %v4344, %v4825
    %v4827 = vsel %vm4729, %v4826, %v4822
    %v4828 = vlaneseq
    %v4829 = vshrl.u32 %v4828, 7
    %v4830 = vsub.s32 %v4731, %v4829
    %v4831 = vrot.slane %v4346, %v4830
    %v4832 = vsel %vm4736, %v4831, %v4827
    %v4833 = vlaneseq
    %v4834 = vshrl.u32 %v4833, 7
    %v4835 = vsub.s32 %v4738, %v4834
    %v4836 = vrot.slane %v4348, %v4835
    %v4837 = vsel %vm4743, %v4836, %v4832
    %v4838 = vlaneseq
    %v4839 = vshrl.u32 %v4838, 7
    %v4840 = vsub.s32 %v4745, %v4839
    %v4841 = vrot.slane %v4350, %v4840
    %v4842 = vsel %vm4750, %v4841, %v4837
    %v4843 = vlaneseq
    %v4844 = vshrl.u32 %v4843, 7
    %v4845 = vsub.s32 %v4752, %v4844
    %v4846 = vrot.slane %v4352, %v4845
    %v4847 = vsel %vm4757, %v4846, %v4842
    %v4848 = vlaneseq
    %v4849 = vshrl.u32 %v4848, 7
    %v4850 = vsub.s32 %v4759, %v4849
    %v4851 = vrot.slane %v4354, %v4850
    %v4852 = vsel %vm4764, %v4851, %v4847
    %v4853 = vlaneseq
    %v4854 = vshrl.u32 %v4853, 7
    %v4855 = vsub.s32 %v4766, %v4854
    %v4856 = vrot.slane %v4356, %v4855
    %v4857 = vsel %vm4771, %v4856, %v4852
    %v4858 = vlaneseq
    %v4859 = vshrl.u32 %v4858, 7
    %v4860 = vsub.s32 %v4773, %v4859
    %v4861 = vrot.slane %v4358, %v4860
    %v4862 = vsel %vm4778, %v4861, %v4857
    %v4863 = vlaneseq
    %v4864 = vshrl.u32 %v4863, 7
    %v4865 = vsub.s32 %v4780, %v4864
    %v4866 = vrot.slane %v4360, %v4865
    %v4867 = vsel %vm4785, %v4866, %v4862
    %v4868 = vlaneseq
    %v4869 = vshrl.u32 %v4868, 7
    %v4870 = vsub.s32 %v4787, %v4869
    %v4871 = vrot.slane %v4362, %v4870
    %v4872 = vsel %vm4792, %v4871, %v4867
    %v4873 = vlaneseq
    %v4874 = vshrl.u32 %v4873, 7
    %v4875 = vsub.s32 %v4684, %v4874
    %v4876 = vrot.slane %v4364, %v4875
    %v4877 = vlaneseq
    %v4878 = vshrl.u32 %v4877, 7
    %v4879 = vsub.s32 %v4689, %v4878
    %v4880 = vrot.slane %v4366, %v4879
    %v4881 = vsel %vm4694, %v4880, %v4876
    %v4882 = vlaneseq
    %v4883 = vshrl.u32 %v4882, 7
    %v4884 = vsub.s32 %v4696, %v4883
    %v4885 = vrot.slane %v4368, %v4884
    %v4886 = vsel %vm4701, %v4885, %v4881
    %v4887 = vlaneseq
    %v4888 = vshrl.u32 %v4887, 7
    %v4889 = vsub.s32 %v4703, %v4888
    %v4890 = vrot.slane %v4370, %v4889
    %v4891 = vsel %vm4708, %v4890, %v4886
    %v4892 = vlaneseq
    %v4893 = vshrl.u32 %v4892, 7
    %v4894 = vsub.s32 %v4710, %v4893
    %v4895 = vrot.slane %v4372, %v4894
    %v4896 = vsel %vm4715, %v4895, %v4891
    %v4897 = vlaneseq
    %v4898 = vshrl.u32 %v4897, 7
    %v4899 = vsub.s32 %v4717, %v4898
    %v4900 = vrot.slane %v4374, %v4899
    %v4901 = vsel %vm4722, %v4900, %v4896
    %v4902 = vlaneseq
    %v4903 = vshrl.u32 %v4902, 7
    %v4904 = vsub.s32 %v4724, %v4903
    %v4905 = vrot.slane %v4376, %v4904
    %v4906 = vsel %vm4729, %v4905, %v4901
    %v4907 = vlaneseq
    %v4908 = vshrl.u32 %v4907, 7
    %v4909 = vsub.s32 %v4731, %v4908
    %v4910 = vrot.slane %v4378, %v4909
    %v4911 = vsel %vm4736, %v4910, %v4906
    %v4912 = vlaneseq
    %v4913 = vshrl.u32 %v4912, 7
    %v4914 = vsub.s32 %v4738, %v4913
    %v4915 = vrot.slane %v4380, %v4914
    %v4916 = vsel %vm4743, %v4915, %v4911
    %v4917 = vlaneseq
    %v4918 = vshrl.u32 %v4917, 7
    %v4919 = vsub.s32 %v4745, %v4918
    %v4920 = vrot.slane %v4382, %v4919
    %v4921 = vsel %vm4750, %v4920, %v4916
    %v4922 = vlaneseq
    %v4923 = vshrl.u32 %v4922, 7
    %v4924 = vsub.s32 %v4752, %v4923
    %v4925 = vrot.slane %v4384, %v4924
    %v4926 = vsel %vm4757, %v4925, %v4921
    %v4927 = vlaneseq
    %v4928 = vshrl.u32 %v4927, 7
    %v4929 = vsub.s32 %v4759, %v4928
    %v4930 = vrot.slane %v4386, %v4929
    %v4931 = vsel %vm4764, %v4930, %v4926
    %v4932 = vlaneseq
    %v4933 = vshrl.u32 %v4932, 7
    %v4934 = vsub.s32 %v4766, %v4933
    %v4935 = vrot.slane %v4388, %v4934
    %v4936 = vsel %vm4771, %v4935, %v4931
    %v4937 = vlaneseq
    %v4938 = vshrl.u32 %v4937, 7
    %v4939 = vsub.s32 %v4773, %v4938
    %v4940 = vrot.slane %v4390, %v4939
    %v4941 = vsel %vm4778, %v4940, %v4936
    %v4942 = vlaneseq
    %v4943 = vshrl.u32 %v4942, 7
    %v4944 = vsub.s32 %v4780, %v4943
    %v4945 = vrot.slane %v4392, %v4944
    %v4946 = vsel %vm4785, %v4945, %v4941
    %v4947 = vlaneseq
    %v4948 = vshrl.u32 %v4947, 7
    %v4949 = vsub.s32 %v4787, %v4948
    %v4950 = vrot.slane %v4394, %v4949
    %v4951 = vsel %vm4792, %v4950, %v4946
    %v4952 = vlaneseq
    %v4953 = vshrl.u32 %v4952, 7
    %v4954 = vsub.s32 %v4684, %v4953
    %v4955 = vrot.slane %v4396, %v4954
    %v4956 = vlaneseq
    %v4957 = vshrl.u32 %v4956, 7
    %v4958 = vsub.s32 %v4689, %v4957
    %v4959 = vrot.slane %v4398, %v4958
    %v4960 = vsel %vm4694, %v4959, %v4955
    %v4961 = vlaneseq
    %v4962 = vshrl.u32 %v4961, 7
    %v4963 = vsub.s32 %v4696, %v4962
    %v4964 = vrot.slane %v4400, %v4963
    %v4965 = vsel %vm4701, %v4964, %v4960
    %v4966 = vlaneseq
    %v4967 = vshrl.u32 %v4966, 7
    %v4968 = vsub.s32 %v4703, %v4967
    %v4969 = vrot.slane %v4402, %v4968
    %v4970 = vsel %vm4708, %v4969, %v4965
    %v4971 = vlaneseq
    %v4972 = vshrl.u32 %v4971, 7
    %v4973 = vsub.s32 %v4710, %v4972
    %v4974 = vrot.slane %v4404, %v4973
    %v4975 = vsel %vm4715, %v4974, %v4970
    %v4976 = vlaneseq
    %v4977 = vshrl.u32 %v4976, 7
    %v4978 = vsub.s32 %v4717, %v4977
    %v4979 = vrot.slane %v4406, %v4978
    %v4980 = vsel %vm4722, %v4979, %v4975
    %v4981 = vlaneseq
    %v4982 = vshrl.u32 %v4981, 7
    %v4983 = vsub.s32 %v4724, %v4982
    %v4984 = vrot.slane %v4408, %v4983
    %v4985 = vsel %vm4729, %v4984, %v4980
    %v4986 = vlaneseq
    %v4987 = vshrl.u32 %v4986, 7
    %v4988 = vsub.s32 %v4731, %v4987
    %v4989 = vrot.slane %v4410, %v4988
    %v4990 = vsel %vm4736, %v4989, %v4985
    %v4991 = vlaneseq
    %v4992 = vshrl.u32 %v4991, 7
    %v4993 = vsub.s32 %v4738, %v4992
    %v4994 = vrot.slane %v4412, %v4993
    %v4995 = vsel %vm4743, %v4994, %v4990
    %v4996 = vlaneseq
    %v4997 = vshrl.u32 %v4996, 7
    %v4998 = vsub.s32 %v4745, %v4997
    %v4999 = vrot.slane %v4414, %v4998
    %v5000 = vsel %vm4750, %v4999, %v4995
    %v5001 = vlaneseq
    %v5002 = vshrl.u32 %v5001, 7
    %v5003 = vsub.s32 %v4752, %v5002
    %v5004 = vrot.slane %v4416, %v5003
    %v5005 = vsel %vm4757, %v5004, %v5000
    %v5006 = vlaneseq
    %v5007 = vshrl.u32 %v5006, 7
    %v5008 = vsub.s32 %v4759, %v5007
    %v5009 = vrot.slane %v4418, %v5008
    %v5010 = vsel %vm4764, %v5009, %v5005
    %v5011 = vlaneseq
    %v5012 = vshrl.u32 %v5011, 7
    %v5013 = vsub.s32 %v4766, %v5012
    %v5014 = vrot.slane %v4420, %v5013
    %v5015 = vsel %vm4771, %v5014, %v5010
    %v5016 = vlaneseq
    %v5017 = vshrl.u32 %v5016, 7
    %v5018 = vsub.s32 %v4773, %v5017
    %v5019 = vrot.slane %v4422, %v5018
    %v5020 = vsel %vm4778, %v5019, %v5015
    %v5021 = vlaneseq
    %v5022 = vshrl.u32 %v5021, 7
    %v5023 = vsub.s32 %v4780, %v5022
    %v5024 = vrot.slane %v4424, %v5023
    %v5025 = vsel %vm4785, %v5024, %v5020
    %v5026 = vlaneseq
    %v5027 = vshrl.u32 %v5026, 7
    %v5028 = vsub.s32 %v4787, %v5027
    %v5029 = vrot.slane %v4426, %v5028
    %v5030 = vsel %vm4792, %v5029, %v5025
    %v5031 = vlaneseq
    %v5032 = vshrl.u32 %v5031, 7
    %v5033 = vsub.s32 %v4684, %v5032
    %v5034 = vrot.slane %v4428, %v5033
    %v5035 = vlaneseq
    %v5036 = vshrl.u32 %v5035, 7
    %v5037 = vsub.s32 %v4689, %v5036
    %v5038 = vrot.slane %v4430, %v5037
    %v5039 = vsel %vm4694, %v5038, %v5034
    %v5040 = vlaneseq
    %v5041 = vshrl.u32 %v5040, 7
    %v5042 = vsub.s32 %v4696, %v5041
    %v5043 = vrot.slane %v4432, %v5042
    %v5044 = vsel %vm4701, %v5043, %v5039
    %v5045 = vlaneseq
    %v5046 = vshrl.u32 %v5045, 7
    %v5047 = vsub.s32 %v4703, %v5046
    %v5048 = vrot.slane %v4434, %v5047
    %v5049 = vsel %vm4708, %v5048, %v5044
    %v5050 = vlaneseq
    %v5051 = vshrl.u32 %v5050, 7
    %v5052 = vsub.s32 %v4710, %v5051
    %v5053 = vrot.slane %v4436, %v5052
    %v5054 = vsel %vm4715, %v5053, %v5049
    %v5055 = vlaneseq
    %v5056 = vshrl.u32 %v5055, 7
    %v5057 = vsub.s32 %v4717, %v5056
    %v5058 = vrot.slane %v4438, %v5057
    %v5059 = vsel %vm4722, %v5058, %v5054
    %v5060 = vlaneseq
    %v5061 = vshrl.u32 %v5060, 7
    %v5062 = vsub.s32 %v4724, %v5061
    %v5063 = vrot.slane %v4440, %v5062
    %v5064 = vsel %vm4729, %v5063, %v5059
    %v5065 = vlaneseq
    %v5066 = vshrl.u32 %v5065, 7
    %v5067 = vsub.s32 %v4731, %v5066
    %v5068 = vrot.slane %v4442, %v5067
    %v5069 = vsel %vm4736, %v5068, %v5064
    %v5070 = vlaneseq
    %v5071 = vshrl.u32 %v5070, 7
    %v5072 = vsub.s32 %v4738, %v5071
    %v5073 = vrot.slane %v4444, %v5072
    %v5074 = vsel %vm4743, %v5073, %v5069
    %v5075 = vlaneseq
    %v5076 = vshrl.u32 %v5075, 7
    %v5077 = vsub.s32 %v4745, %v5076
    %v5078 = vrot.slane %v4446, %v5077
    %v5079 = vsel %vm4750, %v5078, %v5074
    %v5080 = vlaneseq
    %v5081 = vshrl.u32 %v5080, 7
    %v5082 = vsub.s32 %v4752, %v5081
    %v5083 = vrot.slane %v4448, %v5082
    %v5084 = vsel %vm4757, %v5083, %v5079
    %v5085 = vlaneseq
    %v5086 = vshrl.u32 %v5085, 7
    %v5087 = vsub.s32 %v4759, %v5086
    %v5088 = vrot.slane %v4450, %v5087
    %v5089 = vsel %vm4764, %v5088, %v5084
    %v5090 = vlaneseq
    %v5091 = vshrl.u32 %v5090, 7
    %v5092 = vsub.s32 %v4766, %v5091
    %v5093 = vrot.slane %v4452, %v5092
    %v5094 = vsel %vm4771, %v5093, %v5089
    %v5095 = vlaneseq
    %v5096 = vshrl.u32 %v5095, 7
    %v5097 = vsub.s32 %v4773, %v5096
    %v5098 = vrot.slane %v4454, %v5097
    %v5099 = vsel %vm4778, %v5098, %v5094
    %v5100 = vlaneseq
    %v5101 = vshrl.u32 %v5100, 7
    %v5102 = vsub.s32 %v4780, %v5101
    %v5103 = vrot.slane %v4456, %v5102
    %v5104 = vsel %vm4785, %v5103, %v5099
    %v5105 = vlaneseq
    %v5106 = vshrl.u32 %v5105, 7
    %v5107 = vsub.s32 %v4787, %v5106
    %v5108 = vrot.slane %v4458, %v5107
    %v5109 = vsel %vm4792, %v5108, %v5104
    %v5110 = vlaneseq
    %v5111 = vshrl.u32 %v5110, 7
    %v5112 = vsub.s32 %v4684, %v5111
    %v5113 = vrot.slane %v4460, %v5112
    %v5114 = vlaneseq
    %v5115 = vshrl.u32 %v5114, 7
    %v5116 = vsub.s32 %v4689, %v5115
    %v5117 = vrot.slane %v4462, %v5116
    %v5118 = vsel %vm4694, %v5117, %v5113
    %v5119 = vlaneseq
    %v5120 = vshrl.u32 %v5119, 7
    %v5121 = vsub.s32 %v4696, %v5120
    %v5122 = vrot.slane %v4464, %v5121
    %v5123 = vsel %vm4701, %v5122, %v5118
    %v5124 = vlaneseq
    %v5125 = vshrl.u32 %v5124, 7
    %v5126 = vsub.s32 %v4703, %v5125
    %v5127 = vrot.slane %v4466, %v5126
    %v5128 = vsel %vm4708, %v5127, %v5123
    %v5129 = vlaneseq
    %v5130 = vshrl.u32 %v5129, 7
    %v5131 = vsub.s32 %v4710, %v5130
    %v5132 = vrot.slane %v4468, %v5131
    %v5133 = vsel %vm4715, %v5132, %v5128
    %v5134 = vlaneseq
    %v5135 = vshrl.u32 %v5134, 7
    %v5136 = vsub.s32 %v4717, %v5135
    %v5137 = vrot.slane %v4470, %v5136
    %v5138 = vsel %vm4722, %v5137, %v5133
    %v5139 = vlaneseq
    %v5140 = vshrl.u32 %v5139, 7
    %v5141 = vsub.s32 %v4724, %v5140
    %v5142 = vrot.slane %v4472, %v5141
    %v5143 = vsel %vm4729, %v5142, %v5138
    %v5144 = vlaneseq
    %v5145 = vshrl.u32 %v5144, 7
    %v5146 = vsub.s32 %v4731, %v5145
    %v5147 = vrot.slane %v4474, %v5146
    %v5148 = vsel %vm4736, %v5147, %v5143
    %v5149 = vlaneseq
    %v5150 = vshrl.u32 %v5149, 7
    %v5151 = vsub.s32 %v4738, %v5150
    %v5152 = vrot.slane %v4476, %v5151
    %v5153 = vsel %vm4743, %v5152, %v5148
    %v5154 = vlaneseq
    %v5155 = vshrl.u32 %v5154, 7
    %v5156 = vsub.s32 %v4745, %v5155
    %v5157 = vrot.slane %v4478, %v5156
    %v5158 = vsel %vm4750, %v5157, %v5153
    %v5159 = vlaneseq
    %v5160 = vshrl.u32 %v5159, 7
    %v5161 = vsub.s32 %v4752, %v5160
    %v5162 = vrot.slane %v4480, %v5161
    %v5163 = vsel %vm4757, %v5162, %v5158
    %v5164 = vlaneseq
    %v5165 = vshrl.u32 %v5164, 7
    %v5166 = vsub.s32 %v4759, %v5165
    %v5167 = vrot.slane %v4482, %v5166
    %v5168 = vsel %vm4764, %v5167, %v5163
    %v5169 = vlaneseq
    %v5170 = vshrl.u32 %v5169, 7
    %v5171 = vsub.s32 %v4766, %v5170
    %v5172 = vrot.slane %v4484, %v5171
    %v5173 = vsel %vm4771, %v5172, %v5168
    %v5174 = vlaneseq
    %v5175 = vshrl.u32 %v5174, 7
    %v5176 = vsub.s32 %v4773, %v5175
    %v5177 = vrot.slane %v4486, %v5176
    %v5178 = vsel %vm4778, %v5177, %v5173
    %v5179 = vlaneseq
    %v5180 = vshrl.u32 %v5179, 7
    %v5181 = vsub.s32 %v4780, %v5180
    %v5182 = vrot.slane %v4488, %v5181
    %v5183 = vsel %vm4785, %v5182, %v5178
    %v5184 = vlaneseq
    %v5185 = vshrl.u32 %v5184, 7
    %v5186 = vsub.s32 %v4787, %v5185
    %v5187 = vrot.slane %v4490, %v5186
    %v5188 = vsel %vm4792, %v5187, %v5183
    %v5189 = vlaneseq
    %v5190 = vshrl.u32 %v5189, 7
    %v5191 = vsub.s32 %v4684, %v5190
    %v5192 = vrot.slane %v4492, %v5191
    %v5193 = vlaneseq
    %v5194 = vshrl.u32 %v5193, 7
    %v5195 = vsub.s32 %v4689, %v5194
    %v5196 = vrot.slane %v4494, %v5195
    %v5197 = vsel %vm4694, %v5196, %v5192
    %v5198 = vlaneseq
    %v5199 = vshrl.u32 %v5198, 7
    %v5200 = vsub.s32 %v4696, %v5199
    %v5201 = vrot.slane %v4496, %v5200
    %v5202 = vsel %vm4701, %v5201, %v5197
    %v5203 = vlaneseq
    %v5204 = vshrl.u32 %v5203, 7
    %v5205 = vsub.s32 %v4703, %v5204
    %v5206 = vrot.slane %v4498, %v5205
    %v5207 = vsel %vm4708, %v5206, %v5202
    %v5208 = vlaneseq
    %v5209 = vshrl.u32 %v5208, 7
    %v5210 = vsub.s32 %v4710, %v5209
    %v5211 = vrot.slane %v4500, %v5210
    %v5212 = vsel %vm4715, %v5211, %v5207
    %v5213 = vlaneseq
    %v5214 = vshrl.u32 %v5213, 7
    %v5215 = vsub.s32 %v4717, %v5214
    %v5216 = vrot.slane %v4502, %v5215
    %v5217 = vsel %vm4722, %v5216, %v5212
    %v5218 = vlaneseq
    %v5219 = vshrl.u32 %v5218, 7
    %v5220 = vsub.s32 %v4724, %v5219
    %v5221 = vrot.slane %v4504, %v5220
    %v5222 = vsel %vm4729, %v5221, %v5217
    %v5223 = vlaneseq
    %v5224 = vshrl.u32 %v5223, 7
    %v5225 = vsub.s32 %v4731, %v5224
    %v5226 = vrot.slane %v4506, %v5225
    %v5227 = vsel %vm4736, %v5226, %v5222
    %v5228 = vlaneseq
    %v5229 = vshrl.u32 %v5228, 7
    %v5230 = vsub.s32 %v4738, %v5229
    %v5231 = vrot.slane %v4508, %v5230
    %v5232 = vsel %vm4743, %v5231, %v5227
    %v5233 = vlaneseq
    %v5234 = vshrl.u32 %v5233, 7
    %v5235 = vsub.s32 %v4745, %v5234
    %v5236 = vrot.slane %v4510, %v5235
    %v5237 = vsel %vm4750, %v5236, %v5232
    %v5238 = vlaneseq
    %v5239 = vshrl.u32 %v5238, 7
    %v5240 = vsub.s32 %v4752, %v5239
    %v5241 = vrot.slane %v4512, %v5240
    %v5242 = vsel %vm4757, %v5241, %v5237
    %v5243 = vlaneseq
    %v5244 = vshrl.u32 %v5243, 7
    %v5245 = vsub.s32 %v4759, %v5244
    %v5246 = vrot.slane %v4514, %v5245
    %v5247 = vsel %vm4764, %v5246, %v5242
    %v5248 = vlaneseq
    %v5249 = vshrl.u32 %v5248, 7
    %v5250 = vsub.s32 %v4766, %v5249
    %v5251 = vrot.slane %v4516, %v5250
    %v5252 = vsel %vm4771, %v5251, %v5247
    %v5253 = vlaneseq
    %v5254 = vshrl.u32 %v5253, 7
    %v5255 = vsub.s32 %v4773, %v5254
    %v5256 = vrot.slane %v4518, %v5255
    %v5257 = vsel %vm4778, %v5256, %v5252
    %v5258 = vlaneseq
    %v5259 = vshrl.u32 %v5258, 7
    %v5260 = vsub.s32 %v4780, %v5259
    %v5261 = vrot.slane %v4520, %v5260
    %v5262 = vsel %vm4785, %v5261, %v5257
    %v5263 = vlaneseq
    %v5264 = vshrl.u32 %v5263, 7
    %v5265 = vsub.s32 %v4787, %v5264
    %v5266 = vrot.slane %v4522, %v5265
    %v5267 = vsel %vm4792, %v5266, %v5262
    %v5268 = vlaneseq
    %v5269 = vshrl.u32 %v5268, 7
    %v5270 = vsub.s32 %v4684, %v5269
    %v5271 = vrot.slane %v4524, %v5270
    %v5272 = vlaneseq
    %v5273 = vshrl.u32 %v5272, 7
    %v5274 = vsub.s32 %v4689, %v5273
    %v5275 = vrot.slane %v4526, %v5274
    %v5276 = vsel %vm4694, %v5275, %v5271
    %v5277 = vlaneseq
    %v5278 = vshrl.u32 %v5277, 7
    %v5279 = vsub.s32 %v4696, %v5278
    %v5280 = vrot.slane %v4528, %v5279
    %v5281 = vsel %vm4701, %v5280, %v5276
    %v5282 = vlaneseq
    %v5283 = vshrl.u32 %v5282, 7
    %v5284 = vsub.s32 %v4703, %v5283
    %v5285 = vrot.slane %v4530, %v5284
    %v5286 = vsel %vm4708, %v5285, %v5281
    %v5287 = vlaneseq
    %v5288 = vshrl.u32 %v5287, 7
    %v5289 = vsub.s32 %v4710, %v5288
    %v5290 = vrot.slane %v4532, %v5289
    %v5291 = vsel %vm4715, %v5290, %v5286
    %v5292 = vlaneseq
    %v5293 = vshrl.u32 %v5292, 7
    %v5294 = vsub.s32 %v4717, %v5293
    %v5295 = vrot.slane %v4534, %v5294
    %v5296 = vsel %vm4722, %v5295, %v5291
    %v5297 = vlaneseq
    %v5298 = vshrl.u32 %v5297, 7
    %v5299 = vsub.s32 %v4724, %v5298
    %v5300 = vrot.slane %v4536, %v5299
    %v5301 = vsel %vm4729, %v5300, %v5296
    %v5302 = vlaneseq
    %v5303 = vshrl.u32 %v5302, 7
    %v5304 = vsub.s32 %v4731, %v5303
    %v5305 = vrot.slane %v4538, %v5304
    %v5306 = vsel %vm4736, %v5305, %v5301
    %v5307 = vlaneseq
    %v5308 = vshrl.u32 %v5307, 7
    %v5309 = vsub.s32 %v4738, %v5308
    %v5310 = vrot.slane %v4540, %v5309
    %v5311 = vsel %vm4743, %v5310, %v5306
    %v5312 = vlaneseq
    %v5313 = vshrl.u32 %v5312, 7
    %v5314 = vsub.s32 %v4745, %v5313
    %v5315 = vrot.slane %v4542, %v5314
    %v5316 = vsel %vm4750, %v5315, %v5311
    %v5317 = vlaneseq
    %v5318 = vshrl.u32 %v5317, 7
    %v5319 = vsub.s32 %v4752, %v5318
    %v5320 = vrot.slane %v4544, %v5319
    %v5321 = vsel %vm4757, %v5320, %v5316
    %v5322 = vlaneseq
    %v5323 = vshrl.u32 %v5322, 7
    %v5324 = vsub.s32 %v4759, %v5323
    %v5325 = vrot.slane %v4546, %v5324
    %v5326 = vsel %vm4764, %v5325, %v5321
    %v5327 = vlaneseq
    %v5328 = vshrl.u32 %v5327, 7
    %v5329 = vsub.s32 %v4766, %v5328
    %v5330 = vrot.slane %v4548, %v5329
    %v5331 = vsel %vm4771, %v5330, %v5326
    %v5332 = vlaneseq
    %v5333 = vshrl.u32 %v5332, 7
    %v5334 = vsub.s32 %v4773, %v5333
    %v5335 = vrot.slane %v4550, %v5334
    %v5336 = vsel %vm4778, %v5335, %v5331
    %v5337 = vlaneseq
    %v5338 = vshrl.u32 %v5337, 7
    %v5339 = vsub.s32 %v4780, %v5338
    %v5340 = vrot.slane %v4552, %v5339
    %v5341 = vsel %vm4785, %v5340, %v5336
    %v5342 = vlaneseq
    %v5343 = vshrl.u32 %v5342, 7
    %v5344 = vsub.s32 %v4787, %v5343
    %v5345 = vrot.slane %v4554, %v5344
    %v5346 = vsel %vm4792, %v5345, %v5341
    %vm5347 = vcmask 1041409
    %v5348 = vsel %vm5347, %v4872, %v4793
    %vm5349 = vcmask 1042434
    %v5350 = vsel %vm5349, %v4951, %v5348
    %vm5351 = vcmask 1043459
    %v5352 = vsel %vm5351, %v5030, %v5350
    %vm5353 = vcmask 1044484
    %v5354 = vsel %vm5353, %v5109, %v5352
    %vm5355 = vcmask 1045509
    %v5356 = vsel %vm5355, %v5188, %v5354
    %vm5357 = vcmask 1046534
    %v5358 = vsel %vm5357, %v5267, %v5356
    %vm5359 = vcmask 1047559
    %v5360 = vsel %vm5359, %v5346, %v5358
    %5362 = vst [vmem:[#allocation3] sm:$0xff] %v5360
    // Predicated region
    $region38: #{pause_detector_forward.1} parent=1 // pred_check
      _
    $region39: #{pause_detector_forward.1} parent=1 // pred_check_branch
      %5364 = sbr.rel (0) target = $region41
    $region40: #{pause_detector_forward.1} parent=1 // pred_region
      // Predicated region
      $region42: #{pause_detector_forward.1} parent=40 // pred_check
        _
      $region43: #{pause_detector_forward.1} parent=40 // pred_check_branch
        %5366 = sbr.rel (0) target = $region45
      $region44: #{pause_detector_forward.1} parent=40 // pred_region
        // Predicated region
        $region46: #{pause_detector_forward.1} parent=44 // pred_check
          _
        $region47: #{pause_detector_forward.1} parent=44 // pred_check_branch
          %5368 = sbr.rel target = $region49
        $region48: #{pause_detector_forward.1} parent=44 // pred_region
          // Predicated region
          $region61: #{pause_detector_forward.1} parent=48 // pred_check
            _
          $region62: #{pause_detector_forward.1} parent=48 // pred_check_branch
            %5383 = sbr.rel (0) target = $region64
          $region63: #{pause_detector_forward.1} parent=48 // pred_region
            loop: start=0, step=1, limit=1
            $region65: #{pause_detector_forward.1} parent=63 // loop_pre_header
              _
            $region66: #{pause_detector_forward.1} parent=63 // loop_header
              %s5386 = sphi 0, %s5390
              %p5387 = scmp.ge.s32.totalorder %s5386, 1
              %s5391 = sphi [#allocation3], [#allocation3]
              %s5392 = sphi %s9, %s9
            $region67: #{pause_detector_forward.1} parent=63 // loop_header_branch
              %5389 = sbr.rel (%p5387) target = $region71
            $region68: #{pause_detector_forward.1} parent=63 // loop_body
              %v5393 = vld [vmem:[%s5391] sm:$0x1]
              %5394 = vst [vmem:[%s5392] sm:$0x1] %v5393
            $region69: #{pause_detector_forward.1} parent=63 // loop_footer
              %s5390 = sadd.s32 1, %s5386
            $region70: #{pause_detector_forward.1} parent=63 // loop_footer_branch
              %5385 = sbr.rel target = $region66
            $region71: #{pause_detector_forward.1} parent=63 // loop_exit
              _
          $region64: #{pause_detector_forward.1} parent=48 // pred_fallthru
            _
        $region49: #{pause_detector_forward.1} parent=44 // pred_fallthru
          _
        // Predicated region
        $region50: #{pause_detector_forward.1} parent=44 // pred_check
          _
        $region51: #{pause_detector_forward.1} parent=44 // pred_check_branch
          %5370 = sbr.rel (0) target = $region53
        $region52: #{pause_detector_forward.1} parent=44 // pred_region
          loop: start=0, step=1, limit=1
          $region54: #{pause_detector_forward.1} parent=52 // loop_pre_header
            _
          $region55: #{pause_detector_forward.1} parent=52 // loop_header
            %s5373 = sphi 0, %s5377
            %p5374 = scmp.ge.s32.totalorder %s5373, 1
            %s5378 = sphi [#allocation3], [#allocation3]
            %s5379 = sphi %s9, %s9
          $region56: #{pause_detector_forward.1} parent=52 // loop_header_branch
            %5376 = sbr.rel (%p5374) target = $region60
          $region57: #{pause_detector_forward.1} parent=52 // loop_body
            %v5380 = vld [vmem:[%s5378] sm:$0x1]
            %5381 = vst [vmem:[%s5379] sm:$0x1] %v5380
          $region58: #{pause_detector_forward.1} parent=52 // loop_footer
            %s5377 = sadd.s32 1, %s5373
          $region59: #{pause_detector_forward.1} parent=52 // loop_footer_branch
            %5372 = sbr.rel target = $region55
          $region60: #{pause_detector_forward.1} parent=52 // loop_exit
            _
        $region53: #{pause_detector_forward.1} parent=44 // pred_fallthru
          _
      $region45: #{pause_detector_forward.1} parent=40 // pred_fallthru
        _
      %5395 = vnop
    $region41: #{pause_detector_forward.1} parent=1 // pred_fallthru
      _
    // Predicated region
    $region72: #{pause_detector_forward.1} parent=1 // pred_check
      _
    $region73: #{pause_detector_forward.1} parent=1 // pred_check_branch
      %5397 = sbr.rel (0) target = $region75
    $region74: #{pause_detector_forward.1} parent=1 // pred_region
      _
    $region75: #{pause_detector_forward.1} parent=1 // pred_fallthru
      _

</llo_original>
